<compile_context>
chip_gen: v6e
topology: v6e:2x2x1
jax: 0.10.0
libtpu: 0.0.40
codegen_flags: <defaults>
</compile_context>

<pallas_src>
import jax
import jax.numpy as jnp
from jax.experimental import pallas as pl
from jax.experimental.pallas import tpu as pltpu


def _softplus(v):
    # numerically stable log(1 + exp(v))
    return jnp.maximum(v, 0.0) + jnp.log(1.0 + jnp.exp(-jnp.abs(v)))


def ntm_kernel(x_ref, read0_ref, mem_ref, memT_ref,
               wcr_ref, wcx_ref, bc_ref,
               wrk_ref, brk_ref, wrb_ref, brb_ref,
               wo_ref, bo_ref,
               out_ref, ctrl_sc):
    """Single-invocation NTM forward.

    x_ref:    [T*B, I]   time-major flattened observations (row = t*B + b)
    read0_ref:[B, M]     read head initial state
    mem_ref:  [N, M]     initial memory (reset every step in the reference)
    memT_ref: [M, N]     its transpose (precomputed in the wrapper)
    out_ref:  [T*B, O]   outputs, same row order as x_ref
    ctrl_sc:  [T*B, C]   VMEM scratch holding per-step controller outputs
    """
    B, M = read0_ref.shape
    TB, _ = x_ref.shape
    T = TB // B
    eps = 1e-8

    mem = mem_ref[...]                                           # [N, M]
    memT = memT_ref[...]                                         # [M, N]

    # ---- hoisted, time-invariant work -------------------------------------
    # memory column norms (memory is re-initialized every step -> constant)
    m_norm = jnp.sqrt(jnp.sum(memT * memT, axis=0, keepdims=True))   # [1, N]
    # observation half of the controller matmul, batched over all timesteps
    obs_proj = jnp.dot(x_ref[...], wcx_ref[...],
                       preferred_element_type=jnp.float32) + bc_ref[...]  # [T*B, C]

    wcr = wcr_ref[...]                                           # [M, C]
    wrk = wrk_ref[...]                                           # [C, M]
    brk = brk_ref[...]                                           # [1, M]
    wrb = wrb_ref[...]                                           # [C, 1]
    brb = brb_ref[...]                                           # [1, 1]

    # ---- recurrent time loop (fully unrolled, T is small) -----------------
    read = read0_ref[...]                                        # [B, M]
    for t in range(T):
        lo, hi = t * B, (t + 1) * B
        # controller: tanh(cat([prev_read, obs]) @ W + b) as a split matmul
        ctrl = jnp.tanh(
            jnp.dot(read, wcr, preferred_element_type=jnp.float32)
            + obs_proj[lo:hi, :])                                 # [B, C]
        ctrl_sc[lo:hi, :] = ctrl

        # read head: content addressing over the (reset) memory
        rk = jnp.tanh(
            jnp.dot(ctrl, wrk, preferred_element_type=jnp.float32) + brk)  # [B, M]
        rbeta = _softplus(
            jnp.dot(ctrl, wrb, preferred_element_type=jnp.float32) + brb)  # [B, 1]
        dots = jnp.dot(rk, memT, preferred_element_type=jnp.float32)       # [B, N]
        k_norm = jnp.sqrt(jnp.sum(rk * rk, axis=1, keepdims=True))         # [B, 1]
        sim = dots * pl.reciprocal(k_norm * m_norm + eps, approx=True)
        s = rbeta * sim
        s = s - jnp.max(s, axis=-1, keepdims=True)
        p = jnp.exp(s)
        w_r = p * pl.reciprocal(jnp.sum(p, axis=-1, keepdims=True),
                                approx=True)                               # [B, N]
        read = jnp.dot(w_r, mem, preferred_element_type=jnp.float32)       # [B, M]
        # NOTE: write head omitted — memory is re-initialized at the top of
        # every forward_step in the reference, so its update is dead code.

    # ---- output gate, batched over all timesteps --------------------------
    out_ref[...] = (jnp.dot(ctrl_sc[...], wo_ref[...],
                            preferred_element_type=jnp.float32)
                    + bo_ref[...]).astype(out_ref.dtype)


def ntm_forward(x, params):
    """x: [B, T, I] -> outputs: [B, T, O]."""
    B, T, I = x.shape
    N, M = params["init_mem"].shape
    C = params["w_ctrl"].shape[1]
    O = params["w_out"].shape[1]

    # time-major, flattened: row index = t*B + b
    x_flat = jnp.transpose(x, (1, 0, 2)).reshape(T * B, I)

    w_ctrl_r = params["w_ctrl"][:M, :]                           # [M, C]
    w_ctrl_x = params["w_ctrl"][M:, :]                           # [I, C]
    w_rkey = params["w_heads"][:, :M]                            # [C, M]
    b_rkey = params["b_heads"][:, :M]                            # [1, M]
    w_rbeta = params["w_heads"][:, M:M + 1]                      # [C, 1]
    b_rbeta = params["b_heads"][:, M:M + 1]                      # [1, 1]
    mem = params["init_mem"]
    memT = jnp.transpose(mem)

    def full(shape):
        return pl.BlockSpec(shape, lambda i: tuple(0 for _ in shape))

    out_flat = pl.pallas_call(
        ntm_kernel,
        out_shape=jax.ShapeDtypeStruct((T * B, O), jnp.float32),
        grid_spec=pltpu.PrefetchScalarGridSpec(
            num_scalar_prefetch=0,
            grid=(1,),
            in_specs=[
                full((T * B, I)),        # x_flat
                full((B, M)),            # init read
                full((N, M)),            # memory
                full((M, N)),            # memory^T
                full((M, C)),            # controller W (read part)
                full((I, C)),            # controller W (obs part)
                full((1, C)),            # controller b
                full((C, M)),            # read-key W
                full((1, M)),            # read-key b
                full((C, 1)),            # read-beta W
                full((1, 1)),            # read-beta b
                full((C, O)),            # outputGate W
                full((1, O)),            # outputGate b
            ],
            out_specs=full((T * B, O)),
            scratch_shapes=[pltpu.VMEM((T * B, C), jnp.float32)],
        ),
        compiler_params=pltpu.CompilerParams(
            dimension_semantics=("arbitrary",)),
    )(x_flat, params["init_read"], mem, memT,
      w_ctrl_r, w_ctrl_x, params["b_ctrl"],
      w_rkey, b_rkey, w_rbeta, b_rbeta,
      params["w_out"], params["b_out"])

    # [T*B, O] -> [T, B, O] -> [B, T, O]
    return jnp.transpose(out_flat.reshape(T, B, O), (1, 0, 2))


def ntm_reference(x, params):
    """Pure-JAX mirror of the kernel math (for correctness checking)."""
    B, T, I = x.shape
    M = params["init_read"].shape[1]
    mem = params["init_mem"]
    m_norm = jnp.transpose(jnp.sqrt(jnp.sum(mem * mem, axis=1, keepdims=True)))
    read = params["init_read"]
    outs = []
    for t in range(T):
        obs = x[:, t, :]
        ctrl_in = jnp.concatenate([read, obs], axis=1)
        ctrl = jnp.tanh(ctrl_in @ params["w_ctrl"] + params["b_ctrl"])
        hp = ctrl @ params["w_heads"] + params["b_heads"]
        rk = jnp.tanh(hp[:, :M])
        rbeta = _softplus(hp[:, M:M + 1])
        dots = rk @ mem.T
        k_norm = jnp.sqrt(jnp.sum(rk * rk, axis=1, keepdims=True))
        sim = dots / (k_norm * m_norm + 1e-8)
        s = rbeta * sim
        s = s - jnp.max(s, axis=-1, keepdims=True)
        p = jnp.exp(s)
        w_r = p / jnp.sum(p, axis=-1, keepdims=True)
        read = w_r @ mem
        outs.append(ctrl @ params["w_out"] + params["b_out"])
    return jnp.stack(outs, axis=1)


def make_params(key, *, batch_size, input_size, controller_output_size,
                output_size, address_count, address_dimension):
    I, C, O = input_size, controller_output_size, output_size
    N, M = address_count, address_dimension
    # Only the read head's projections are kept: [read_key (M), read_beta (1)].
    # The write head never influences outputs (memory reset each step).
    P = M + 1
    ks = jax.random.split(key, 10)

    def lin(k, fi, fo):
        return jax.random.normal(k, (fi, fo), jnp.float32) / jnp.sqrt(float(fi))

    return {
        "w_ctrl": lin(ks[0], M + I, C),
        "b_ctrl": 0.01 * jax.random.normal(ks[1], (1, C), jnp.float32),
        "w_heads": lin(ks[2], C, P),
        "b_heads": 0.01 * jax.random.normal(ks[3], (1, P), jnp.float32),
        "w_out": lin(ks[4], C, O),
        "b_out": 0.01 * jax.random.normal(ks[5], (1, O), jnp.float32),
        "init_read": 0.1 * jax.random.normal(ks[6], (batch_size, M), jnp.float32),
        "init_mem": 0.1 * jax.random.normal(ks[7], (N, M), jnp.float32),
    }


# Small, module-consistent sizes.
BATCH = 2                 # batch_size
SEQ = 8                   # sequence length
INPUT = 8                 # per-step observation size
CTRL_OUT = 32             # controller_output_size
OUT = 8                   # output_size
N_ADDR = 32               # address_count
M_ADDR = 16               # address_dimension
# heads = [0, 1]  (one read head, one write head; write head is output-dead)

if __name__ == "__main__":
    key = jax.random.PRNGKey(0)
    kx, kp = jax.random.split(key)
    x = jax.random.normal(kx, (BATCH, SEQ, INPUT), jnp.float32)
    params = make_params(kp, batch_size=BATCH, input_size=INPUT,
                         controller_output_size=CTRL_OUT, output_size=OUT,
                         address_count=N_ADDR, address_dimension=M_ADDR)

    out = ntm_forward(x, params)
    out = jax.block_until_ready(out)

    ref = ntm_reference(x, params)
    assert out.shape == (BATCH, SEQ, OUT)
    # Loose tolerance: MXU f32 matmul + approx reciprocals vs XLA reference.
    assert jnp.allclose(out, ref, rtol=1e-2, atol=1e-2), \
        f"max err {jnp.max(jnp.abs(out - ref))}"

    print("KERNEL_OK")
</pallas_src>

<mosaic_0001>
module attributes {stable_mosaic.version = 11 : i64} {
  func.func @ntm_kernel(%arg0: i32, %arg1: memref<16x8xf32, #tpu.memory_space<vmem>>, %arg2: memref<2x16xf32, #tpu.memory_space<vmem>>, %arg3: memref<32x16xf32, #tpu.memory_space<vmem>>, %arg4: memref<16x32xf32, #tpu.memory_space<vmem>>, %arg5: memref<16x32xf32, #tpu.memory_space<vmem>>, %arg6: memref<8x32xf32, #tpu.memory_space<vmem>>, %arg7: memref<1x32xf32, #tpu.memory_space<vmem>>, %arg8: memref<32x16xf32, #tpu.memory_space<vmem>>, %arg9: memref<1x16xf32, #tpu.memory_space<vmem>>, %arg10: memref<32x1xf32, #tpu.memory_space<vmem>>, %arg11: memref<1x1xf32, #tpu.memory_space<vmem>>, %arg12: memref<32x8xf32, #tpu.memory_space<vmem>>, %arg13: memref<1x8xf32, #tpu.memory_space<vmem>>, %arg14: memref<16x8xf32, #tpu.memory_space<vmem>>, %arg15: memref<16x32xf32, #tpu.memory_space<vmem>>) attributes {dimension_semantics = [#tpu.dimension_semantics<arbitrary>], iteration_bounds = array<i64: 1>, scalar_prefetch = 0 : i64, scratch_operands = 1 : i64, tpu.core_type = #tpu.core_type<tc>, window_params = [{pipeline_mode = #tpu.pipeline_mode<synchronous>, transform_indices = @transform_0, window_bounds = array<i64: 16, 8>}, {pipeline_mode = #tpu.pipeline_mode<synchronous>, transform_indices = @transform_1, window_bounds = array<i64: 2, 16>}, {pipeline_mode = #tpu.pipeline_mode<synchronous>, transform_indices = @transform_2, window_bounds = array<i64: 32, 16>}, {pipeline_mode = #tpu.pipeline_mode<synchronous>, transform_indices = @transform_3, window_bounds = array<i64: 16, 32>}, {pipeline_mode = #tpu.pipeline_mode<synchronous>, transform_indices = @transform_4, window_bounds = array<i64: 16, 32>}, {pipeline_mode = #tpu.pipeline_mode<synchronous>, transform_indices = @transform_5, window_bounds = array<i64: 8, 32>}, {pipeline_mode = #tpu.pipeline_mode<synchronous>, transform_indices = @transform_6, window_bounds = array<i64: 1, 32>}, {pipeline_mode = #tpu.pipeline_mode<synchronous>, transform_indices = @transform_7, window_bounds = array<i64: 32, 16>}, {pipeline_mode = #tpu.pipeline_mode<synchronous>, transform_indices = @transform_8, window_bounds = array<i64: 1, 16>}, {pipeline_mode = #tpu.pipeline_mode<synchronous>, transform_indices = @transform_9, window_bounds = array<i64: 32, 1>}, {pipeline_mode = #tpu.pipeline_mode<synchronous>, transform_indices = @transform_10, window_bounds = array<i64: 1, 1>}, {pipeline_mode = #tpu.pipeline_mode<synchronous>, transform_indices = @transform_11, window_bounds = array<i64: 32, 8>}, {pipeline_mode = #tpu.pipeline_mode<synchronous>, transform_indices = @transform_12, window_bounds = array<i64: 1, 8>}, {pipeline_mode = #tpu.pipeline_mode<synchronous>, transform_indices = @transform_13, window_bounds = array<i64: 16, 8>}]} {
    %c0 = arith.constant 0 : index
    %c0_0 = arith.constant 0 : index
    %0 = vector.load %arg3[%c0, %c0_0] : memref<32x16xf32, #tpu.memory_space<vmem>>, vector<32x16xf32>
    %c0_1 = arith.constant 0 : index
    %c0_2 = arith.constant 0 : index
    %1 = vector.load %arg4[%c0_1, %c0_2] : memref<16x32xf32, #tpu.memory_space<vmem>>, vector<16x32xf32>
    %2 = arith.mulf %1, %1 : vector<16x32xf32>
    %cst = arith.constant dense<0.000000e+00> : vector<32xf32>
    %3 = vector.multi_reduction <add>, %2, %cst [0] : vector<16x32xf32> to vector<32xf32>
    %4 = vector.shape_cast %3 : vector<32xf32> to vector<1x32xf32>
    %5 = math.sqrt %4 : vector<1x32xf32>
    %c0_3 = arith.constant 0 : index
    %c0_4 = arith.constant 0 : index
    %6 = vector.load %arg1[%c0_3, %c0_4] : memref<16x8xf32, #tpu.memory_space<vmem>>, vector<16x8xf32>
    %c0_5 = arith.constant 0 : index
    %c0_6 = arith.constant 0 : index
    %7 = vector.load %arg6[%c0_5, %c0_6] : memref<8x32xf32, #tpu.memory_space<vmem>>, vector<8x32xf32>
    %cst_7 = arith.constant dense<0.000000e+00> : vector<16x32xf32>
    %8 = tpu.matmul %6, %7, %cst_7 {dimension_numbers = #tpu.dot_dimension_numbers<[1], [0], [0], [1], [0, 0, 1, 1], [], []>} : vector<16x8xf32>, vector<8x32xf32>, vector<16x32xf32> -> vector<16x32xf32>
    %c0_8 = arith.constant 0 : index
    %c0_9 = arith.constant 0 : index
    %9 = vector.load %arg7[%c0_8, %c0_9] : memref<1x32xf32, #tpu.memory_space<vmem>>, vector<1x32xf32>
    %10 = vector.broadcast %9 : vector<1x32xf32> to vector<16x32xf32>
    %11 = arith.addf %8, %10 : vector<16x32xf32>
    %c0_10 = arith.constant 0 : index
    %c0_11 = arith.constant 0 : index
    %12 = vector.load %arg5[%c0_10, %c0_11] : memref<16x32xf32, #tpu.memory_space<vmem>>, vector<16x32xf32>
    %c0_12 = arith.constant 0 : index
    %c0_13 = arith.constant 0 : index
    %13 = vector.load %arg8[%c0_12, %c0_13] : memref<32x16xf32, #tpu.memory_space<vmem>>, vector<32x16xf32>
    %c0_14 = arith.constant 0 : index
    %c0_15 = arith.constant 0 : index
    %14 = vector.load %arg9[%c0_14, %c0_15] : memref<1x16xf32, #tpu.memory_space<vmem>>, vector<1x16xf32>
    %c0_16 = arith.constant 0 : index
    %c0_17 = arith.constant 0 : index
    %15 = vector.load %arg10[%c0_16, %c0_17] : memref<32x1xf32, #tpu.memory_space<vmem>>, vector<32x1xf32>
    %c0_18 = arith.constant 0 : index
    %c0_19 = arith.constant 0 : index
    %16 = vector.load %arg11[%c0_18, %c0_19] : memref<1x1xf32, #tpu.memory_space<vmem>>, vector<1x1xf32>
    %c0_20 = arith.constant 0 : index
    %c0_21 = arith.constant 0 : index
    %17 = vector.load %arg2[%c0_20, %c0_21] : memref<2x16xf32, #tpu.memory_space<vmem>>, vector<2x16xf32>
    %cst_22 = arith.constant dense<0.000000e+00> : vector<2x32xf32>
    %18 = tpu.matmul %17, %12, %cst_22 {dimension_numbers = #tpu.dot_dimension_numbers<[1], [0], [0], [1], [0, 0, 1, 1], [], []>} : vector<2x16xf32>, vector<16x32xf32>, vector<2x32xf32> -> vector<2x32xf32>
    %19 = vector.extract_strided_slice %11 {offsets = [0, 0], sizes = [2, 32], strides = [1, 1]} : vector<16x32xf32> to vector<2x32xf32>
    %20 = arith.addf %18, %19 : vector<2x32xf32>
    %21 = math.tanh %20 : vector<2x32xf32>
    %c0_23 = arith.constant 0 : index
    %c0_24 = arith.constant 0 : index
    %22 = vector.load %arg15[%c0_23, %c0_24] : memref<16x32xf32, #tpu.memory_space<vmem>>, vector<2x32xf32>
    tpu.vector_store %arg15[%c0_23, %c0_24], %21 {strides = array<i32>} : memref<16x32xf32, #tpu.memory_space<vmem>>, vector<2x32xf32>,
    %cst_25 = arith.constant dense<0.000000e+00> : vector<2x16xf32>
    %23 = tpu.matmul %21, %13, %cst_25 {dimension_numbers = #tpu.dot_dimension_numbers<[1], [0], [0], [1], [0, 0, 1, 1], [], []>} : vector<2x32xf32>, vector<32x16xf32>, vector<2x16xf32> -> vector<2x16xf32>
    %24 = vector.broadcast %14 : vector<1x16xf32> to vector<2x16xf32>
    %25 = arith.addf %23, %24 : vector<2x16xf32>
    %26 = math.tanh %25 : vector<2x16xf32>
    %cst_26 = arith.constant dense<0.000000e+00> : vector<2x1xf32>
    %27 = tpu.matmul %21, %15, %cst_26 {dimension_numbers = #tpu.dot_dimension_numbers<[1], [0], [0], [1], [0, 0, 1, 1], [], []>} : vector<2x32xf32>, vector<32x1xf32>, vector<2x1xf32> -> vector<2x1xf32>
    %28 = vector.broadcast %16 : vector<1x1xf32> to vector<2x1xf32>
    %29 = arith.addf %27, %28 : vector<2x1xf32>
    %cst_27 = arith.constant 0.000000e+00 : f32
    %30 = vector.broadcast %cst_27 : f32 to vector<2x1xf32>
    %31 = arith.maximumf %29, %30 : vector<2x1xf32>
    %32 = math.absf %29 : vector<2x1xf32>
    %cst_28 = arith.constant 0.000000e+00 : f32
    %33 = vector.broadcast %cst_28 : f32 to vector<2x1xf32>
    %34 = arith.subf %33, %32 : vector<2x1xf32>
    %35 = math.exp %34 : vector<2x1xf32>
    %cst_29 = arith.constant 1.000000e+00 : f32
    %36 = vector.broadcast %cst_29 : f32 to vector<2x1xf32>
    %37 = arith.addf %36, %35 : vector<2x1xf32>
    %38 = math.log %37 : vector<2x1xf32>
    %39 = arith.addf %31, %38 : vector<2x1xf32>
    %cst_30 = arith.constant dense<0.000000e+00> : vector<2x32xf32>
    %40 = tpu.matmul %26, %1, %cst_30 {dimension_numbers = #tpu.dot_dimension_numbers<[1], [0], [0], [1], [0, 0, 1, 1], [], []>} : vector<2x16xf32>, vector<16x32xf32>, vector<2x32xf32> -> vector<2x32xf32>
    %41 = arith.mulf %26, %26 : vector<2x16xf32>
    %cst_31 = arith.constant dense<0.000000e+00> : vector<2xf32>
    %42 = vector.multi_reduction <add>, %41, %cst_31 [1] : vector<2x16xf32> to vector<2xf32>
    %43 = vector.shape_cast %42 : vector<2xf32> to vector<2x1xf32>
    %44 = math.sqrt %43 : vector<2x1xf32>
    %45 = vector.broadcast %44 : vector<2x1xf32> to vector<2x32xf32>
    %46 = vector.broadcast %5 : vector<1x32xf32> to vector<2x32xf32>
    %47 = arith.mulf %45, %46 : vector<2x32xf32>
    %cst_32 = arith.constant 9.99999993E-9 : f32
    %48 = vector.broadcast %cst_32 : f32 to vector<2x32xf32>
    %49 = arith.addf %47, %48 : vector<2x32xf32>
    %50 = tpu.reciprocal %49 {approx = true} : vector<2x32xf32> -> vector<2x32xf32>
    %51 = arith.mulf %40, %50 : vector<2x32xf32>
    %52 = vector.broadcast %39 : vector<2x1xf32> to vector<2x32xf32>
    %53 = arith.mulf %52, %51 : vector<2x32xf32>
    %cst_33 = arith.constant dense<0xFF800000> : vector<2xf32>
    %54 = vector.multi_reduction <maximumf>, %53, %cst_33 [1] : vector<2x32xf32> to vector<2xf32>
    %55 = vector.shape_cast %54 : vector<2xf32> to vector<2x1xf32>
    %56 = vector.broadcast %55 : vector<2x1xf32> to vector<2x32xf32>
    %57 = arith.subf %53, %56 : vector<2x32xf32>
    %58 = math.exp %57 : vector<2x32xf32>
    %cst_34 = arith.constant dense<0.000000e+00> : vector<2xf32>
    %59 = vector.multi_reduction <add>, %58, %cst_34 [1] : vector<2x32xf32> to vector<2xf32>
    %60 = vector.shape_cast %59 : vector<2xf32> to vector<2x1xf32>
    %61 = tpu.reciprocal %60 {approx = true} : vector<2x1xf32> -> vector<2x1xf32>
    %62 = vector.broadcast %61 : vector<2x1xf32> to vector<2x32xf32>
    %63 = arith.mulf %58, %62 : vector<2x32xf32>
    %cst_35 = arith.constant dense<0.000000e+00> : vector<2x16xf32>
    %64 = tpu.matmul %63, %0, %cst_35 {dimension_numbers = #tpu.dot_dimension_numbers<[1], [0], [0], [1], [0, 0, 1, 1], [], []>} : vector<2x32xf32>, vector<32x16xf32>, vector<2x16xf32> -> vector<2x16xf32>
    %cst_36 = arith.constant dense<0.000000e+00> : vector<2x32xf32>
    %65 = tpu.matmul %64, %12, %cst_36 {dimension_numbers = #tpu.dot_dimension_numbers<[1], [0], [0], [1], [0, 0, 1, 1], [], []>} : vector<2x16xf32>, vector<16x32xf32>, vector<2x32xf32> -> vector<2x32xf32>
    %66 = vector.extract_strided_slice %11 {offsets = [2, 0], sizes = [2, 32], strides = [1, 1]} : vector<16x32xf32> to vector<2x32xf32>
    %67 = arith.addf %65, %66 : vector<2x32xf32>
    %68 = math.tanh %67 : vector<2x32xf32>
    %c2 = arith.constant 2 : index
    %c0_37 = arith.constant 0 : index
    %69 = vector.load %arg15[%c2, %c0_37] : memref<16x32xf32, #tpu.memory_space<vmem>>, vector<2x32xf32>
    tpu.vector_store %arg15[%c2, %c0_37], %68 {strides = array<i32>} : memref<16x32xf32, #tpu.memory_space<vmem>>, vector<2x32xf32>,
    %cst_38 = arith.constant dense<0.000000e+00> : vector<2x16xf32>
    %70 = tpu.matmul %68, %13, %cst_38 {dimension_numbers = #tpu.dot_dimension_numbers<[1], [0], [0], [1], [0, 0, 1, 1], [], []>} : vector<2x32xf32>, vector<32x16xf32>, vector<2x16xf32> -> vector<2x16xf32>
    %71 = vector.broadcast %14 : vector<1x16xf32> to vector<2x16xf32>
    %72 = arith.addf %70, %71 : vector<2x16xf32>
    %73 = math.tanh %72 : vector<2x16xf32>
    %cst_39 = arith.constant dense<0.000000e+00> : vector<2x1xf32>
    %74 = tpu.matmul %68, %15, %cst_39 {dimension_numbers = #tpu.dot_dimension_numbers<[1], [0], [0], [1], [0, 0, 1, 1], [], []>} : vector<2x32xf32>, vector<32x1xf32>, vector<2x1xf32> -> vector<2x1xf32>
    %75 = vector.broadcast %16 : vector<1x1xf32> to vector<2x1xf32>
    %76 = arith.addf %74, %75 : vector<2x1xf32>
    %cst_40 = arith.constant 0.000000e+00 : f32
    %77 = vector.broadcast %cst_40 : f32 to vector<2x1xf32>
    %78 = arith.maximumf %76, %77 : vector<2x1xf32>
    %79 = math.absf %76 : vector<2x1xf32>
    %cst_41 = arith.constant 0.000000e+00 : f32
    %80 = vector.broadcast %cst_41 : f32 to vector<2x1xf32>
    %81 = arith.subf %80, %79 : vector<2x1xf32>
    %82 = math.exp %81 : vector<2x1xf32>
    %cst_42 = arith.constant 1.000000e+00 : f32
    %83 = vector.broadcast %cst_42 : f32 to vector<2x1xf32>
    %84 = arith.addf %83, %82 : vector<2x1xf32>
    %85 = math.log %84 : vector<2x1xf32>
    %86 = arith.addf %78, %85 : vector<2x1xf32>
    %cst_43 = arith.constant dense<0.000000e+00> : vector<2x32xf32>
    %87 = tpu.matmul %73, %1, %cst_43 {dimension_numbers = #tpu.dot_dimension_numbers<[1], [0], [0], [1], [0, 0, 1, 1], [], []>} : vector<2x16xf32>, vector<16x32xf32>, vector<2x32xf32> -> vector<2x32xf32>
    %88 = arith.mulf %73, %73 : vector<2x16xf32>
    %cst_44 = arith.constant dense<0.000000e+00> : vector<2xf32>
    %89 = vector.multi_reduction <add>, %88, %cst_44 [1] : vector<2x16xf32> to vector<2xf32>
    %90 = vector.shape_cast %89 : vector<2xf32> to vector<2x1xf32>
    %91 = math.sqrt %90 : vector<2x1xf32>
    %92 = vector.broadcast %91 : vector<2x1xf32> to vector<2x32xf32>
    %93 = vector.broadcast %5 : vector<1x32xf32> to vector<2x32xf32>
    %94 = arith.mulf %92, %93 : vector<2x32xf32>
    %cst_45 = arith.constant 9.99999993E-9 : f32
    %95 = vector.broadcast %cst_45 : f32 to vector<2x32xf32>
    %96 = arith.addf %94, %95 : vector<2x32xf32>
    %97 = tpu.reciprocal %96 {approx = true} : vector<2x32xf32> -> vector<2x32xf32>
    %98 = arith.mulf %87, %97 : vector<2x32xf32>
    %99 = vector.broadcast %86 : vector<2x1xf32> to vector<2x32xf32>
    %100 = arith.mulf %99, %98 : vector<2x32xf32>
    %cst_46 = arith.constant dense<0xFF800000> : vector<2xf32>
    %101 = vector.multi_reduction <maximumf>, %100, %cst_46 [1] : vector<2x32xf32> to vector<2xf32>
    %102 = vector.shape_cast %101 : vector<2xf32> to vector<2x1xf32>
    %103 = vector.broadcast %102 : vector<2x1xf32> to vector<2x32xf32>
    %104 = arith.subf %100, %103 : vector<2x32xf32>
    %105 = math.exp %104 : vector<2x32xf32>
    %cst_47 = arith.constant dense<0.000000e+00> : vector<2xf32>
    %106 = vector.multi_reduction <add>, %105, %cst_47 [1] : vector<2x32xf32> to vector<2xf32>
    %107 = vector.shape_cast %106 : vector<2xf32> to vector<2x1xf32>
    %108 = tpu.reciprocal %107 {approx = true} : vector<2x1xf32> -> vector<2x1xf32>
    %109 = vector.broadcast %108 : vector<2x1xf32> to vector<2x32xf32>
    %110 = arith.mulf %105, %109 : vector<2x32xf32>
    %cst_48 = arith.constant dense<0.000000e+00> : vector<2x16xf32>
    %111 = tpu.matmul %110, %0, %cst_48 {dimension_numbers = #tpu.dot_dimension_numbers<[1], [0], [0], [1], [0, 0, 1, 1], [], []>} : vector<2x32xf32>, vector<32x16xf32>, vector<2x16xf32> -> vector<2x16xf32>
    %cst_49 = arith.constant dense<0.000000e+00> : vector<2x32xf32>
    %112 = tpu.matmul %111, %12, %cst_49 {dimension_numbers = #tpu.dot_dimension_numbers<[1], [0], [0], [1], [0, 0, 1, 1], [], []>} : vector<2x16xf32>, vector<16x32xf32>, vector<2x32xf32> -> vector<2x32xf32>
    %113 = vector.extract_strided_slice %11 {offsets = [4, 0], sizes = [2, 32], strides = [1, 1]} : vector<16x32xf32> to vector<2x32xf32>
    %114 = arith.addf %112, %113 : vector<2x32xf32>
    %115 = math.tanh %114 : vector<2x32xf32>
    %c4 = arith.constant 4 : index
    %c0_50 = arith.constant 0 : index
    %116 = vector.load %arg15[%c4, %c0_50] : memref<16x32xf32, #tpu.memory_space<vmem>>, vector<2x32xf32>
    tpu.vector_store %arg15[%c4, %c0_50], %115 {strides = array<i32>} : memref<16x32xf32, #tpu.memory_space<vmem>>, vector<2x32xf32>,
    %cst_51 = arith.constant dense<0.000000e+00> : vector<2x16xf32>
    %117 = tpu.matmul %115, %13, %cst_51 {dimension_numbers = #tpu.dot_dimension_numbers<[1], [0], [0], [1], [0, 0, 1, 1], [], []>} : vector<2x32xf32>, vector<32x16xf32>, vector<2x16xf32> -> vector<2x16xf32>
    %118 = vector.broadcast %14 : vector<1x16xf32> to vector<2x16xf32>
    %119 = arith.addf %117, %118 : vector<2x16xf32>
    %120 = math.tanh %119 : vector<2x16xf32>
    %cst_52 = arith.constant dense<0.000000e+00> : vector<2x1xf32>
    %121 = tpu.matmul %115, %15, %cst_52 {dimension_numbers = #tpu.dot_dimension_numbers<[1], [0], [0], [1], [0, 0, 1, 1], [], []>} : vector<2x32xf32>, vector<32x1xf32>, vector<2x1xf32> -> vector<2x1xf32>
    %122 = vector.broadcast %16 : vector<1x1xf32> to vector<2x1xf32>
    %123 = arith.addf %121, %122 : vector<2x1xf32>
    %cst_53 = arith.constant 0.000000e+00 : f32
    %124 = vector.broadcast %cst_53 : f32 to vector<2x1xf32>
    %125 = arith.maximumf %123, %124 : vector<2x1xf32>
    %126 = math.absf %123 : vector<2x1xf32>
    %cst_54 = arith.constant 0.000000e+00 : f32
    %127 = vector.broadcast %cst_54 : f32 to vector<2x1xf32>
    %128 = arith.subf %127, %126 : vector<2x1xf32>
    %129 = math.exp %128 : vector<2x1xf32>
    %cst_55 = arith.constant 1.000000e+00 : f32
    %130 = vector.broadcast %cst_55 : f32 to vector<2x1xf32>
    %131 = arith.addf %130, %129 : vector<2x1xf32>
    %132 = math.log %131 : vector<2x1xf32>
    %133 = arith.addf %125, %132 : vector<2x1xf32>
    %cst_56 = arith.constant dense<0.000000e+00> : vector<2x32xf32>
    %134 = tpu.matmul %120, %1, %cst_56 {dimension_numbers = #tpu.dot_dimension_numbers<[1], [0], [0], [1], [0, 0, 1, 1], [], []>} : vector<2x16xf32>, vector<16x32xf32>, vector<2x32xf32> -> vector<2x32xf32>
    %135 = arith.mulf %120, %120 : vector<2x16xf32>
    %cst_57 = arith.constant dense<0.000000e+00> : vector<2xf32>
    %136 = vector.multi_reduction <add>, %135, %cst_57 [1] : vector<2x16xf32> to vector<2xf32>
    %137 = vector.shape_cast %136 : vector<2xf32> to vector<2x1xf32>
    %138 = math.sqrt %137 : vector<2x1xf32>
    %139 = vector.broadcast %138 : vector<2x1xf32> to vector<2x32xf32>
    %140 = vector.broadcast %5 : vector<1x32xf32> to vector<2x32xf32>
    %141 = arith.mulf %139, %140 : vector<2x32xf32>
    %cst_58 = arith.constant 9.99999993E-9 : f32
    %142 = vector.broadcast %cst_58 : f32 to vector<2x32xf32>
    %143 = arith.addf %141, %142 : vector<2x32xf32>
    %144 = tpu.reciprocal %143 {approx = true} : vector<2x32xf32> -> vector<2x32xf32>
    %145 = arith.mulf %134, %144 : vector<2x32xf32>
    %146 = vector.broadcast %133 : vector<2x1xf32> to vector<2x32xf32>
    %147 = arith.mulf %146, %145 : vector<2x32xf32>
    %cst_59 = arith.constant dense<0xFF800000> : vector<2xf32>
    %148 = vector.multi_reduction <maximumf>, %147, %cst_59 [1] : vector<2x32xf32> to vector<2xf32>
    %149 = vector.shape_cast %148 : vector<2xf32> to vector<2x1xf32>
    %150 = vector.broadcast %149 : vector<2x1xf32> to vector<2x32xf32>
    %151 = arith.subf %147, %150 : vector<2x32xf32>
    %152 = math.exp %151 : vector<2x32xf32>
    %cst_60 = arith.constant dense<0.000000e+00> : vector<2xf32>
    %153 = vector.multi_reduction <add>, %152, %cst_60 [1] : vector<2x32xf32> to vector<2xf32>
    %154 = vector.shape_cast %153 : vector<2xf32> to vector<2x1xf32>
    %155 = tpu.reciprocal %154 {approx = true} : vector<2x1xf32> -> vector<2x1xf32>
    %156 = vector.broadcast %155 : vector<2x1xf32> to vector<2x32xf32>
    %157 = arith.mulf %152, %156 : vector<2x32xf32>
    %cst_61 = arith.constant dense<0.000000e+00> : vector<2x16xf32>
    %158 = tpu.matmul %157, %0, %cst_61 {dimension_numbers = #tpu.dot_dimension_numbers<[1], [0], [0], [1], [0, 0, 1, 1], [], []>} : vector<2x32xf32>, vector<32x16xf32>, vector<2x16xf32> -> vector<2x16xf32>
    %cst_62 = arith.constant dense<0.000000e+00> : vector<2x32xf32>
    %159 = tpu.matmul %158, %12, %cst_62 {dimension_numbers = #tpu.dot_dimension_numbers<[1], [0], [0], [1], [0, 0, 1, 1], [], []>} : vector<2x16xf32>, vector<16x32xf32>, vector<2x32xf32> -> vector<2x32xf32>
    %160 = vector.extract_strided_slice %11 {offsets = [6, 0], sizes = [2, 32], strides = [1, 1]} : vector<16x32xf32> to vector<2x32xf32>
    %161 = arith.addf %159, %160 : vector<2x32xf32>
    %162 = math.tanh %161 : vector<2x32xf32>
    %c6 = arith.constant 6 : index
    %c0_63 = arith.constant 0 : index
    %163 = vector.load %arg15[%c6, %c0_63] : memref<16x32xf32, #tpu.memory_space<vmem>>, vector<2x32xf32>
    tpu.vector_store %arg15[%c6, %c0_63], %162 {strides = array<i32>} : memref<16x32xf32, #tpu.memory_space<vmem>>, vector<2x32xf32>,
    %cst_64 = arith.constant dense<0.000000e+00> : vector<2x16xf32>
    %164 = tpu.matmul %162, %13, %cst_64 {dimension_numbers = #tpu.dot_dimension_numbers<[1], [0], [0], [1], [0, 0, 1, 1], [], []>} : vector<2x32xf32>, vector<32x16xf32>, vector<2x16xf32> -> vector<2x16xf32>
    %165 = vector.broadcast %14 : vector<1x16xf32> to vector<2x16xf32>
    %166 = arith.addf %164, %165 : vector<2x16xf32>
    %167 = math.tanh %166 : vector<2x16xf32>
    %cst_65 = arith.constant dense<0.000000e+00> : vector<2x1xf32>
    %168 = tpu.matmul %162, %15, %cst_65 {dimension_numbers = #tpu.dot_dimension_numbers<[1], [0], [0], [1], [0, 0, 1, 1], [], []>} : vector<2x32xf32>, vector<32x1xf32>, vector<2x1xf32> -> vector<2x1xf32>
    %169 = vector.broadcast %16 : vector<1x1xf32> to vector<2x1xf32>
    %170 = arith.addf %168, %169 : vector<2x1xf32>
    %cst_66 = arith.constant 0.000000e+00 : f32
    %171 = vector.broadcast %cst_66 : f32 to vector<2x1xf32>
    %172 = arith.maximumf %170, %171 : vector<2x1xf32>
    %173 = math.absf %170 : vector<2x1xf32>
    %cst_67 = arith.constant 0.000000e+00 : f32
    %174 = vector.broadcast %cst_67 : f32 to vector<2x1xf32>
    %175 = arith.subf %174, %173 : vector<2x1xf32>
    %176 = math.exp %175 : vector<2x1xf32>
    %cst_68 = arith.constant 1.000000e+00 : f32
    %177 = vector.broadcast %cst_68 : f32 to vector<2x1xf32>
    %178 = arith.addf %177, %176 : vector<2x1xf32>
    %179 = math.log %178 : vector<2x1xf32>
    %180 = arith.addf %172, %179 : vector<2x1xf32>
    %cst_69 = arith.constant dense<0.000000e+00> : vector<2x32xf32>
    %181 = tpu.matmul %167, %1, %cst_69 {dimension_numbers = #tpu.dot_dimension_numbers<[1], [0], [0], [1], [0, 0, 1, 1], [], []>} : vector<2x16xf32>, vector<16x32xf32>, vector<2x32xf32> -> vector<2x32xf32>
    %182 = arith.mulf %167, %167 : vector<2x16xf32>
    %cst_70 = arith.constant dense<0.000000e+00> : vector<2xf32>
    %183 = vector.multi_reduction <add>, %182, %cst_70 [1] : vector<2x16xf32> to vector<2xf32>
    %184 = vector.shape_cast %183 : vector<2xf32> to vector<2x1xf32>
    %185 = math.sqrt %184 : vector<2x1xf32>
    %186 = vector.broadcast %185 : vector<2x1xf32> to vector<2x32xf32>
    %187 = vector.broadcast %5 : vector<1x32xf32> to vector<2x32xf32>
    %188 = arith.mulf %186, %187 : vector<2x32xf32>
    %cst_71 = arith.constant 9.99999993E-9 : f32
    %189 = vector.broadcast %cst_71 : f32 to vector<2x32xf32>
    %190 = arith.addf %188, %189 : vector<2x32xf32>
    %191 = tpu.reciprocal %190 {approx = true} : vector<2x32xf32> -> vector<2x32xf32>
    %192 = arith.mulf %181, %191 : vector<2x32xf32>
    %193 = vector.broadcast %180 : vector<2x1xf32> to vector<2x32xf32>
    %194 = arith.mulf %193, %192 : vector<2x32xf32>
    %cst_72 = arith.constant dense<0xFF800000> : vector<2xf32>
    %195 = vector.multi_reduction <maximumf>, %194, %cst_72 [1] : vector<2x32xf32> to vector<2xf32>
    %196 = vector.shape_cast %195 : vector<2xf32> to vector<2x1xf32>
    %197 = vector.broadcast %196 : vector<2x1xf32> to vector<2x32xf32>
    %198 = arith.subf %194, %197 : vector<2x32xf32>
    %199 = math.exp %198 : vector<2x32xf32>
    %cst_73 = arith.constant dense<0.000000e+00> : vector<2xf32>
    %200 = vector.multi_reduction <add>, %199, %cst_73 [1] : vector<2x32xf32> to vector<2xf32>
    %201 = vector.shape_cast %200 : vector<2xf32> to vector<2x1xf32>
    %202 = tpu.reciprocal %201 {approx = true} : vector<2x1xf32> -> vector<2x1xf32>
    %203 = vector.broadcast %202 : vector<2x1xf32> to vector<2x32xf32>
    %204 = arith.mulf %199, %203 : vector<2x32xf32>
    %cst_74 = arith.constant dense<0.000000e+00> : vector<2x16xf32>
    %205 = tpu.matmul %204, %0, %cst_74 {dimension_numbers = #tpu.dot_dimension_numbers<[1], [0], [0], [1], [0, 0, 1, 1], [], []>} : vector<2x32xf32>, vector<32x16xf32>, vector<2x16xf32> -> vector<2x16xf32>
    %cst_75 = arith.constant dense<0.000000e+00> : vector<2x32xf32>
    %206 = tpu.matmul %205, %12, %cst_75 {dimension_numbers = #tpu.dot_dimension_numbers<[1], [0], [0], [1], [0, 0, 1, 1], [], []>} : vector<2x16xf32>, vector<16x32xf32>, vector<2x32xf32> -> vector<2x32xf32>
    %207 = vector.extract_strided_slice %11 {offsets = [8, 0], sizes = [2, 32], strides = [1, 1]} : vector<16x32xf32> to vector<2x32xf32>
    %208 = arith.addf %206, %207 : vector<2x32xf32>
    %209 = math.tanh %208 : vector<2x32xf32>
    %c8 = arith.constant 8 : index
    %c0_76 = arith.constant 0 : index
    %210 = vector.load %arg15[%c8, %c0_76] : memref<16x32xf32, #tpu.memory_space<vmem>>, vector<2x32xf32>
    tpu.vector_store %arg15[%c8, %c0_76], %209 {strides = array<i32>} : memref<16x32xf32, #tpu.memory_space<vmem>>, vector<2x32xf32>,
    %cst_77 = arith.constant dense<0.000000e+00> : vector<2x16xf32>
    %211 = tpu.matmul %209, %13, %cst_77 {dimension_numbers = #tpu.dot_dimension_numbers<[1], [0], [0], [1], [0, 0, 1, 1], [], []>} : vector<2x32xf32>, vector<32x16xf32>, vector<2x16xf32> -> vector<2x16xf32>
    %212 = vector.broadcast %14 : vector<1x16xf32> to vector<2x16xf32>
    %213 = arith.addf %211, %212 : vector<2x16xf32>
    %214 = math.tanh %213 : vector<2x16xf32>
    %cst_78 = arith.constant dense<0.000000e+00> : vector<2x1xf32>
    %215 = tpu.matmul %209, %15, %cst_78 {dimension_numbers = #tpu.dot_dimension_numbers<[1], [0], [0], [1], [0, 0, 1, 1], [], []>} : vector<2x32xf32>, vector<32x1xf32>, vector<2x1xf32> -> vector<2x1xf32>
    %216 = vector.broadcast %16 : vector<1x1xf32> to vector<2x1xf32>
    %217 = arith.addf %215, %216 : vector<2x1xf32>
    %cst_79 = arith.constant 0.000000e+00 : f32
    %218 = vector.broadcast %cst_79 : f32 to vector<2x1xf32>
    %219 = arith.maximumf %217, %218 : vector<2x1xf32>
    %220 = math.absf %217 : vector<2x1xf32>
    %cst_80 = arith.constant 0.000000e+00 : f32
    %221 = vector.broadcast %cst_80 : f32 to vector<2x1xf32>
    %222 = arith.subf %221, %220 : vector<2x1xf32>
    %223 = math.exp %222 : vector<2x1xf32>
    %cst_81 = arith.constant 1.000000e+00 : f32
    %224 = vector.broadcast %cst_81 : f32 to vector<2x1xf32>
    %225 = arith.addf %224, %223 : vector<2x1xf32>
    %226 = math.log %225 : vector<2x1xf32>
    %227 = arith.addf %219, %226 : vector<2x1xf32>
    %cst_82 = arith.constant dense<0.000000e+00> : vector<2x32xf32>
    %228 = tpu.matmul %214, %1, %cst_82 {dimension_numbers = #tpu.dot_dimension_numbers<[1], [0], [0], [1], [0, 0, 1, 1], [], []>} : vector<2x16xf32>, vector<16x32xf32>, vector<2x32xf32> -> vector<2x32xf32>
    %229 = arith.mulf %214, %214 : vector<2x16xf32>
    %cst_83 = arith.constant dense<0.000000e+00> : vector<2xf32>
    %230 = vector.multi_reduction <add>, %229, %cst_83 [1] : vector<2x16xf32> to vector<2xf32>
    %231 = vector.shape_cast %230 : vector<2xf32> to vector<2x1xf32>
    %232 = math.sqrt %231 : vector<2x1xf32>
    %233 = vector.broadcast %232 : vector<2x1xf32> to vector<2x32xf32>
    %234 = vector.broadcast %5 : vector<1x32xf32> to vector<2x32xf32>
    %235 = arith.mulf %233, %234 : vector<2x32xf32>
    %cst_84 = arith.constant 9.99999993E-9 : f32
    %236 = vector.broadcast %cst_84 : f32 to vector<2x32xf32>
    %237 = arith.addf %235, %236 : vector<2x32xf32>
    %238 = tpu.reciprocal %237 {approx = true} : vector<2x32xf32> -> vector<2x32xf32>
    %239 = arith.mulf %228, %238 : vector<2x32xf32>
    %240 = vector.broadcast %227 : vector<2x1xf32> to vector<2x32xf32>
    %241 = arith.mulf %240, %239 : vector<2x32xf32>
    %cst_85 = arith.constant dense<0xFF800000> : vector<2xf32>
    %242 = vector.multi_reduction <maximumf>, %241, %cst_85 [1] : vector<2x32xf32> to vector<2xf32>
    %243 = vector.shape_cast %242 : vector<2xf32> to vector<2x1xf32>
    %244 = vector.broadcast %243 : vector<2x1xf32> to vector<2x32xf32>
    %245 = arith.subf %241, %244 : vector<2x32xf32>
    %246 = math.exp %245 : vector<2x32xf32>
    %cst_86 = arith.constant dense<0.000000e+00> : vector<2xf32>
    %247 = vector.multi_reduction <add>, %246, %cst_86 [1] : vector<2x32xf32> to vector<2xf32>
    %248 = vector.shape_cast %247 : vector<2xf32> to vector<2x1xf32>
    %249 = tpu.reciprocal %248 {approx = true} : vector<2x1xf32> -> vector<2x1xf32>
    %250 = vector.broadcast %249 : vector<2x1xf32> to vector<2x32xf32>
    %251 = arith.mulf %246, %250 : vector<2x32xf32>
    %cst_87 = arith.constant dense<0.000000e+00> : vector<2x16xf32>
    %252 = tpu.matmul %251, %0, %cst_87 {dimension_numbers = #tpu.dot_dimension_numbers<[1], [0], [0], [1], [0, 0, 1, 1], [], []>} : vector<2x32xf32>, vector<32x16xf32>, vector<2x16xf32> -> vector<2x16xf32>
    %cst_88 = arith.constant dense<0.000000e+00> : vector<2x32xf32>
    %253 = tpu.matmul %252, %12, %cst_88 {dimension_numbers = #tpu.dot_dimension_numbers<[1], [0], [0], [1], [0, 0, 1, 1], [], []>} : vector<2x16xf32>, vector<16x32xf32>, vector<2x32xf32> -> vector<2x32xf32>
    %254 = vector.extract_strided_slice %11 {offsets = [10, 0], sizes = [2, 32], strides = [1, 1]} : vector<16x32xf32> to vector<2x32xf32>
    %255 = arith.addf %253, %254 : vector<2x32xf32>
    %256 = math.tanh %255 : vector<2x32xf32>
    %c10 = arith.constant 10 : index
    %c0_89 = arith.constant 0 : index
    %257 = vector.load %arg15[%c10, %c0_89] : memref<16x32xf32, #tpu.memory_space<vmem>>, vector<2x32xf32>
    tpu.vector_store %arg15[%c10, %c0_89], %256 {strides = array<i32>} : memref<16x32xf32, #tpu.memory_space<vmem>>, vector<2x32xf32>,
    %cst_90 = arith.constant dense<0.000000e+00> : vector<2x16xf32>
    %258 = tpu.matmul %256, %13, %cst_90 {dimension_numbers = #tpu.dot_dimension_numbers<[1], [0], [0], [1], [0, 0, 1, 1], [], []>} : vector<2x32xf32>, vector<32x16xf32>, vector<2x16xf32> -> vector<2x16xf32>
    %259 = vector.broadcast %14 : vector<1x16xf32> to vector<2x16xf32>
    %260 = arith.addf %258, %259 : vector<2x16xf32>
    %261 = math.tanh %260 : vector<2x16xf32>
    %cst_91 = arith.constant dense<0.000000e+00> : vector<2x1xf32>
    %262 = tpu.matmul %256, %15, %cst_91 {dimension_numbers = #tpu.dot_dimension_numbers<[1], [0], [0], [1], [0, 0, 1, 1], [], []>} : vector<2x32xf32>, vector<32x1xf32>, vector<2x1xf32> -> vector<2x1xf32>
    %263 = vector.broadcast %16 : vector<1x1xf32> to vector<2x1xf32>
    %264 = arith.addf %262, %263 : vector<2x1xf32>
    %cst_92 = arith.constant 0.000000e+00 : f32
    %265 = vector.broadcast %cst_92 : f32 to vector<2x1xf32>
    %266 = arith.maximumf %264, %265 : vector<2x1xf32>
    %267 = math.absf %264 : vector<2x1xf32>
    %cst_93 = arith.constant 0.000000e+00 : f32
    %268 = vector.broadcast %cst_93 : f32 to vector<2x1xf32>
    %269 = arith.subf %268, %267 : vector<2x1xf32>
    %270 = math.exp %269 : vector<2x1xf32>
    %cst_94 = arith.constant 1.000000e+00 : f32
    %271 = vector.broadcast %cst_94 : f32 to vector<2x1xf32>
    %272 = arith.addf %271, %270 : vector<2x1xf32>
    %273 = math.log %272 : vector<2x1xf32>
    %274 = arith.addf %266, %273 : vector<2x1xf32>
    %cst_95 = arith.constant dense<0.000000e+00> : vector<2x32xf32>
    %275 = tpu.matmul %261, %1, %cst_95 {dimension_numbers = #tpu.dot_dimension_numbers<[1], [0], [0], [1], [0, 0, 1, 1], [], []>} : vector<2x16xf32>, vector<16x32xf32>, vector<2x32xf32> -> vector<2x32xf32>
    %276 = arith.mulf %261, %261 : vector<2x16xf32>
    %cst_96 = arith.constant dense<0.000000e+00> : vector<2xf32>
    %277 = vector.multi_reduction <add>, %276, %cst_96 [1] : vector<2x16xf32> to vector<2xf32>
    %278 = vector.shape_cast %277 : vector<2xf32> to vector<2x1xf32>
    %279 = math.sqrt %278 : vector<2x1xf32>
    %280 = vector.broadcast %279 : vector<2x1xf32> to vector<2x32xf32>
    %281 = vector.broadcast %5 : vector<1x32xf32> to vector<2x32xf32>
    %282 = arith.mulf %280, %281 : vector<2x32xf32>
    %cst_97 = arith.constant 9.99999993E-9 : f32
    %283 = vector.broadcast %cst_97 : f32 to vector<2x32xf32>
    %284 = arith.addf %282, %283 : vector<2x32xf32>
    %285 = tpu.reciprocal %284 {approx = true} : vector<2x32xf32> -> vector<2x32xf32>
    %286 = arith.mulf %275, %285 : vector<2x32xf32>
    %287 = vector.broadcast %274 : vector<2x1xf32> to vector<2x32xf32>
    %288 = arith.mulf %287, %286 : vector<2x32xf32>
    %cst_98 = arith.constant dense<0xFF800000> : vector<2xf32>
    %289 = vector.multi_reduction <maximumf>, %288, %cst_98 [1] : vector<2x32xf32> to vector<2xf32>
    %290 = vector.shape_cast %289 : vector<2xf32> to vector<2x1xf32>
    %291 = vector.broadcast %290 : vector<2x1xf32> to vector<2x32xf32>
    %292 = arith.subf %288, %291 : vector<2x32xf32>
    %293 = math.exp %292 : vector<2x32xf32>
    %cst_99 = arith.constant dense<0.000000e+00> : vector<2xf32>
    %294 = vector.multi_reduction <add>, %293, %cst_99 [1] : vector<2x32xf32> to vector<2xf32>
    %295 = vector.shape_cast %294 : vector<2xf32> to vector<2x1xf32>
    %296 = tpu.reciprocal %295 {approx = true} : vector<2x1xf32> -> vector<2x1xf32>
    %297 = vector.broadcast %296 : vector<2x1xf32> to vector<2x32xf32>
    %298 = arith.mulf %293, %297 : vector<2x32xf32>
    %cst_100 = arith.constant dense<0.000000e+00> : vector<2x16xf32>
    %299 = tpu.matmul %298, %0, %cst_100 {dimension_numbers = #tpu.dot_dimension_numbers<[1], [0], [0], [1], [0, 0, 1, 1], [], []>} : vector<2x32xf32>, vector<32x16xf32>, vector<2x16xf32> -> vector<2x16xf32>
    %cst_101 = arith.constant dense<0.000000e+00> : vector<2x32xf32>
    %300 = tpu.matmul %299, %12, %cst_101 {dimension_numbers = #tpu.dot_dimension_numbers<[1], [0], [0], [1], [0, 0, 1, 1], [], []>} : vector<2x16xf32>, vector<16x32xf32>, vector<2x32xf32> -> vector<2x32xf32>
    %301 = vector.extract_strided_slice %11 {offsets = [12, 0], sizes = [2, 32], strides = [1, 1]} : vector<16x32xf32> to vector<2x32xf32>
    %302 = arith.addf %300, %301 : vector<2x32xf32>
    %303 = math.tanh %302 : vector<2x32xf32>
    %c12 = arith.constant 12 : index
    %c0_102 = arith.constant 0 : index
    %304 = vector.load %arg15[%c12, %c0_102] : memref<16x32xf32, #tpu.memory_space<vmem>>, vector<2x32xf32>
    tpu.vector_store %arg15[%c12, %c0_102], %303 {strides = array<i32>} : memref<16x32xf32, #tpu.memory_space<vmem>>, vector<2x32xf32>,
    %cst_103 = arith.constant dense<0.000000e+00> : vector<2x16xf32>
    %305 = tpu.matmul %303, %13, %cst_103 {dimension_numbers = #tpu.dot_dimension_numbers<[1], [0], [0], [1], [0, 0, 1, 1], [], []>} : vector<2x32xf32>, vector<32x16xf32>, vector<2x16xf32> -> vector<2x16xf32>
    %306 = vector.broadcast %14 : vector<1x16xf32> to vector<2x16xf32>
    %307 = arith.addf %305, %306 : vector<2x16xf32>
    %308 = math.tanh %307 : vector<2x16xf32>
    %cst_104 = arith.constant dense<0.000000e+00> : vector<2x1xf32>
    %309 = tpu.matmul %303, %15, %cst_104 {dimension_numbers = #tpu.dot_dimension_numbers<[1], [0], [0], [1], [0, 0, 1, 1], [], []>} : vector<2x32xf32>, vector<32x1xf32>, vector<2x1xf32> -> vector<2x1xf32>
    %310 = vector.broadcast %16 : vector<1x1xf32> to vector<2x1xf32>
    %311 = arith.addf %309, %310 : vector<2x1xf32>
    %cst_105 = arith.constant 0.000000e+00 : f32
    %312 = vector.broadcast %cst_105 : f32 to vector<2x1xf32>
    %313 = arith.maximumf %311, %312 : vector<2x1xf32>
    %314 = math.absf %311 : vector<2x1xf32>
    %cst_106 = arith.constant 0.000000e+00 : f32
    %315 = vector.broadcast %cst_106 : f32 to vector<2x1xf32>
    %316 = arith.subf %315, %314 : vector<2x1xf32>
    %317 = math.exp %316 : vector<2x1xf32>
    %cst_107 = arith.constant 1.000000e+00 : f32
    %318 = vector.broadcast %cst_107 : f32 to vector<2x1xf32>
    %319 = arith.addf %318, %317 : vector<2x1xf32>
    %320 = math.log %319 : vector<2x1xf32>
    %321 = arith.addf %313, %320 : vector<2x1xf32>
    %cst_108 = arith.constant dense<0.000000e+00> : vector<2x32xf32>
    %322 = tpu.matmul %308, %1, %cst_108 {dimension_numbers = #tpu.dot_dimension_numbers<[1], [0], [0], [1], [0, 0, 1, 1], [], []>} : vector<2x16xf32>, vector<16x32xf32>, vector<2x32xf32> -> vector<2x32xf32>
    %323 = arith.mulf %308, %308 : vector<2x16xf32>
    %cst_109 = arith.constant dense<0.000000e+00> : vector<2xf32>
    %324 = vector.multi_reduction <add>, %323, %cst_109 [1] : vector<2x16xf32> to vector<2xf32>
    %325 = vector.shape_cast %324 : vector<2xf32> to vector<2x1xf32>
    %326 = math.sqrt %325 : vector<2x1xf32>
    %327 = vector.broadcast %326 : vector<2x1xf32> to vector<2x32xf32>
    %328 = vector.broadcast %5 : vector<1x32xf32> to vector<2x32xf32>
    %329 = arith.mulf %327, %328 : vector<2x32xf32>
    %cst_110 = arith.constant 9.99999993E-9 : f32
    %330 = vector.broadcast %cst_110 : f32 to vector<2x32xf32>
    %331 = arith.addf %329, %330 : vector<2x32xf32>
    %332 = tpu.reciprocal %331 {approx = true} : vector<2x32xf32> -> vector<2x32xf32>
    %333 = arith.mulf %322, %332 : vector<2x32xf32>
    %334 = vector.broadcast %321 : vector<2x1xf32> to vector<2x32xf32>
    %335 = arith.mulf %334, %333 : vector<2x32xf32>
    %cst_111 = arith.constant dense<0xFF800000> : vector<2xf32>
    %336 = vector.multi_reduction <maximumf>, %335, %cst_111 [1] : vector<2x32xf32> to vector<2xf32>
    %337 = vector.shape_cast %336 : vector<2xf32> to vector<2x1xf32>
    %338 = vector.broadcast %337 : vector<2x1xf32> to vector<2x32xf32>
    %339 = arith.subf %335, %338 : vector<2x32xf32>
    %340 = math.exp %339 : vector<2x32xf32>
    %cst_112 = arith.constant dense<0.000000e+00> : vector<2xf32>
    %341 = vector.multi_reduction <add>, %340, %cst_112 [1] : vector<2x32xf32> to vector<2xf32>
    %342 = vector.shape_cast %341 : vector<2xf32> to vector<2x1xf32>
    %343 = tpu.reciprocal %342 {approx = true} : vector<2x1xf32> -> vector<2x1xf32>
    %344 = vector.broadcast %343 : vector<2x1xf32> to vector<2x32xf32>
    %345 = arith.mulf %340, %344 : vector<2x32xf32>
    %cst_113 = arith.constant dense<0.000000e+00> : vector<2x16xf32>
    %346 = tpu.matmul %345, %0, %cst_113 {dimension_numbers = #tpu.dot_dimension_numbers<[1], [0], [0], [1], [0, 0, 1, 1], [], []>} : vector<2x32xf32>, vector<32x16xf32>, vector<2x16xf32> -> vector<2x16xf32>
    %cst_114 = arith.constant dense<0.000000e+00> : vector<2x32xf32>
    %347 = tpu.matmul %346, %12, %cst_114 {dimension_numbers = #tpu.dot_dimension_numbers<[1], [0], [0], [1], [0, 0, 1, 1], [], []>} : vector<2x16xf32>, vector<16x32xf32>, vector<2x32xf32> -> vector<2x32xf32>
    %348 = vector.extract_strided_slice %11 {offsets = [14, 0], sizes = [2, 32], strides = [1, 1]} : vector<16x32xf32> to vector<2x32xf32>
    %349 = arith.addf %347, %348 : vector<2x32xf32>
    %350 = math.tanh %349 : vector<2x32xf32>
    %c14 = arith.constant 14 : index
    %c0_115 = arith.constant 0 : index
    %351 = vector.load %arg15[%c14, %c0_115] : memref<16x32xf32, #tpu.memory_space<vmem>>, vector<2x32xf32>
    tpu.vector_store %arg15[%c14, %c0_115], %350 {strides = array<i32>} : memref<16x32xf32, #tpu.memory_space<vmem>>, vector<2x32xf32>,
    %c0_116 = arith.constant 0 : index
    %c0_117 = arith.constant 0 : index
    %352 = vector.load %arg15[%c0_116, %c0_117] : memref<16x32xf32, #tpu.memory_space<vmem>>, vector<16x32xf32>
    %c0_118 = arith.constant 0 : index
    %c0_119 = arith.constant 0 : index
    %353 = vector.load %arg12[%c0_118, %c0_119] : memref<32x8xf32, #tpu.memory_space<vmem>>, vector<32x8xf32>
    %cst_120 = arith.constant dense<0.000000e+00> : vector<16x8xf32>
    %354 = tpu.matmul %352, %353, %cst_120 {dimension_numbers = #tpu.dot_dimension_numbers<[1], [0], [0], [1], [0, 0, 1, 1], [], []>} : vector<16x32xf32>, vector<32x8xf32>, vector<16x8xf32> -> vector<16x8xf32>
    %c0_121 = arith.constant 0 : index
    %c0_122 = arith.constant 0 : index
    %355 = vector.load %arg13[%c0_121, %c0_122] : memref<1x8xf32, #tpu.memory_space<vmem>>, vector<1x8xf32>
    %356 = vector.broadcast %355 : vector<1x8xf32> to vector<16x8xf32>
    %357 = arith.addf %354, %356 : vector<16x8xf32>
    %c0_123 = arith.constant 0 : index
    %c0_124 = arith.constant 0 : index
    %358 = vector.load %arg14[%c0_123, %c0_124] : memref<16x8xf32, #tpu.memory_space<vmem>>, vector<16x8xf32>
    tpu.vector_store %arg14[%c0_123, %c0_124], %357 {strides = array<i32>} : memref<16x8xf32, #tpu.memory_space<vmem>>, vector<16x8xf32>,
    return
  }
  func.func @transform_0(%arg0: i32) -> (i32, i32) {
    %c0_i32 = arith.constant 0 : i32
    %c0_i32_0 = arith.constant 0 : i32
    %c0_i32_1 = arith.constant 0 : i32
    return %c0_i32, %c0_i32_0 : i32, i32
  }
  func.func @transform_1(%arg0: i32) -> (i32, i32) {
    %c0_i32 = arith.constant 0 : i32
    %c0_i32_0 = arith.constant 0 : i32
    %c0_i32_1 = arith.constant 0 : i32
    return %c0_i32, %c0_i32_0 : i32, i32
  }
  func.func @transform_2(%arg0: i32) -> (i32, i32) {
    %c0_i32 = arith.constant 0 : i32
    %c0_i32_0 = arith.constant 0 : i32
    %c0_i32_1 = arith.constant 0 : i32
    return %c0_i32, %c0_i32_0 : i32, i32
  }
  func.func @transform_3(%arg0: i32) -> (i32, i32) {
    %c0_i32 = arith.constant 0 : i32
    %c0_i32_0 = arith.constant 0 : i32
    %c0_i32_1 = arith.constant 0 : i32
    return %c0_i32, %c0_i32_0 : i32, i32
  }
  func.func @transform_4(%arg0: i32) -> (i32, i32) {
    %c0_i32 = arith.constant 0 : i32
    %c0_i32_0 = arith.constant 0 : i32
    %c0_i32_1 = arith.constant 0 : i32
    return %c0_i32, %c0_i32_0 : i32, i32
  }
  func.func @transform_5(%arg0: i32) -> (i32, i32) {
    %c0_i32 = arith.constant 0 : i32
    %c0_i32_0 = arith.constant 0 : i32
    %c0_i32_1 = arith.constant 0 : i32
    return %c0_i32, %c0_i32_0 : i32, i32
  }
  func.func @transform_6(%arg0: i32) -> (i32, i32) {
    %c0_i32 = arith.constant 0 : i32
    %c0_i32_0 = arith.constant 0 : i32
    %c0_i32_1 = arith.constant 0 : i32
    return %c0_i32, %c0_i32_0 : i32, i32
  }
  func.func @transform_7(%arg0: i32) -> (i32, i32) {
    %c0_i32 = arith.constant 0 : i32
    %c0_i32_0 = arith.constant 0 : i32
    %c0_i32_1 = arith.constant 0 : i32
    return %c0_i32, %c0_i32_0 : i32, i32
  }
  func.func @transform_8(%arg0: i32) -> (i32, i32) {
    %c0_i32 = arith.constant 0 : i32
    %c0_i32_0 = arith.constant 0 : i32
    %c0_i32_1 = arith.constant 0 : i32
    return %c0_i32, %c0_i32_0 : i32, i32
  }
  func.func @transform_9(%arg0: i32) -> (i32, i32) {
    %c0_i32 = arith.constant 0 : i32
    %c0_i32_0 = arith.constant 0 : i32
    %c0_i32_1 = arith.constant 0 : i32
    return %c0_i32, %c0_i32_0 : i32, i32
  }
  func.func @transform_10(%arg0: i32) -> (i32, i32) {
    %c0_i32 = arith.constant 0 : i32
    %c0_i32_0 = arith.constant 0 : i32
    %c0_i32_1 = arith.constant 0 : i32
    return %c0_i32, %c0_i32_0 : i32, i32
  }
  func.func @transform_11(%arg0: i32) -> (i32, i32) {
    %c0_i32 = arith.constant 0 : i32
    %c0_i32_0 = arith.constant 0 : i32
    %c0_i32_1 = arith.constant 0 : i32
    return %c0_i32, %c0_i32_0 : i32, i32
  }
  func.func @transform_12(%arg0: i32) -> (i32, i32) {
    %c0_i32 = arith.constant 0 : i32
    %c0_i32_0 = arith.constant 0 : i32
    %c0_i32_1 = arith.constant 0 : i32
    return %c0_i32, %c0_i32_0 : i32, i32
  }
  func.func @transform_13(%arg0: i32) -> (i32, i32) {
    %c0_i32 = arith.constant 0 : i32
    %c0_i32_0 = arith.constant 0 : i32
    %c0_i32_1 = arith.constant 0 : i32
    return %c0_i32, %c0_i32_0 : i32, i32
  }
}

</mosaic_0001>

<llo_original>
// kernel: tpu_custom_call.1
$region0: #{tpu_custom_call.1}
  #allocation0 [shape = 'u32[]', space=smem, size = 0x4, offset = 0x4, fixed_abs, tag = 'smem constant byte address 0x4 - core index']
  #allocation1 [shape = 'u32[144,128]{1,0:T(1,128)}', space=vmem, size = 0x12000, scoped, tag = 'internal scratch']
  #allocation2 [shape = 'f32[16,32]{1,0:T(8,128)}', space=vmem, size = 0x2000, scoped, tag = 'scratch operand']
  #allocation3 [shape = 'f32[1,1]{1,0:T(1,128)S(1)}', space=vmem, size = 0x200, scoped, tag = 'scoped memory for tpu_custom_call.1']
  %s0 = inlined_call_operand.vmem [shape: f32[16,8], index: 0, kind: input, shape index: {}]
  %s1 = inlined_call_operand.vmem [shape: f32[2,16], index: 1, kind: input, shape index: {}]
  %s2 = inlined_call_operand.vmem [shape: f32[32,16], index: 2, kind: input, shape index: {}]
  %s3 = inlined_call_operand.vmem [shape: f32[16,32], index: 3, kind: input, shape index: {}]
  %s4 = inlined_call_operand.vmem [shape: f32[16,32], index: 4, kind: input, shape index: {}]
  %s5 = inlined_call_operand.vmem [shape: f32[8,32], index: 5, kind: input, shape index: {}]
  %s6 = inlined_call_operand.vmem [shape: f32[1,32], index: 6, kind: input, shape index: {}]
  %s7 = inlined_call_operand.vmem [shape: f32[32,16], index: 7, kind: input, shape index: {}]
  %s8 = inlined_call_operand.vmem [shape: f32[1,16], index: 8, kind: input, shape index: {}]
  %s9 = inlined_call_operand.vmem [shape: f32[32,1], index: 9, kind: input, shape index: {}]
  %s10 = inlined_call_operand.<no memory space> [shape: f32[1,1], index: 10, kind: input, shape index: {}]
  %s11 = inlined_call_operand.vmem [shape: f32[32,8], index: 11, kind: input, shape index: {}]
  %s12 = inlined_call_operand.vmem [shape: f32[1,8], index: 12, kind: input, shape index: {}]
  %s13 = inlined_call_operand.vmem [shape: f32[16,8], index: 13, kind: output, shape index: {}]
  %s14 = sld [smem:[#allocation0]]
  $region62: #{tpu_custom_call.1} parent=0
    _
  %s16 = ssub.s32 1, %s14
  %s17 = scalar_select 0, %s16, %s14
  %v18 = vstv %s10
  %19 = vst [vmem:[#allocation3] sm:$0x1] %v18
  // Predicated region
  $region2: #{tpu_custom_call.1} parent=0 // pred_check
    _
  $region3: #{tpu_custom_call.1} parent=0 // pred_check_branch
    %21 = sbr.rel (0) target = $region5
  $region4: #{tpu_custom_call.1} parent=0 // pred_region
    _
  $region5: #{tpu_custom_call.1} parent=0 // pred_fallthru
    _
  // Predicated region
  $region6: #{tpu_custom_call.1} parent=0 // pred_check
    _
  $region7: #{tpu_custom_call.1} parent=0 // pred_check_branch
    %23 = sbr.rel (0) target = $region9
  $region8: #{tpu_custom_call.1} parent=0 // pred_region
    _
  $region9: #{tpu_custom_call.1} parent=0 // pred_fallthru
    _
  // Predicated region
  $region10: #{tpu_custom_call.1} parent=0 // pred_check
    _
  $region11: #{tpu_custom_call.1} parent=0 // pred_check_branch
    %25 = sbr.rel (0) target = $region13
  $region12: #{tpu_custom_call.1} parent=0 // pred_region
    _
  $region13: #{tpu_custom_call.1} parent=0 // pred_fallthru
    _
  // Predicated region
  $region14: #{tpu_custom_call.1} parent=0 // pred_check
    _
  $region15: #{tpu_custom_call.1} parent=0 // pred_check_branch
    %27 = sbr.rel (0) target = $region17
  $region16: #{tpu_custom_call.1} parent=0 // pred_region
    _
  $region17: #{tpu_custom_call.1} parent=0 // pred_fallthru
    _
  // Predicated region
  $region18: #{tpu_custom_call.1} parent=0 // pred_check
    _
  $region19: #{tpu_custom_call.1} parent=0 // pred_check_branch
    %29 = sbr.rel (0) target = $region21
  $region20: #{tpu_custom_call.1} parent=0 // pred_region
    _
  $region21: #{tpu_custom_call.1} parent=0 // pred_fallthru
    _
  // Predicated region
  $region22: #{tpu_custom_call.1} parent=0 // pred_check
    _
  $region23: #{tpu_custom_call.1} parent=0 // pred_check_branch
    %31 = sbr.rel (0) target = $region25
  $region24: #{tpu_custom_call.1} parent=0 // pred_region
    _
  $region25: #{tpu_custom_call.1} parent=0 // pred_fallthru
    _
  // Predicated region
  $region26: #{tpu_custom_call.1} parent=0 // pred_check
    _
  $region27: #{tpu_custom_call.1} parent=0 // pred_check_branch
    %33 = sbr.rel (0) target = $region29
  $region28: #{tpu_custom_call.1} parent=0 // pred_region
    _
  $region29: #{tpu_custom_call.1} parent=0 // pred_fallthru
    _
  // Predicated region
  $region30: #{tpu_custom_call.1} parent=0 // pred_check
    _
  $region31: #{tpu_custom_call.1} parent=0 // pred_check_branch
    %35 = sbr.rel (0) target = $region33
  $region32: #{tpu_custom_call.1} parent=0 // pred_region
    _
  $region33: #{tpu_custom_call.1} parent=0 // pred_fallthru
    _
  // Predicated region
  $region34: #{tpu_custom_call.1} parent=0 // pred_check
    _
  $region35: #{tpu_custom_call.1} parent=0 // pred_check_branch
    %37 = sbr.rel (0) target = $region37
  $region36: #{tpu_custom_call.1} parent=0 // pred_region
    _
  $region37: #{tpu_custom_call.1} parent=0 // pred_fallthru
    _
  // Predicated region
  $region38: #{tpu_custom_call.1} parent=0 // pred_check
    _
  $region39: #{tpu_custom_call.1} parent=0 // pred_check_branch
    %39 = sbr.rel (0) target = $region41
  $region40: #{tpu_custom_call.1} parent=0 // pred_region
    _
  $region41: #{tpu_custom_call.1} parent=0 // pred_fallthru
    _
  // Predicated region
  $region42: #{tpu_custom_call.1} parent=0 // pred_check
    _
  $region43: #{tpu_custom_call.1} parent=0 // pred_check_branch
    %41 = sbr.rel (0) target = $region45
  $region44: #{tpu_custom_call.1} parent=0 // pred_region
    _
  $region45: #{tpu_custom_call.1} parent=0 // pred_fallthru
    _
  // Predicated region
  $region46: #{tpu_custom_call.1} parent=0 // pred_check
    _
  $region47: #{tpu_custom_call.1} parent=0 // pred_check_branch
    %43 = sbr.rel (0) target = $region49
  $region48: #{tpu_custom_call.1} parent=0 // pred_region
    _
  $region49: #{tpu_custom_call.1} parent=0 // pred_fallthru
    _
  // Predicated region
  $region50: #{tpu_custom_call.1} parent=0 // pred_check
    _
  $region51: #{tpu_custom_call.1} parent=0 // pred_check_branch
    %45 = sbr.rel (0) target = $region53
  $region52: #{tpu_custom_call.1} parent=0 // pred_region
    _
  $region53: #{tpu_custom_call.1} parent=0 // pred_fallthru
    _
  %v46 = vld [vmem:[%s2] sm:$0xff]
  %v47 = vld [vmem:[%s2 + $0x8] sm:$0xff]
  %v48 = vld [vmem:[%s2 + $0x10] sm:$0xff]
  %v49 = vld [vmem:[%s2 + $0x18] sm:$0xff]
  %v50 = vld [vmem:[%s3] sm:$0xff]
  %v51 = vld [vmem:[%s3 + $0x8] sm:$0xff]
  %v52 = vmul.f32 %v50, %v50
  %v53 = vmul.f32 %v51, %v51
  %vm54 = vcmask 261120
  %v55 = vsel %vm54, %v52, 0.0
  %v56 = vsel %vm54, %v53, 0.0
  %v57 = vadd.f32 %v55, %v56
  %v58 = vrot.slane %v57, 4
  %v59 = vadd.f32 %v57, %v58
  %v60 = vrot.slane %v59, 2
  %v61 = vadd.f32 %v59, %v60
  %v62 = vrot.slane %v61, 1
  %v63 = vadd.f32 %v61, %v62
  %v64 = vrsqrt.pop %v63
  %v65 = vmul.f32 %v63, %v64
  %vm66 = vcmp.eq.f32.partialorder %v63, inf
  %v67 = vsel %vm66, %v63, %v65
  %vm68 = vcmp.eq.f32.partialorder %v63, 0.0
  %v69 = vand.u32 %v63, 2147483648
  %v70 = vsel %vm68, %v69, %v67
  %v71 = vld [vmem:[%s0] sm:$0xff]
  %v72 = vld [vmem:[%s0 + $0x8] sm:$0xff]
  %v73 = vld [vmem:[%s5] sm:$0xff]
  %v74 = vld [vmem:[%s6] sm:$0x1]
  %v76 = vlaneseq
  %v77 = vshrl.u32 %v76, 7
  %v78 = vsub.s32 0, %v77
  %v79 = vrot.slane %v74, %v78
  %vm81 = vcmask 64512
  %v83 = vsel %vm81, %v71, 0
  %v86 = vsel %vm81, %v72, 0
  %88 = vmatprep.subr.mxu0 0.0
  %89 = vmatpush1.msra.mxu0 0.0
  %90 = vmatprep.subr.mxu0 0.0
  %91 = vmatpush1.msra.mxu0 0.0
  %92 = vmatprep.subr.mxu0 0.0
  %93 = vmatpush1.msra.mxu0 0.0
  %94 = vmatprep.subr.mxu0 0.0
  %95 = vmatpush1.msra.mxu0 0.0
  %96 = vmatprep.subr.mxu0 0.0
  %97 = vmatpush1.msra.mxu0 0.0
  %98 = vmatprep.subr.mxu0 0.0
  %99 = vmatpush1.msra.mxu0 0.0
  %100 = vmatprep.subr.mxu0 0.0
  %101 = vmatpush1.msra.mxu0 0.0
  %102 = vmatprep.subr.mxu0 0.0
  %103 = vmatpush1.msra.mxu0 0.0
  %104 = vmatprep.subr.mxu0 0.0
  %105 = vmatpush1.msra.mxu0 0.0
  %106 = vmatprep.subr.mxu0 0.0
  %107 = vmatpush1.msra.mxu0 0.0
  %108 = vmatprep.subr.mxu0 0.0
  %109 = vmatpush1.msra.mxu0 0.0
  %110 = vmatprep.subr.mxu0 0.0
  %111 = vmatpush1.msra.mxu0 0.0
  %112 = vmatprep.subr.mxu0 0.0
  %113 = vmatpush1.msra.mxu0 0.0
  %114 = vmatprep.subr.mxu0 0.0
  %115 = vmatpush1.msra.mxu0 0.0
  %116 = vmatprep.subr.mxu0 0.0
  %117 = vmatpush1.msra.mxu0 0.0
  %118 = vmatprep.subr.mxu0 0.0
  %119 = vmatpush1.msra.mxu0 %v73
  %120 = vmatprep.subr.mxu0 0.0
  %121 = vmatpush2.msra.mxu0 0.0
  %122 = vmatprep.subr.mxu0 0.0
  %123 = vmatpush2.msra.mxu0 0.0
  %124 = vmatprep.subr.mxu0 0.0
  %125 = vmatpush2.msra.mxu0 0.0
  %126 = vmatprep.subr.mxu0 0.0
  %127 = vmatpush2.msra.mxu0 0.0
  %128 = vmatprep.subr.mxu0 0.0
  %129 = vmatpush2.msra.mxu0 0.0
  %130 = vmatprep.subr.mxu0 0.0
  %131 = vmatpush2.msra.mxu0 0.0
  %132 = vmatprep.subr.mxu0 0.0
  %133 = vmatpush2.msra.mxu0 0.0
  %134 = vmatprep.subr.mxu0 0.0
  %135 = vmatpush2.msra.mxu0 0.0
  %136 = vmatprep.subr.mxu0 0.0
  %137 = vmatpush2.msra.mxu0 0.0
  %138 = vmatprep.subr.mxu0 0.0
  %139 = vmatpush2.msra.mxu0 0.0
  %140 = vmatprep.subr.mxu0 0.0
  %141 = vmatpush2.msra.mxu0 0.0
  %142 = vmatprep.subr.mxu0 0.0
  %143 = vmatpush2.msra.mxu0 0.0
  %144 = vmatprep.subr.mxu0 0.0
  %145 = vmatpush2.msra.mxu0 0.0
  %146 = vmatprep.subr.mxu0 0.0
  %147 = vmatpush2.msra.mxu0 0.0
  %148 = vmatprep.subr.mxu0 0.0
  %149 = vmatpush2.msra.mxu0 0.0
  %150 = vmatprep.subr.mxu0 0.0
  %151 = vmatpush2.msra.mxu0 0.0
  %152 = vmatprep.mubr.f32.mxu0 0.0
  %153 = vmatmul.mubr.f32.gmra.mxu0 %v83
  %v154 = vpop.f32.mrf.mxu0
  %v155 = vadd.f32 %v79, %v154
  %v156 = vpop.f32.mrf.mxu0
  %157 = vmatprep.mubr.f32.mxu0 0.0
  %158 = vmatmul.mubr.f32.gmra.mxu0 %v86
  %v159 = vpop.f32.mrf.mxu0
  %v160 = vadd.f32 %v79, %v159
  %v161 = vpop.f32.mrf.mxu0
  %162 = vdwg.mxu0
  %v163 = vld [vmem:[%s4] sm:$0xff]
  %v164 = vld [vmem:[%s4 + $0x8] sm:$0xff]
  %v165 = vld [vmem:[%s7] sm:$0xff]
  %v166 = vld [vmem:[%s7 + $0x8] sm:$0xff]
  %v167 = vld [vmem:[%s7 + $0x10] sm:$0xff]
  %v168 = vld [vmem:[%s7 + $0x18] sm:$0xff]
  %v169 = vld [vmem:[%s8] sm:$0x1]
  %v170 = vld [vmem:[%s9] sm:$0xff]
  %v171 = vld [vmem:[%s9 + $0x8] sm:$0xff]
  %v172 = vld [vmem:[%s9 + $0x10] sm:$0xff]
  %v173 = vld [vmem:[%s9 + $0x18] sm:$0xff]
  %v174 = vld [vmem:[#allocation3] sm:$0x1]
  %v175 = vld [vmem:[%s1] sm:$0x3]
  %vm176 = vcmask 130048
  %v178 = vsel %vm176, %v175, 0
  %180 = vmatprep.subr.mxu0 0.0
  %181 = vmatpush1.msra.mxu0 0.0
  %182 = vmatprep.subr.mxu0 0.0
  %183 = vmatpush1.msra.mxu0 0.0
  %184 = vmatprep.subr.mxu0 0.0
  %185 = vmatpush1.msra.mxu0 0.0
  %186 = vmatprep.subr.mxu0 0.0
  %187 = vmatpush1.msra.mxu0 0.0
  %188 = vmatprep.subr.mxu0 0.0
  %189 = vmatpush1.msra.mxu0 0.0
  %190 = vmatprep.subr.mxu0 0.0
  %191 = vmatpush1.msra.mxu0 0.0
  %192 = vmatprep.subr.mxu0 0.0
  %193 = vmatpush1.msra.mxu0 0.0
  %194 = vmatprep.subr.mxu0 0.0
  %195 = vmatpush1.msra.mxu0 0.0
  %196 = vmatprep.subr.mxu0 0.0
  %197 = vmatpush1.msra.mxu0 0.0
  %198 = vmatprep.subr.mxu0 0.0
  %199 = vmatpush1.msra.mxu0 0.0
  %200 = vmatprep.subr.mxu0 0.0
  %201 = vmatpush1.msra.mxu0 0.0
  %202 = vmatprep.subr.mxu0 0.0
  %203 = vmatpush1.msra.mxu0 0.0
  %204 = vmatprep.subr.mxu0 0.0
  %205 = vmatpush1.msra.mxu0 0.0
  %206 = vmatprep.subr.mxu0 0.0
  %207 = vmatpush1.msra.mxu0 0.0
  %208 = vmatprep.subr.mxu0 0.0
  %209 = vmatpush1.msra.mxu0 %v164
  %210 = vmatprep.subr.mxu0 0.0
  %211 = vmatpush1.msra.mxu0 %v163
  %212 = vmatprep.subr.mxu0 0.0
  %213 = vmatpush2.msra.mxu0 0.0
  %214 = vmatprep.subr.mxu0 0.0
  %215 = vmatpush2.msra.mxu0 0.0
  %216 = vmatprep.subr.mxu0 0.0
  %217 = vmatpush2.msra.mxu0 0.0
  %218 = vmatprep.subr.mxu0 0.0
  %219 = vmatpush2.msra.mxu0 0.0
  %220 = vmatprep.subr.mxu0 0.0
  %221 = vmatpush2.msra.mxu0 0.0
  %222 = vmatprep.subr.mxu0 0.0
  %223 = vmatpush2.msra.mxu0 0.0
  %224 = vmatprep.subr.mxu0 0.0
  %225 = vmatpush2.msra.mxu0 0.0
  %226 = vmatprep.subr.mxu0 0.0
  %227 = vmatpush2.msra.mxu0 0.0
  %228 = vmatprep.subr.mxu0 0.0
  %229 = vmatpush2.msra.mxu0 0.0
  %230 = vmatprep.subr.mxu0 0.0
  %231 = vmatpush2.msra.mxu0 0.0
  %232 = vmatprep.subr.mxu0 0.0
  %233 = vmatpush2.msra.mxu0 0.0
  %234 = vmatprep.subr.mxu0 0.0
  %235 = vmatpush2.msra.mxu0 0.0
  %236 = vmatprep.subr.mxu0 0.0
  %237 = vmatpush2.msra.mxu0 0.0
  %238 = vmatprep.subr.mxu0 0.0
  %239 = vmatpush2.msra.mxu0 0.0
  %240 = vmatprep.subr.mxu0 0.0
  %241 = vmatpush2.msra.mxu0 0.0
  %242 = vmatprep.subr.mxu0 0.0
  %243 = vmatpush2.msra.mxu0 0.0
  %244 = vmatprep.mubr.f32.mxu0 0.0
  %245 = vmatmul.mubr.f32.gmra.mxu0 %v178
  %v246 = vpop.f32.mrf.mxu0
  %v247 = vadd.f32 %v155, %v246
  %v248 = vpop.f32.mrf.mxu0
  %249 = vdwg.mxu0
  %v250 = vtanh.pop %v247
  %vm251 = vcmask 254976
  %252 = vst.msk [vmem:[#allocation2] sm:$0x3] %vm251, %v250
  %v254 = vlaneseq
  %v255 = vshrl.u32 %v254, 7
  %v256 = vsub.s32 0, %v255
  %v257 = vrot.slane %v169, %v256
  %v260 = vsel %vm54, %v250, 0
  %262 = vmatprep.subr.mxu0 0.0
  %263 = vmatpush1.msra.mxu0 0.0
  %264 = vmatprep.subr.mxu0 0.0
  %265 = vmatpush1.msra.mxu0 0.0
  %266 = vmatprep.subr.mxu0 0.0
  %267 = vmatpush1.msra.mxu0 0.0
  %268 = vmatprep.subr.mxu0 0.0
  %269 = vmatpush1.msra.mxu0 0.0
  %270 = vmatprep.subr.mxu0 0.0
  %271 = vmatpush1.msra.mxu0 0.0
  %272 = vmatprep.subr.mxu0 0.0
  %273 = vmatpush1.msra.mxu0 0.0
  %274 = vmatprep.subr.mxu0 0.0
  %275 = vmatpush1.msra.mxu0 0.0
  %276 = vmatprep.subr.mxu0 0.0
  %277 = vmatpush1.msra.mxu0 0.0
  %278 = vmatprep.subr.mxu0 0.0
  %279 = vmatpush1.msra.mxu0 0.0
  %280 = vmatprep.subr.mxu0 0.0
  %281 = vmatpush1.msra.mxu0 0.0
  %282 = vmatprep.subr.mxu0 0.0
  %283 = vmatpush1.msra.mxu0 0.0
  %284 = vmatprep.subr.mxu0 0.0
  %285 = vmatpush1.msra.mxu0 0.0
  %286 = vmatprep.subr.mxu0 0.0
  %287 = vmatpush1.msra.mxu0 %v168
  %288 = vmatprep.subr.mxu0 0.0
  %289 = vmatpush1.msra.mxu0 %v167
  %290 = vmatprep.subr.mxu0 0.0
  %291 = vmatpush1.msra.mxu0 %v166
  %292 = vmatprep.subr.mxu0 0.0
  %293 = vmatpush1.msra.mxu0 %v165
  %294 = vmatprep.subr.mxu0 0.0
  %295 = vmatpush2.msra.mxu0 0.0
  %296 = vmatprep.subr.mxu0 0.0
  %297 = vmatpush2.msra.mxu0 0.0
  %298 = vmatprep.subr.mxu0 0.0
  %299 = vmatpush2.msra.mxu0 0.0
  %300 = vmatprep.subr.mxu0 0.0
  %301 = vmatpush2.msra.mxu0 0.0
  %302 = vmatprep.subr.mxu0 0.0
  %303 = vmatpush2.msra.mxu0 0.0
  %304 = vmatprep.subr.mxu0 0.0
  %305 = vmatpush2.msra.mxu0 0.0
  %306 = vmatprep.subr.mxu0 0.0
  %307 = vmatpush2.msra.mxu0 0.0
  %308 = vmatprep.subr.mxu0 0.0
  %309 = vmatpush2.msra.mxu0 0.0
  %310 = vmatprep.subr.mxu0 0.0
  %311 = vmatpush2.msra.mxu0 0.0
  %312 = vmatprep.subr.mxu0 0.0
  %313 = vmatpush2.msra.mxu0 0.0
  %314 = vmatprep.subr.mxu0 0.0
  %315 = vmatpush2.msra.mxu0 0.0
  %316 = vmatprep.subr.mxu0 0.0
  %317 = vmatpush2.msra.mxu0 0.0
  %318 = vmatprep.subr.mxu0 0.0
  %319 = vmatpush2.msra.mxu0 0.0
  %320 = vmatprep.subr.mxu0 0.0
  %321 = vmatpush2.msra.mxu0 0.0
  %322 = vmatprep.subr.mxu0 0.0
  %323 = vmatpush2.msra.mxu0 0.0
  %324 = vmatprep.subr.mxu0 0.0
  %325 = vmatpush2.msra.mxu0 0.0
  %326 = vmatprep.mubr.f32.mxu0 0.0
  %327 = vmatmul.mubr.f32.gmra.mxu0 %v260
  %v328 = vpop.f32.mrf.mxu0
  %v329 = vadd.f32 %v257, %v328
  %v330 = vpop.f32.mrf.mxu0
  %331 = vdwg.mxu0
  %v332 = vtanh.pop %v329
  %v334 = vlaneseq
  %v335 = vshrl.u32 %v334, 7
  %v336 = vsub.s32 0, %v335
  %v337 = vrot.slane %v174, %v336
  %339 = vmatprep.subr.mxu0 0.0
  %340 = vmatpush1.msra.mxu0 0.0
  %341 = vmatprep.subr.mxu0 0.0
  %342 = vmatpush1.msra.mxu0 0.0
  %343 = vmatprep.subr.mxu0 0.0
  %344 = vmatpush1.msra.mxu0 0.0
  %345 = vmatprep.subr.mxu0 0.0
  %346 = vmatpush1.msra.mxu0 0.0
  %347 = vmatprep.subr.mxu0 0.0
  %348 = vmatpush1.msra.mxu0 0.0
  %349 = vmatprep.subr.mxu0 0.0
  %350 = vmatpush1.msra.mxu0 0.0
  %351 = vmatprep.subr.mxu0 0.0
  %352 = vmatpush1.msra.mxu0 0.0
  %353 = vmatprep.subr.mxu0 0.0
  %354 = vmatpush1.msra.mxu0 0.0
  %355 = vmatprep.subr.mxu0 0.0
  %356 = vmatpush1.msra.mxu0 0.0
  %357 = vmatprep.subr.mxu0 0.0
  %358 = vmatpush1.msra.mxu0 0.0
  %359 = vmatprep.subr.mxu0 0.0
  %360 = vmatpush1.msra.mxu0 0.0
  %361 = vmatprep.subr.mxu0 0.0
  %362 = vmatpush1.msra.mxu0 0.0
  %363 = vmatprep.subr.mxu0 0.0
  %364 = vmatpush1.msra.mxu0 %v173
  %365 = vmatprep.subr.mxu0 0.0
  %366 = vmatpush1.msra.mxu0 %v172
  %367 = vmatprep.subr.mxu0 0.0
  %368 = vmatpush1.msra.mxu0 %v171
  %369 = vmatprep.subr.mxu0 0.0
  %370 = vmatpush1.msra.mxu0 %v170
  %371 = vmatprep.subr.mxu0 0.0
  %372 = vmatpush2.msra.mxu0 0.0
  %373 = vmatprep.subr.mxu0 0.0
  %374 = vmatpush2.msra.mxu0 0.0
  %375 = vmatprep.subr.mxu0 0.0
  %376 = vmatpush2.msra.mxu0 0.0
  %377 = vmatprep.subr.mxu0 0.0
  %378 = vmatpush2.msra.mxu0 0.0
  %379 = vmatprep.subr.mxu0 0.0
  %380 = vmatpush2.msra.mxu0 0.0
  %381 = vmatprep.subr.mxu0 0.0
  %382 = vmatpush2.msra.mxu0 0.0
  %383 = vmatprep.subr.mxu0 0.0
  %384 = vmatpush2.msra.mxu0 0.0
  %385 = vmatprep.subr.mxu0 0.0
  %386 = vmatpush2.msra.mxu0 0.0
  %387 = vmatprep.subr.mxu0 0.0
  %388 = vmatpush2.msra.mxu0 0.0
  %389 = vmatprep.subr.mxu0 0.0
  %390 = vmatpush2.msra.mxu0 0.0
  %391 = vmatprep.subr.mxu0 0.0
  %392 = vmatpush2.msra.mxu0 0.0
  %393 = vmatprep.subr.mxu0 0.0
  %394 = vmatpush2.msra.mxu0 0.0
  %395 = vmatprep.subr.mxu0 0.0
  %396 = vmatpush2.msra.mxu0 0.0
  %397 = vmatprep.subr.mxu0 0.0
  %398 = vmatpush2.msra.mxu0 0.0
  %399 = vmatprep.subr.mxu0 0.0
  %400 = vmatpush2.msra.mxu0 0.0
  %401 = vmatprep.subr.mxu0 0.0
  %402 = vmatpush2.msra.mxu0 0.0
  %403 = vmatprep.mubr.f32.mxu0 0.0
  %404 = vmatmul.mubr.f32.gmra.mxu0 %v260
  %v405 = vpop.f32.mrf.mxu0
  %v406 = vadd.f32 %v337, %v405
  %v407 = vpop.f32.mrf.mxu0
  %408 = vdwg.mxu0
  %v409 = vmax.f32 %v406, 0.0
  %v410 = vand.u32 2147483647, %v406
  %v411 = vsub.f32 0.0, %v410
  %v412 = vmul.f32 %v411, 1.442695
  %v413 = vpow.pop %v412
  %v414 = vadd.f32 %v413, 1.0
  %v415 = vlog2.pop %v414
  %v416 = vmul.f32 %v415, 0.6931472
  %v417 = vadd.f32 %v409, %v416
  %v419 = vsel %vm176, %v332, 0
  %421 = vmatprep.subr.mxu0 0.0
  %422 = vmatpush1.msra.mxu0 0.0
  %423 = vmatprep.subr.mxu0 0.0
  %424 = vmatpush1.msra.mxu0 0.0
  %425 = vmatprep.subr.mxu0 0.0
  %426 = vmatpush1.msra.mxu0 0.0
  %427 = vmatprep.subr.mxu0 0.0
  %428 = vmatpush1.msra.mxu0 0.0
  %429 = vmatprep.subr.mxu0 0.0
  %430 = vmatpush1.msra.mxu0 0.0
  %431 = vmatprep.subr.mxu0 0.0
  %432 = vmatpush1.msra.mxu0 0.0
  %433 = vmatprep.subr.mxu0 0.0
  %434 = vmatpush1.msra.mxu0 0.0
  %435 = vmatprep.subr.mxu0 0.0
  %436 = vmatpush1.msra.mxu0 0.0
  %437 = vmatprep.subr.mxu0 0.0
  %438 = vmatpush1.msra.mxu0 0.0
  %439 = vmatprep.subr.mxu0 0.0
  %440 = vmatpush1.msra.mxu0 0.0
  %441 = vmatprep.subr.mxu0 0.0
  %442 = vmatpush1.msra.mxu0 0.0
  %443 = vmatprep.subr.mxu0 0.0
  %444 = vmatpush1.msra.mxu0 0.0
  %445 = vmatprep.subr.mxu0 0.0
  %446 = vmatpush1.msra.mxu0 0.0
  %447 = vmatprep.subr.mxu0 0.0
  %448 = vmatpush1.msra.mxu0 0.0
  %449 = vmatprep.subr.mxu0 0.0
  %450 = vmatpush1.msra.mxu0 %v51
  %451 = vmatprep.subr.mxu0 0.0
  %452 = vmatpush1.msra.mxu0 %v50
  %453 = vmatprep.subr.mxu0 0.0
  %454 = vmatpush2.msra.mxu0 0.0
  %455 = vmatprep.subr.mxu0 0.0
  %456 = vmatpush2.msra.mxu0 0.0
  %457 = vmatprep.subr.mxu0 0.0
  %458 = vmatpush2.msra.mxu0 0.0
  %459 = vmatprep.subr.mxu0 0.0
  %460 = vmatpush2.msra.mxu0 0.0
  %461 = vmatprep.subr.mxu0 0.0
  %462 = vmatpush2.msra.mxu0 0.0
  %463 = vmatprep.subr.mxu0 0.0
  %464 = vmatpush2.msra.mxu0 0.0
  %465 = vmatprep.subr.mxu0 0.0
  %466 = vmatpush2.msra.mxu0 0.0
  %467 = vmatprep.subr.mxu0 0.0
  %468 = vmatpush2.msra.mxu0 0.0
  %469 = vmatprep.subr.mxu0 0.0
  %470 = vmatpush2.msra.mxu0 0.0
  %471 = vmatprep.subr.mxu0 0.0
  %472 = vmatpush2.msra.mxu0 0.0
  %473 = vmatprep.subr.mxu0 0.0
  %474 = vmatpush2.msra.mxu0 0.0
  %475 = vmatprep.subr.mxu0 0.0
  %476 = vmatpush2.msra.mxu0 0.0
  %477 = vmatprep.subr.mxu0 0.0
  %478 = vmatpush2.msra.mxu0 0.0
  %479 = vmatprep.subr.mxu0 0.0
  %480 = vmatpush2.msra.mxu0 0.0
  %481 = vmatprep.subr.mxu0 0.0
  %482 = vmatpush2.msra.mxu0 0.0
  %483 = vmatprep.subr.mxu0 0.0
  %484 = vmatpush2.msra.mxu0 0.0
  %485 = vmatprep.mubr.f32.mxu0 0.0
  %486 = vmatmul.mubr.f32.gmra.mxu0 %v419
  %v487 = vpop.f32.mrf.mxu0
  %v488 = vadd.f32 0.0, %v487
  %v489 = vpop.f32.mrf.mxu0
  %490 = vdwg.mxu0
  %v491 = vmul.f32 %v332, %v332
  %vm492 = vcmask 123904
  %v493 = vsel %vm492, %v491, 0.0
  %494 = vadd.xlane.f32.xlu0 %v493
  %v495 = vpop.xlane.xlu0 %494
  %v496 = vrsqrt.pop %v495
  %v497 = vmul.f32 %v495, %v496
  %vm498 = vcmp.eq.f32.partialorder %v495, inf
  %v499 = vsel %vm498, %v495, %v497
  %vm500 = vcmp.eq.f32.partialorder %v495, 0.0
  %v501 = vand.u32 %v495, 2147483648
  %v502 = vsel %vm500, %v501, %v499
  %v503 = vmul.f32 %v502, %v70
  %v504 = vadd.f32 %v503, 1e-08
  %v505 = vrcp.pop %v504
  %v506 = vmul.f32 %v488, %v505
  %508 = vset.pattern.permute.xlu0 0
  %509 = vperm.xlu0 %508, %v417
  %v510 = vpop.permute.xlu0 %509
  %v512 = vmul.f32 %v510, %v506
  %v513 = vsel %vm251, %v512, -inf
  %514 = vmax.xlane.f32.xlu0 %v513
  %v515 = vpop.xlane.xlu0 %514
  %v516 = vsub.f32 %v512, %v515
  %v517 = vmul.f32 %v516, 1.442695
  %v518 = vpow.pop %v517
  %v519 = vsel %vm251, %v518, 0.0
  %520 = vadd.xlane.f32.xlu0 %v519
  %v521 = vpop.xlane.xlu0 %520
  %v522 = vrcp.pop %v521
  %v523 = vmul.f32 %v518, %v522
  %v525 = vsel %vm54, %v523, 0
  %527 = vmatprep.subr.mxu0 0.0
  %528 = vmatpush1.msra.mxu0 0.0
  %529 = vmatprep.subr.mxu0 0.0
  %530 = vmatpush1.msra.mxu0 0.0
  %531 = vmatprep.subr.mxu0 0.0
  %532 = vmatpush1.msra.mxu0 0.0
  %533 = vmatprep.subr.mxu0 0.0
  %534 = vmatpush1.msra.mxu0 0.0
  %535 = vmatprep.subr.mxu0 0.0
  %536 = vmatpush1.msra.mxu0 0.0
  %537 = vmatprep.subr.mxu0 0.0
  %538 = vmatpush1.msra.mxu0 0.0
  %539 = vmatprep.subr.mxu0 0.0
  %540 = vmatpush1.msra.mxu0 0.0
  %541 = vmatprep.subr.mxu0 0.0
  %542 = vmatpush1.msra.mxu0 0.0
  %543 = vmatprep.subr.mxu0 0.0
  %544 = vmatpush1.msra.mxu0 0.0
  %545 = vmatprep.subr.mxu0 0.0
  %546 = vmatpush1.msra.mxu0 0.0
  %547 = vmatprep.subr.mxu0 0.0
  %548 = vmatpush1.msra.mxu0 0.0
  %549 = vmatprep.subr.mxu0 0.0
  %550 = vmatpush1.msra.mxu0 0.0
  %551 = vmatprep.subr.mxu0 0.0
  %552 = vmatpush1.msra.mxu0 %v49
  %553 = vmatprep.subr.mxu0 0.0
  %554 = vmatpush1.msra.mxu0 %v48
  %555 = vmatprep.subr.mxu0 0.0
  %556 = vmatpush1.msra.mxu0 %v47
  %557 = vmatprep.subr.mxu0 0.0
  %558 = vmatpush1.msra.mxu0 %v46
  %559 = vmatprep.subr.mxu0 0.0
  %560 = vmatpush2.msra.mxu0 0.0
  %561 = vmatprep.subr.mxu0 0.0
  %562 = vmatpush2.msra.mxu0 0.0
  %563 = vmatprep.subr.mxu0 0.0
  %564 = vmatpush2.msra.mxu0 0.0
  %565 = vmatprep.subr.mxu0 0.0
  %566 = vmatpush2.msra.mxu0 0.0
  %567 = vmatprep.subr.mxu0 0.0
  %568 = vmatpush2.msra.mxu0 0.0
  %569 = vmatprep.subr.mxu0 0.0
  %570 = vmatpush2.msra.mxu0 0.0
  %571 = vmatprep.subr.mxu0 0.0
  %572 = vmatpush2.msra.mxu0 0.0
  %573 = vmatprep.subr.mxu0 0.0
  %574 = vmatpush2.msra.mxu0 0.0
  %575 = vmatprep.subr.mxu0 0.0
  %576 = vmatpush2.msra.mxu0 0.0
  %577 = vmatprep.subr.mxu0 0.0
  %578 = vmatpush2.msra.mxu0 0.0
  %579 = vmatprep.subr.mxu0 0.0
  %580 = vmatpush2.msra.mxu0 0.0
  %581 = vmatprep.subr.mxu0 0.0
  %582 = vmatpush2.msra.mxu0 0.0
  %583 = vmatprep.subr.mxu0 0.0
  %584 = vmatpush2.msra.mxu0 0.0
  %585 = vmatprep.subr.mxu0 0.0
  %586 = vmatpush2.msra.mxu0 0.0
  %587 = vmatprep.subr.mxu0 0.0
  %588 = vmatpush2.msra.mxu0 0.0
  %589 = vmatprep.subr.mxu0 0.0
  %590 = vmatpush2.msra.mxu0 0.0
  %591 = vmatprep.mubr.f32.mxu0 0.0
  %592 = vmatmul.mubr.f32.gmra.mxu0 %v525
  %v593 = vpop.f32.mrf.mxu0
  %v594 = vadd.f32 0.0, %v593
  %v595 = vpop.f32.mrf.mxu0
  %596 = vdwg.mxu0
  %v598 = vrot.slane %v155, 2
  %v601 = vsel %vm176, %v594, 0
  %603 = vmatprep.subr.mxu0 0.0
  %604 = vmatpush1.msra.mxu0 0.0
  %605 = vmatprep.subr.mxu0 0.0
  %606 = vmatpush1.msra.mxu0 0.0
  %607 = vmatprep.subr.mxu0 0.0
  %608 = vmatpush1.msra.mxu0 0.0
  %609 = vmatprep.subr.mxu0 0.0
  %610 = vmatpush1.msra.mxu0 0.0
  %611 = vmatprep.subr.mxu0 0.0
  %612 = vmatpush1.msra.mxu0 0.0
  %613 = vmatprep.subr.mxu0 0.0
  %614 = vmatpush1.msra.mxu0 0.0
  %615 = vmatprep.subr.mxu0 0.0
  %616 = vmatpush1.msra.mxu0 0.0
  %617 = vmatprep.subr.mxu0 0.0
  %618 = vmatpush1.msra.mxu0 0.0
  %619 = vmatprep.subr.mxu0 0.0
  %620 = vmatpush1.msra.mxu0 0.0
  %621 = vmatprep.subr.mxu0 0.0
  %622 = vmatpush1.msra.mxu0 0.0
  %623 = vmatprep.subr.mxu0 0.0
  %624 = vmatpush1.msra.mxu0 0.0
  %625 = vmatprep.subr.mxu0 0.0
  %626 = vmatpush1.msra.mxu0 0.0
  %627 = vmatprep.subr.mxu0 0.0
  %628 = vmatpush1.msra.mxu0 0.0
  %629 = vmatprep.subr.mxu0 0.0
  %630 = vmatpush1.msra.mxu0 0.0
  %631 = vmatprep.subr.mxu0 0.0
  %632 = vmatpush1.msra.mxu0 %v164
  %633 = vmatprep.subr.mxu0 0.0
  %634 = vmatpush1.msra.mxu0 %v163
  %635 = vmatprep.subr.mxu0 0.0
  %636 = vmatpush2.msra.mxu0 0.0
  %637 = vmatprep.subr.mxu0 0.0
  %638 = vmatpush2.msra.mxu0 0.0
  %639 = vmatprep.subr.mxu0 0.0
  %640 = vmatpush2.msra.mxu0 0.0
  %641 = vmatprep.subr.mxu0 0.0
  %642 = vmatpush2.msra.mxu0 0.0
  %643 = vmatprep.subr.mxu0 0.0
  %644 = vmatpush2.msra.mxu0 0.0
  %645 = vmatprep.subr.mxu0 0.0
  %646 = vmatpush2.msra.mxu0 0.0
  %647 = vmatprep.subr.mxu0 0.0
  %648 = vmatpush2.msra.mxu0 0.0
  %649 = vmatprep.subr.mxu0 0.0
  %650 = vmatpush2.msra.mxu0 0.0
  %651 = vmatprep.subr.mxu0 0.0
  %652 = vmatpush2.msra.mxu0 0.0
  %653 = vmatprep.subr.mxu0 0.0
  %654 = vmatpush2.msra.mxu0 0.0
  %655 = vmatprep.subr.mxu0 0.0
  %656 = vmatpush2.msra.mxu0 0.0
  %657 = vmatprep.subr.mxu0 0.0
  %658 = vmatpush2.msra.mxu0 0.0
  %659 = vmatprep.subr.mxu0 0.0
  %660 = vmatpush2.msra.mxu0 0.0
  %661 = vmatprep.subr.mxu0 0.0
  %662 = vmatpush2.msra.mxu0 0.0
  %663 = vmatprep.subr.mxu0 0.0
  %664 = vmatpush2.msra.mxu0 0.0
  %665 = vmatprep.subr.mxu0 0.0
  %666 = vmatpush2.msra.mxu0 0.0
  %667 = vmatprep.mubr.f32.mxu0 0.0
  %668 = vmatmul.mubr.f32.gmra.mxu0 %v601
  %v669 = vpop.f32.mrf.mxu0
  %v670 = vadd.f32 %v598, %v669
  %v671 = vpop.f32.mrf.mxu0
  %672 = vdwg.mxu0
  %v673 = vtanh.pop %v670
  %674 = vst.msk [vmem:[#allocation2 + $0x2] sm:$0x3] %vm251, %v673
  %v676 = vsel %vm54, %v673, 0
  %678 = vmatprep.subr.mxu0 0.0
  %679 = vmatpush1.msra.mxu0 0.0
  %680 = vmatprep.subr.mxu0 0.0
  %681 = vmatpush1.msra.mxu0 0.0
  %682 = vmatprep.subr.mxu0 0.0
  %683 = vmatpush1.msra.mxu0 0.0
  %684 = vmatprep.subr.mxu0 0.0
  %685 = vmatpush1.msra.mxu0 0.0
  %686 = vmatprep.subr.mxu0 0.0
  %687 = vmatpush1.msra.mxu0 0.0
  %688 = vmatprep.subr.mxu0 0.0
  %689 = vmatpush1.msra.mxu0 0.0
  %690 = vmatprep.subr.mxu0 0.0
  %691 = vmatpush1.msra.mxu0 0.0
  %692 = vmatprep.subr.mxu0 0.0
  %693 = vmatpush1.msra.mxu0 0.0
  %694 = vmatprep.subr.mxu0 0.0
  %695 = vmatpush1.msra.mxu0 0.0
  %696 = vmatprep.subr.mxu0 0.0
  %697 = vmatpush1.msra.mxu0 0.0
  %698 = vmatprep.subr.mxu0 0.0
  %699 = vmatpush1.msra.mxu0 0.0
  %700 = vmatprep.subr.mxu0 0.0
  %701 = vmatpush1.msra.mxu0 0.0
  %702 = vmatprep.subr.mxu0 0.0
  %703 = vmatpush1.msra.mxu0 %v168
  %704 = vmatprep.subr.mxu0 0.0
  %705 = vmatpush1.msra.mxu0 %v167
  %706 = vmatprep.subr.mxu0 0.0
  %707 = vmatpush1.msra.mxu0 %v166
  %708 = vmatprep.subr.mxu0 0.0
  %709 = vmatpush1.msra.mxu0 %v165
  %710 = vmatprep.subr.mxu0 0.0
  %711 = vmatpush2.msra.mxu0 0.0
  %712 = vmatprep.subr.mxu0 0.0
  %713 = vmatpush2.msra.mxu0 0.0
  %714 = vmatprep.subr.mxu0 0.0
  %715 = vmatpush2.msra.mxu0 0.0
  %716 = vmatprep.subr.mxu0 0.0
  %717 = vmatpush2.msra.mxu0 0.0
  %718 = vmatprep.subr.mxu0 0.0
  %719 = vmatpush2.msra.mxu0 0.0
  %720 = vmatprep.subr.mxu0 0.0
  %721 = vmatpush2.msra.mxu0 0.0
  %722 = vmatprep.subr.mxu0 0.0
  %723 = vmatpush2.msra.mxu0 0.0
  %724 = vmatprep.subr.mxu0 0.0
  %725 = vmatpush2.msra.mxu0 0.0
  %726 = vmatprep.subr.mxu0 0.0
  %727 = vmatpush2.msra.mxu0 0.0
  %728 = vmatprep.subr.mxu0 0.0
  %729 = vmatpush2.msra.mxu0 0.0
  %730 = vmatprep.subr.mxu0 0.0
  %731 = vmatpush2.msra.mxu0 0.0
  %732 = vmatprep.subr.mxu0 0.0
  %733 = vmatpush2.msra.mxu0 0.0
  %734 = vmatprep.subr.mxu0 0.0
  %735 = vmatpush2.msra.mxu0 0.0
  %736 = vmatprep.subr.mxu0 0.0
  %737 = vmatpush2.msra.mxu0 0.0
  %738 = vmatprep.subr.mxu0 0.0
  %739 = vmatpush2.msra.mxu0 0.0
  %740 = vmatprep.subr.mxu0 0.0
  %741 = vmatpush2.msra.mxu0 0.0
  %742 = vmatprep.mubr.f32.mxu0 0.0
  %743 = vmatmul.mubr.f32.gmra.mxu0 %v676
  %v744 = vpop.f32.mrf.mxu0
  %v745 = vadd.f32 %v257, %v744
  %v746 = vpop.f32.mrf.mxu0
  %747 = vdwg.mxu0
  %v748 = vtanh.pop %v745
  %749 = vmatprep.subr.mxu0 0.0
  %750 = vmatpush1.msra.mxu0 0.0
  %751 = vmatprep.subr.mxu0 0.0
  %752 = vmatpush1.msra.mxu0 0.0
  %753 = vmatprep.subr.mxu0 0.0
  %754 = vmatpush1.msra.mxu0 0.0
  %755 = vmatprep.subr.mxu0 0.0
  %756 = vmatpush1.msra.mxu0 0.0
  %757 = vmatprep.subr.mxu0 0.0
  %758 = vmatpush1.msra.mxu0 0.0
  %759 = vmatprep.subr.mxu0 0.0
  %760 = vmatpush1.msra.mxu0 0.0
  %761 = vmatprep.subr.mxu0 0.0
  %762 = vmatpush1.msra.mxu0 0.0
  %763 = vmatprep.subr.mxu0 0.0
  %764 = vmatpush1.msra.mxu0 0.0
  %765 = vmatprep.subr.mxu0 0.0
  %766 = vmatpush1.msra.mxu0 0.0
  %767 = vmatprep.subr.mxu0 0.0
  %768 = vmatpush1.msra.mxu0 0.0
  %769 = vmatprep.subr.mxu0 0.0
  %770 = vmatpush1.msra.mxu0 0.0
  %771 = vmatprep.subr.mxu0 0.0
  %772 = vmatpush1.msra.mxu0 0.0
  %773 = vmatprep.subr.mxu0 0.0
  %774 = vmatpush1.msra.mxu0 %v173
  %775 = vmatprep.subr.mxu0 0.0
  %776 = vmatpush1.msra.mxu0 %v172
  %777 = vmatprep.subr.mxu0 0.0
  %778 = vmatpush1.msra.mxu0 %v171
  %779 = vmatprep.subr.mxu0 0.0
  %780 = vmatpush1.msra.mxu0 %v170
  %781 = vmatprep.subr.mxu0 0.0
  %782 = vmatpush2.msra.mxu0 0.0
  %783 = vmatprep.subr.mxu0 0.0
  %784 = vmatpush2.msra.mxu0 0.0
  %785 = vmatprep.subr.mxu0 0.0
  %786 = vmatpush2.msra.mxu0 0.0
  %787 = vmatprep.subr.mxu0 0.0
  %788 = vmatpush2.msra.mxu0 0.0
  %789 = vmatprep.subr.mxu0 0.0
  %790 = vmatpush2.msra.mxu0 0.0
  %791 = vmatprep.subr.mxu0 0.0
  %792 = vmatpush2.msra.mxu0 0.0
  %793 = vmatprep.subr.mxu0 0.0
  %794 = vmatpush2.msra.mxu0 0.0
  %795 = vmatprep.subr.mxu0 0.0
  %796 = vmatpush2.msra.mxu0 0.0
  %797 = vmatprep.subr.mxu0 0.0
  %798 = vmatpush2.msra.mxu0 0.0
  %799 = vmatprep.subr.mxu0 0.0
  %800 = vmatpush2.msra.mxu0 0.0
  %801 = vmatprep.subr.mxu0 0.0
  %802 = vmatpush2.msra.mxu0 0.0
  %803 = vmatprep.subr.mxu0 0.0
  %804 = vmatpush2.msra.mxu0 0.0
  %805 = vmatprep.subr.mxu0 0.0
  %806 = vmatpush2.msra.mxu0 0.0
  %807 = vmatprep.subr.mxu0 0.0
  %808 = vmatpush2.msra.mxu0 0.0
  %809 = vmatprep.subr.mxu0 0.0
  %810 = vmatpush2.msra.mxu0 0.0
  %811 = vmatprep.subr.mxu0 0.0
  %812 = vmatpush2.msra.mxu0 0.0
  %813 = vmatprep.mubr.f32.mxu0 0.0
  %814 = vmatmul.mubr.f32.gmra.mxu0 %v676
  %v815 = vpop.f32.mrf.mxu0
  %v816 = vadd.f32 %v337, %v815
  %v817 = vpop.f32.mrf.mxu0
  %818 = vdwg.mxu0
  %v819 = vmax.f32 %v816, 0.0
  %v820 = vand.u32 2147483647, %v816
  %v821 = vsub.f32 0.0, %v820
  %v822 = vmul.f32 %v821, 1.442695
  %v823 = vpow.pop %v822
  %v824 = vadd.f32 %v823, 1.0
  %v825 = vlog2.pop %v824
  %v826 = vmul.f32 %v825, 0.6931472
  %v827 = vadd.f32 %v819, %v826
  %v829 = vsel %vm176, %v748, 0
  %831 = vmatprep.subr.mxu0 0.0
  %832 = vmatpush1.msra.mxu0 0.0
  %833 = vmatprep.subr.mxu0 0.0
  %834 = vmatpush1.msra.mxu0 0.0
  %835 = vmatprep.subr.mxu0 0.0
  %836 = vmatpush1.msra.mxu0 0.0
  %837 = vmatprep.subr.mxu0 0.0
  %838 = vmatpush1.msra.mxu0 0.0
  %839 = vmatprep.subr.mxu0 0.0
  %840 = vmatpush1.msra.mxu0 0.0
  %841 = vmatprep.subr.mxu0 0.0
  %842 = vmatpush1.msra.mxu0 0.0
  %843 = vmatprep.subr.mxu0 0.0
  %844 = vmatpush1.msra.mxu0 0.0
  %845 = vmatprep.subr.mxu0 0.0
  %846 = vmatpush1.msra.mxu0 0.0
  %847 = vmatprep.subr.mxu0 0.0
  %848 = vmatpush1.msra.mxu0 0.0
  %849 = vmatprep.subr.mxu0 0.0
  %850 = vmatpush1.msra.mxu0 0.0
  %851 = vmatprep.subr.mxu0 0.0
  %852 = vmatpush1.msra.mxu0 0.0
  %853 = vmatprep.subr.mxu0 0.0
  %854 = vmatpush1.msra.mxu0 0.0
  %855 = vmatprep.subr.mxu0 0.0
  %856 = vmatpush1.msra.mxu0 0.0
  %857 = vmatprep.subr.mxu0 0.0
  %858 = vmatpush1.msra.mxu0 0.0
  %859 = vmatprep.subr.mxu0 0.0
  %860 = vmatpush1.msra.mxu0 %v51
  %861 = vmatprep.subr.mxu0 0.0
  %862 = vmatpush1.msra.mxu0 %v50
  %863 = vmatprep.subr.mxu0 0.0
  %864 = vmatpush2.msra.mxu0 0.0
  %865 = vmatprep.subr.mxu0 0.0
  %866 = vmatpush2.msra.mxu0 0.0
  %867 = vmatprep.subr.mxu0 0.0
  %868 = vmatpush2.msra.mxu0 0.0
  %869 = vmatprep.subr.mxu0 0.0
  %870 = vmatpush2.msra.mxu0 0.0
  %871 = vmatprep.subr.mxu0 0.0
  %872 = vmatpush2.msra.mxu0 0.0
  %873 = vmatprep.subr.mxu0 0.0
  %874 = vmatpush2.msra.mxu0 0.0
  %875 = vmatprep.subr.mxu0 0.0
  %876 = vmatpush2.msra.mxu0 0.0
  %877 = vmatprep.subr.mxu0 0.0
  %878 = vmatpush2.msra.mxu0 0.0
  %879 = vmatprep.subr.mxu0 0.0
  %880 = vmatpush2.msra.mxu0 0.0
  %881 = vmatprep.subr.mxu0 0.0
  %882 = vmatpush2.msra.mxu0 0.0
  %883 = vmatprep.subr.mxu0 0.0
  %884 = vmatpush2.msra.mxu0 0.0
  %885 = vmatprep.subr.mxu0 0.0
  %886 = vmatpush2.msra.mxu0 0.0
  %887 = vmatprep.subr.mxu0 0.0
  %888 = vmatpush2.msra.mxu0 0.0
  %889 = vmatprep.subr.mxu0 0.0
  %890 = vmatpush2.msra.mxu0 0.0
  %891 = vmatprep.subr.mxu0 0.0
  %892 = vmatpush2.msra.mxu0 0.0
  %893 = vmatprep.subr.mxu0 0.0
  %894 = vmatpush2.msra.mxu0 0.0
  %895 = vmatprep.mubr.f32.mxu0 0.0
  %896 = vmatmul.mubr.f32.gmra.mxu0 %v829
  %v897 = vpop.f32.mrf.mxu0
  %v898 = vadd.f32 0.0, %v897
  %v899 = vpop.f32.mrf.mxu0
  %900 = vdwg.mxu0
  %v901 = vmul.f32 %v748, %v748
  %v902 = vsel %vm492, %v901, 0.0
  %903 = vadd.xlane.f32.xlu0 %v902
  %v904 = vpop.xlane.xlu0 %903
  %v905 = vrsqrt.pop %v904
  %v906 = vmul.f32 %v904, %v905
  %vm907 = vcmp.eq.f32.partialorder %v904, inf
  %v908 = vsel %vm907, %v904, %v906
  %vm909 = vcmp.eq.f32.partialorder %v904, 0.0
  %v910 = vand.u32 %v904, 2147483648
  %v911 = vsel %vm909, %v910, %v908
  %v912 = vmul.f32 %v911, %v70
  %v913 = vadd.f32 %v912, 1e-08
  %v914 = vrcp.pop %v913
  %v915 = vmul.f32 %v898, %v914
  %917 = vset.pattern.permute.xlu0 0
  %918 = vperm.xlu0 %917, %v827
  %v919 = vpop.permute.xlu0 %918
  %v921 = vmul.f32 %v919, %v915
  %v922 = vsel %vm251, %v921, -inf
  %923 = vmax.xlane.f32.xlu0 %v922
  %v924 = vpop.xlane.xlu0 %923
  %v925 = vsub.f32 %v921, %v924
  %v926 = vmul.f32 %v925, 1.442695
  %v927 = vpow.pop %v926
  %v928 = vsel %vm251, %v927, 0.0
  %929 = vadd.xlane.f32.xlu0 %v928
  %v930 = vpop.xlane.xlu0 %929
  %v931 = vrcp.pop %v930
  %v932 = vmul.f32 %v927, %v931
  %v934 = vsel %vm54, %v932, 0
  %936 = vmatprep.subr.mxu0 0.0
  %937 = vmatpush1.msra.mxu0 0.0
  %938 = vmatprep.subr.mxu0 0.0
  %939 = vmatpush1.msra.mxu0 0.0
  %940 = vmatprep.subr.mxu0 0.0
  %941 = vmatpush1.msra.mxu0 0.0
  %942 = vmatprep.subr.mxu0 0.0
  %943 = vmatpush1.msra.mxu0 0.0
  %944 = vmatprep.subr.mxu0 0.0
  %945 = vmatpush1.msra.mxu0 0.0
  %946 = vmatprep.subr.mxu0 0.0
  %947 = vmatpush1.msra.mxu0 0.0
  %948 = vmatprep.subr.mxu0 0.0
  %949 = vmatpush1.msra.mxu0 0.0
  %950 = vmatprep.subr.mxu0 0.0
  %951 = vmatpush1.msra.mxu0 0.0
  %952 = vmatprep.subr.mxu0 0.0
  %953 = vmatpush1.msra.mxu0 0.0
  %954 = vmatprep.subr.mxu0 0.0
  %955 = vmatpush1.msra.mxu0 0.0
  %956 = vmatprep.subr.mxu0 0.0
  %957 = vmatpush1.msra.mxu0 0.0
  %958 = vmatprep.subr.mxu0 0.0
  %959 = vmatpush1.msra.mxu0 0.0
  %960 = vmatprep.subr.mxu0 0.0
  %961 = vmatpush1.msra.mxu0 %v49
  %962 = vmatprep.subr.mxu0 0.0
  %963 = vmatpush1.msra.mxu0 %v48
  %964 = vmatprep.subr.mxu0 0.0
  %965 = vmatpush1.msra.mxu0 %v47
  %966 = vmatprep.subr.mxu0 0.0
  %967 = vmatpush1.msra.mxu0 %v46
  %968 = vmatprep.subr.mxu0 0.0
  %969 = vmatpush2.msra.mxu0 0.0
  %970 = vmatprep.subr.mxu0 0.0
  %971 = vmatpush2.msra.mxu0 0.0
  %972 = vmatprep.subr.mxu0 0.0
  %973 = vmatpush2.msra.mxu0 0.0
  %974 = vmatprep.subr.mxu0 0.0
  %975 = vmatpush2.msra.mxu0 0.0
  %976 = vmatprep.subr.mxu0 0.0
  %977 = vmatpush2.msra.mxu0 0.0
  %978 = vmatprep.subr.mxu0 0.0
  %979 = vmatpush2.msra.mxu0 0.0
  %980 = vmatprep.subr.mxu0 0.0
  %981 = vmatpush2.msra.mxu0 0.0
  %982 = vmatprep.subr.mxu0 0.0
  %983 = vmatpush2.msra.mxu0 0.0
  %984 = vmatprep.subr.mxu0 0.0
  %985 = vmatpush2.msra.mxu0 0.0
  %986 = vmatprep.subr.mxu0 0.0
  %987 = vmatpush2.msra.mxu0 0.0
  %988 = vmatprep.subr.mxu0 0.0
  %989 = vmatpush2.msra.mxu0 0.0
  %990 = vmatprep.subr.mxu0 0.0
  %991 = vmatpush2.msra.mxu0 0.0
  %992 = vmatprep.subr.mxu0 0.0
  %993 = vmatpush2.msra.mxu0 0.0
  %994 = vmatprep.subr.mxu0 0.0
  %995 = vmatpush2.msra.mxu0 0.0
  %996 = vmatprep.subr.mxu0 0.0
  %997 = vmatpush2.msra.mxu0 0.0
  %998 = vmatprep.subr.mxu0 0.0
  %999 = vmatpush2.msra.mxu0 0.0
  %1000 = vmatprep.mubr.f32.mxu0 0.0
  %1001 = vmatmul.mubr.f32.gmra.mxu0 %v934
  %v1002 = vpop.f32.mrf.mxu0
  %v1003 = vadd.f32 0.0, %v1002
  %v1004 = vpop.f32.mrf.mxu0
  %1005 = vdwg.mxu0
  %v1006 = vrot.slane %v155, 4
  %v1009 = vsel %vm176, %v1003, 0
  %1011 = vmatprep.subr.mxu0 0.0
  %1012 = vmatpush1.msra.mxu0 0.0
  %1013 = vmatprep.subr.mxu0 0.0
  %1014 = vmatpush1.msra.mxu0 0.0
  %1015 = vmatprep.subr.mxu0 0.0
  %1016 = vmatpush1.msra.mxu0 0.0
  %1017 = vmatprep.subr.mxu0 0.0
  %1018 = vmatpush1.msra.mxu0 0.0
  %1019 = vmatprep.subr.mxu0 0.0
  %1020 = vmatpush1.msra.mxu0 0.0
  %1021 = vmatprep.subr.mxu0 0.0
  %1022 = vmatpush1.msra.mxu0 0.0
  %1023 = vmatprep.subr.mxu0 0.0
  %1024 = vmatpush1.msra.mxu0 0.0
  %1025 = vmatprep.subr.mxu0 0.0
  %1026 = vmatpush1.msra.mxu0 0.0
  %1027 = vmatprep.subr.mxu0 0.0
  %1028 = vmatpush1.msra.mxu0 0.0
  %1029 = vmatprep.subr.mxu0 0.0
  %1030 = vmatpush1.msra.mxu0 0.0
  %1031 = vmatprep.subr.mxu0 0.0
  %1032 = vmatpush1.msra.mxu0 0.0
  %1033 = vmatprep.subr.mxu0 0.0
  %1034 = vmatpush1.msra.mxu0 0.0
  %1035 = vmatprep.subr.mxu0 0.0
  %1036 = vmatpush1.msra.mxu0 0.0
  %1037 = vmatprep.subr.mxu0 0.0
  %1038 = vmatpush1.msra.mxu0 0.0
  %1039 = vmatprep.subr.mxu0 0.0
  %1040 = vmatpush1.msra.mxu0 %v164
  %1041 = vmatprep.subr.mxu0 0.0
  %1042 = vmatpush1.msra.mxu0 %v163
  %1043 = vmatprep.subr.mxu0 0.0
  %1044 = vmatpush2.msra.mxu0 0.0
  %1045 = vmatprep.subr.mxu0 0.0
  %1046 = vmatpush2.msra.mxu0 0.0
  %1047 = vmatprep.subr.mxu0 0.0
  %1048 = vmatpush2.msra.mxu0 0.0
  %1049 = vmatprep.subr.mxu0 0.0
  %1050 = vmatpush2.msra.mxu0 0.0
  %1051 = vmatprep.subr.mxu0 0.0
  %1052 = vmatpush2.msra.mxu0 0.0
  %1053 = vmatprep.subr.mxu0 0.0
  %1054 = vmatpush2.msra.mxu0 0.0
  %1055 = vmatprep.subr.mxu0 0.0
  %1056 = vmatpush2.msra.mxu0 0.0
  %1057 = vmatprep.subr.mxu0 0.0
  %1058 = vmatpush2.msra.mxu0 0.0
  %1059 = vmatprep.subr.mxu0 0.0
  %1060 = vmatpush2.msra.mxu0 0.0
  %1061 = vmatprep.subr.mxu0 0.0
  %1062 = vmatpush2.msra.mxu0 0.0
  %1063 = vmatprep.subr.mxu0 0.0
  %1064 = vmatpush2.msra.mxu0 0.0
  %1065 = vmatprep.subr.mxu0 0.0
  %1066 = vmatpush2.msra.mxu0 0.0
  %1067 = vmatprep.subr.mxu0 0.0
  %1068 = vmatpush2.msra.mxu0 0.0
  %1069 = vmatprep.subr.mxu0 0.0
  %1070 = vmatpush2.msra.mxu0 0.0
  %1071 = vmatprep.subr.mxu0 0.0
  %1072 = vmatpush2.msra.mxu0 0.0
  %1073 = vmatprep.subr.mxu0 0.0
  %1074 = vmatpush2.msra.mxu0 0.0
  %1075 = vmatprep.mubr.f32.mxu0 0.0
  %1076 = vmatmul.mubr.f32.gmra.mxu0 %v1009
  %v1077 = vpop.f32.mrf.mxu0
  %v1078 = vadd.f32 %v1006, %v1077
  %v1079 = vpop.f32.mrf.mxu0
  %1080 = vdwg.mxu0
  %v1081 = vtanh.pop %v1078
  %1082 = vst.msk [vmem:[#allocation2 + $0x4] sm:$0x3] %vm251, %v1081
  %v1084 = vsel %vm54, %v1081, 0
  %1086 = vmatprep.subr.mxu0 0.0
  %1087 = vmatpush1.msra.mxu0 0.0
  %1088 = vmatprep.subr.mxu0 0.0
  %1089 = vmatpush1.msra.mxu0 0.0
  %1090 = vmatprep.subr.mxu0 0.0
  %1091 = vmatpush1.msra.mxu0 0.0
  %1092 = vmatprep.subr.mxu0 0.0
  %1093 = vmatpush1.msra.mxu0 0.0
  %1094 = vmatprep.subr.mxu0 0.0
  %1095 = vmatpush1.msra.mxu0 0.0
  %1096 = vmatprep.subr.mxu0 0.0
  %1097 = vmatpush1.msra.mxu0 0.0
  %1098 = vmatprep.subr.mxu0 0.0
  %1099 = vmatpush1.msra.mxu0 0.0
  %1100 = vmatprep.subr.mxu0 0.0
  %1101 = vmatpush1.msra.mxu0 0.0
  %1102 = vmatprep.subr.mxu0 0.0
  %1103 = vmatpush1.msra.mxu0 0.0
  %1104 = vmatprep.subr.mxu0 0.0
  %1105 = vmatpush1.msra.mxu0 0.0
  %1106 = vmatprep.subr.mxu0 0.0
  %1107 = vmatpush1.msra.mxu0 0.0
  %1108 = vmatprep.subr.mxu0 0.0
  %1109 = vmatpush1.msra.mxu0 0.0
  %1110 = vmatprep.subr.mxu0 0.0
  %1111 = vmatpush1.msra.mxu0 %v168
  %1112 = vmatprep.subr.mxu0 0.0
  %1113 = vmatpush1.msra.mxu0 %v167
  %1114 = vmatprep.subr.mxu0 0.0
  %1115 = vmatpush1.msra.mxu0 %v166
  %1116 = vmatprep.subr.mxu0 0.0
  %1117 = vmatpush1.msra.mxu0 %v165
  %1118 = vmatprep.subr.mxu0 0.0
  %1119 = vmatpush2.msra.mxu0 0.0
  %1120 = vmatprep.subr.mxu0 0.0
  %1121 = vmatpush2.msra.mxu0 0.0
  %1122 = vmatprep.subr.mxu0 0.0
  %1123 = vmatpush2.msra.mxu0 0.0
  %1124 = vmatprep.subr.mxu0 0.0
  %1125 = vmatpush2.msra.mxu0 0.0
  %1126 = vmatprep.subr.mxu0 0.0
  %1127 = vmatpush2.msra.mxu0 0.0
  %1128 = vmatprep.subr.mxu0 0.0
  %1129 = vmatpush2.msra.mxu0 0.0
  %1130 = vmatprep.subr.mxu0 0.0
  %1131 = vmatpush2.msra.mxu0 0.0
  %1132 = vmatprep.subr.mxu0 0.0
  %1133 = vmatpush2.msra.mxu0 0.0
  %1134 = vmatprep.subr.mxu0 0.0
  %1135 = vmatpush2.msra.mxu0 0.0
  %1136 = vmatprep.subr.mxu0 0.0
  %1137 = vmatpush2.msra.mxu0 0.0
  %1138 = vmatprep.subr.mxu0 0.0
  %1139 = vmatpush2.msra.mxu0 0.0
  %1140 = vmatprep.subr.mxu0 0.0
  %1141 = vmatpush2.msra.mxu0 0.0
  %1142 = vmatprep.subr.mxu0 0.0
  %1143 = vmatpush2.msra.mxu0 0.0
  %1144 = vmatprep.subr.mxu0 0.0
  %1145 = vmatpush2.msra.mxu0 0.0
  %1146 = vmatprep.subr.mxu0 0.0
  %1147 = vmatpush2.msra.mxu0 0.0
  %1148 = vmatprep.subr.mxu0 0.0
  %1149 = vmatpush2.msra.mxu0 0.0
  %1150 = vmatprep.mubr.f32.mxu0 0.0
  %1151 = vmatmul.mubr.f32.gmra.mxu0 %v1084
  %v1152 = vpop.f32.mrf.mxu0
  %v1153 = vadd.f32 %v257, %v1152
  %v1154 = vpop.f32.mrf.mxu0
  %1155 = vdwg.mxu0
  %v1156 = vtanh.pop %v1153
  %1157 = vmatprep.subr.mxu0 0.0
  %1158 = vmatpush1.msra.mxu0 0.0
  %1159 = vmatprep.subr.mxu0 0.0
  %1160 = vmatpush1.msra.mxu0 0.0
  %1161 = vmatprep.subr.mxu0 0.0
  %1162 = vmatpush1.msra.mxu0 0.0
  %1163 = vmatprep.subr.mxu0 0.0
  %1164 = vmatpush1.msra.mxu0 0.0
  %1165 = vmatprep.subr.mxu0 0.0
  %1166 = vmatpush1.msra.mxu0 0.0
  %1167 = vmatprep.subr.mxu0 0.0
  %1168 = vmatpush1.msra.mxu0 0.0
  %1169 = vmatprep.subr.mxu0 0.0
  %1170 = vmatpush1.msra.mxu0 0.0
  %1171 = vmatprep.subr.mxu0 0.0
  %1172 = vmatpush1.msra.mxu0 0.0
  %1173 = vmatprep.subr.mxu0 0.0
  %1174 = vmatpush1.msra.mxu0 0.0
  %1175 = vmatprep.subr.mxu0 0.0
  %1176 = vmatpush1.msra.mxu0 0.0
  %1177 = vmatprep.subr.mxu0 0.0
  %1178 = vmatpush1.msra.mxu0 0.0
  %1179 = vmatprep.subr.mxu0 0.0
  %1180 = vmatpush1.msra.mxu0 0.0
  %1181 = vmatprep.subr.mxu0 0.0
  %1182 = vmatpush1.msra.mxu0 %v173
  %1183 = vmatprep.subr.mxu0 0.0
  %1184 = vmatpush1.msra.mxu0 %v172
  %1185 = vmatprep.subr.mxu0 0.0
  %1186 = vmatpush1.msra.mxu0 %v171
  %1187 = vmatprep.subr.mxu0 0.0
  %1188 = vmatpush1.msra.mxu0 %v170
  %1189 = vmatprep.subr.mxu0 0.0
  %1190 = vmatpush2.msra.mxu0 0.0
  %1191 = vmatprep.subr.mxu0 0.0
  %1192 = vmatpush2.msra.mxu0 0.0
  %1193 = vmatprep.subr.mxu0 0.0
  %1194 = vmatpush2.msra.mxu0 0.0
  %1195 = vmatprep.subr.mxu0 0.0
  %1196 = vmatpush2.msra.mxu0 0.0
  %1197 = vmatprep.subr.mxu0 0.0
  %1198 = vmatpush2.msra.mxu0 0.0
  %1199 = vmatprep.subr.mxu0 0.0
  %1200 = vmatpush2.msra.mxu0 0.0
  %1201 = vmatprep.subr.mxu0 0.0
  %1202 = vmatpush2.msra.mxu0 0.0
  %1203 = vmatprep.subr.mxu0 0.0
  %1204 = vmatpush2.msra.mxu0 0.0
  %1205 = vmatprep.subr.mxu0 0.0
  %1206 = vmatpush2.msra.mxu0 0.0
  %1207 = vmatprep.subr.mxu0 0.0
  %1208 = vmatpush2.msra.mxu0 0.0
  %1209 = vmatprep.subr.mxu0 0.0
  %1210 = vmatpush2.msra.mxu0 0.0
  %1211 = vmatprep.subr.mxu0 0.0
  %1212 = vmatpush2.msra.mxu0 0.0
  %1213 = vmatprep.subr.mxu0 0.0
  %1214 = vmatpush2.msra.mxu0 0.0
  %1215 = vmatprep.subr.mxu0 0.0
  %1216 = vmatpush2.msra.mxu0 0.0
  %1217 = vmatprep.subr.mxu0 0.0
  %1218 = vmatpush2.msra.mxu0 0.0
  %1219 = vmatprep.subr.mxu0 0.0
  %1220 = vmatpush2.msra.mxu0 0.0
  %1221 = vmatprep.mubr.f32.mxu0 0.0
  %1222 = vmatmul.mubr.f32.gmra.mxu0 %v1084
  %v1223 = vpop.f32.mrf.mxu0
  %v1224 = vadd.f32 %v337, %v1223
  %v1225 = vpop.f32.mrf.mxu0
  %1226 = vdwg.mxu0
  %v1227 = vmax.f32 %v1224, 0.0
  %v1228 = vand.u32 2147483647, %v1224
  %v1229 = vsub.f32 0.0, %v1228
  %v1230 = vmul.f32 %v1229, 1.442695
  %v1231 = vpow.pop %v1230
  %v1232 = vadd.f32 %v1231, 1.0
  %v1233 = vlog2.pop %v1232
  %v1234 = vmul.f32 %v1233, 0.6931472
  %v1235 = vadd.f32 %v1227, %v1234
  %v1237 = vsel %vm176, %v1156, 0
  %1239 = vmatprep.subr.mxu0 0.0
  %1240 = vmatpush1.msra.mxu0 0.0
  %1241 = vmatprep.subr.mxu0 0.0
  %1242 = vmatpush1.msra.mxu0 0.0
  %1243 = vmatprep.subr.mxu0 0.0
  %1244 = vmatpush1.msra.mxu0 0.0
  %1245 = vmatprep.subr.mxu0 0.0
  %1246 = vmatpush1.msra.mxu0 0.0
  %1247 = vmatprep.subr.mxu0 0.0
  %1248 = vmatpush1.msra.mxu0 0.0
  %1249 = vmatprep.subr.mxu0 0.0
  %1250 = vmatpush1.msra.mxu0 0.0
  %1251 = vmatprep.subr.mxu0 0.0
  %1252 = vmatpush1.msra.mxu0 0.0
  %1253 = vmatprep.subr.mxu0 0.0
  %1254 = vmatpush1.msra.mxu0 0.0
  %1255 = vmatprep.subr.mxu0 0.0
  %1256 = vmatpush1.msra.mxu0 0.0
  %1257 = vmatprep.subr.mxu0 0.0
  %1258 = vmatpush1.msra.mxu0 0.0
  %1259 = vmatprep.subr.mxu0 0.0
  %1260 = vmatpush1.msra.mxu0 0.0
  %1261 = vmatprep.subr.mxu0 0.0
  %1262 = vmatpush1.msra.mxu0 0.0
  %1263 = vmatprep.subr.mxu0 0.0
  %1264 = vmatpush1.msra.mxu0 0.0
  %1265 = vmatprep.subr.mxu0 0.0
  %1266 = vmatpush1.msra.mxu0 0.0
  %1267 = vmatprep.subr.mxu0 0.0
  %1268 = vmatpush1.msra.mxu0 %v51
  %1269 = vmatprep.subr.mxu0 0.0
  %1270 = vmatpush1.msra.mxu0 %v50
  %1271 = vmatprep.subr.mxu0 0.0
  %1272 = vmatpush2.msra.mxu0 0.0
  %1273 = vmatprep.subr.mxu0 0.0
  %1274 = vmatpush2.msra.mxu0 0.0
  %1275 = vmatprep.subr.mxu0 0.0
  %1276 = vmatpush2.msra.mxu0 0.0
  %1277 = vmatprep.subr.mxu0 0.0
  %1278 = vmatpush2.msra.mxu0 0.0
  %1279 = vmatprep.subr.mxu0 0.0
  %1280 = vmatpush2.msra.mxu0 0.0
  %1281 = vmatprep.subr.mxu0 0.0
  %1282 = vmatpush2.msra.mxu0 0.0
  %1283 = vmatprep.subr.mxu0 0.0
  %1284 = vmatpush2.msra.mxu0 0.0
  %1285 = vmatprep.subr.mxu0 0.0
  %1286 = vmatpush2.msra.mxu0 0.0
  %1287 = vmatprep.subr.mxu0 0.0
  %1288 = vmatpush2.msra.mxu0 0.0
  %1289 = vmatprep.subr.mxu0 0.0
  %1290 = vmatpush2.msra.mxu0 0.0
  %1291 = vmatprep.subr.mxu0 0.0
  %1292 = vmatpush2.msra.mxu0 0.0
  %1293 = vmatprep.subr.mxu0 0.0
  %1294 = vmatpush2.msra.mxu0 0.0
  %1295 = vmatprep.subr.mxu0 0.0
  %1296 = vmatpush2.msra.mxu0 0.0
  %1297 = vmatprep.subr.mxu0 0.0
  %1298 = vmatpush2.msra.mxu0 0.0
  %1299 = vmatprep.subr.mxu0 0.0
  %1300 = vmatpush2.msra.mxu0 0.0
  %1301 = vmatprep.subr.mxu0 0.0
  %1302 = vmatpush2.msra.mxu0 0.0
  %1303 = vmatprep.mubr.f32.mxu0 0.0
  %1304 = vmatmul.mubr.f32.gmra.mxu0 %v1237
  %v1305 = vpop.f32.mrf.mxu0
  %v1306 = vadd.f32 0.0, %v1305
  %v1307 = vpop.f32.mrf.mxu0
  %1308 = vdwg.mxu0
  %v1309 = vmul.f32 %v1156, %v1156
  %v1310 = vsel %vm492, %v1309, 0.0
  %1311 = vadd.xlane.f32.xlu0 %v1310
  %v1312 = vpop.xlane.xlu0 %1311
  %v1313 = vrsqrt.pop %v1312
  %v1314 = vmul.f32 %v1312, %v1313
  %vm1315 = vcmp.eq.f32.partialorder %v1312, inf
  %v1316 = vsel %vm1315, %v1312, %v1314
  %vm1317 = vcmp.eq.f32.partialorder %v1312, 0.0
  %v1318 = vand.u32 %v1312, 2147483648
  %v1319 = vsel %vm1317, %v1318, %v1316
  %v1320 = vmul.f32 %v1319, %v70
  %v1321 = vadd.f32 %v1320, 1e-08
  %v1322 = vrcp.pop %v1321
  %v1323 = vmul.f32 %v1306, %v1322
  %1325 = vset.pattern.permute.xlu0 0
  %1326 = vperm.xlu0 %1325, %v1235
  %v1327 = vpop.permute.xlu0 %1326
  %v1329 = vmul.f32 %v1327, %v1323
  %v1330 = vsel %vm251, %v1329, -inf
  %1331 = vmax.xlane.f32.xlu0 %v1330
  %v1332 = vpop.xlane.xlu0 %1331
  %v1333 = vsub.f32 %v1329, %v1332
  %v1334 = vmul.f32 %v1333, 1.442695
  %v1335 = vpow.pop %v1334
  %v1336 = vsel %vm251, %v1335, 0.0
  %1337 = vadd.xlane.f32.xlu0 %v1336
  %v1338 = vpop.xlane.xlu0 %1337
  %v1339 = vrcp.pop %v1338
  %v1340 = vmul.f32 %v1335, %v1339
  %v1342 = vsel %vm54, %v1340, 0
  %1344 = vmatprep.subr.mxu0 0.0
  %1345 = vmatpush1.msra.mxu0 0.0
  %1346 = vmatprep.subr.mxu0 0.0
  %1347 = vmatpush1.msra.mxu0 0.0
  %1348 = vmatprep.subr.mxu0 0.0
  %1349 = vmatpush1.msra.mxu0 0.0
  %1350 = vmatprep.subr.mxu0 0.0
  %1351 = vmatpush1.msra.mxu0 0.0
  %1352 = vmatprep.subr.mxu0 0.0
  %1353 = vmatpush1.msra.mxu0 0.0
  %1354 = vmatprep.subr.mxu0 0.0
  %1355 = vmatpush1.msra.mxu0 0.0
  %1356 = vmatprep.subr.mxu0 0.0
  %1357 = vmatpush1.msra.mxu0 0.0
  %1358 = vmatprep.subr.mxu0 0.0
  %1359 = vmatpush1.msra.mxu0 0.0
  %1360 = vmatprep.subr.mxu0 0.0
  %1361 = vmatpush1.msra.mxu0 0.0
  %1362 = vmatprep.subr.mxu0 0.0
  %1363 = vmatpush1.msra.mxu0 0.0
  %1364 = vmatprep.subr.mxu0 0.0
  %1365 = vmatpush1.msra.mxu0 0.0
  %1366 = vmatprep.subr.mxu0 0.0
  %1367 = vmatpush1.msra.mxu0 0.0
  %1368 = vmatprep.subr.mxu0 0.0
  %1369 = vmatpush1.msra.mxu0 %v49
  %1370 = vmatprep.subr.mxu0 0.0
  %1371 = vmatpush1.msra.mxu0 %v48
  %1372 = vmatprep.subr.mxu0 0.0
  %1373 = vmatpush1.msra.mxu0 %v47
  %1374 = vmatprep.subr.mxu0 0.0
  %1375 = vmatpush1.msra.mxu0 %v46
  %1376 = vmatprep.subr.mxu0 0.0
  %1377 = vmatpush2.msra.mxu0 0.0
  %1378 = vmatprep.subr.mxu0 0.0
  %1379 = vmatpush2.msra.mxu0 0.0
  %1380 = vmatprep.subr.mxu0 0.0
  %1381 = vmatpush2.msra.mxu0 0.0
  %1382 = vmatprep.subr.mxu0 0.0
  %1383 = vmatpush2.msra.mxu0 0.0
  %1384 = vmatprep.subr.mxu0 0.0
  %1385 = vmatpush2.msra.mxu0 0.0
  %1386 = vmatprep.subr.mxu0 0.0
  %1387 = vmatpush2.msra.mxu0 0.0
  %1388 = vmatprep.subr.mxu0 0.0
  %1389 = vmatpush2.msra.mxu0 0.0
  %1390 = vmatprep.subr.mxu0 0.0
  %1391 = vmatpush2.msra.mxu0 0.0
  %1392 = vmatprep.subr.mxu0 0.0
  %1393 = vmatpush2.msra.mxu0 0.0
  %1394 = vmatprep.subr.mxu0 0.0
  %1395 = vmatpush2.msra.mxu0 0.0
  %1396 = vmatprep.subr.mxu0 0.0
  %1397 = vmatpush2.msra.mxu0 0.0
  %1398 = vmatprep.subr.mxu0 0.0
  %1399 = vmatpush2.msra.mxu0 0.0
  %1400 = vmatprep.subr.mxu0 0.0
  %1401 = vmatpush2.msra.mxu0 0.0
  %1402 = vmatprep.subr.mxu0 0.0
  %1403 = vmatpush2.msra.mxu0 0.0
  %1404 = vmatprep.subr.mxu0 0.0
  %1405 = vmatpush2.msra.mxu0 0.0
  %1406 = vmatprep.subr.mxu0 0.0
  %1407 = vmatpush2.msra.mxu0 0.0
  %1408 = vmatprep.mubr.f32.mxu0 0.0
  %1409 = vmatmul.mubr.f32.gmra.mxu0 %v1342
  %v1410 = vpop.f32.mrf.mxu0
  %v1411 = vadd.f32 0.0, %v1410
  %v1412 = vpop.f32.mrf.mxu0
  %1413 = vdwg.mxu0
  %v1414 = vrot.slane %v155, 6
  %v1417 = vsel %vm176, %v1411, 0
  %1419 = vmatprep.subr.mxu0 0.0
  %1420 = vmatpush1.msra.mxu0 0.0
  %1421 = vmatprep.subr.mxu0 0.0
  %1422 = vmatpush1.msra.mxu0 0.0
  %1423 = vmatprep.subr.mxu0 0.0
  %1424 = vmatpush1.msra.mxu0 0.0
  %1425 = vmatprep.subr.mxu0 0.0
  %1426 = vmatpush1.msra.mxu0 0.0
  %1427 = vmatprep.subr.mxu0 0.0
  %1428 = vmatpush1.msra.mxu0 0.0
  %1429 = vmatprep.subr.mxu0 0.0
  %1430 = vmatpush1.msra.mxu0 0.0
  %1431 = vmatprep.subr.mxu0 0.0
  %1432 = vmatpush1.msra.mxu0 0.0
  %1433 = vmatprep.subr.mxu0 0.0
  %1434 = vmatpush1.msra.mxu0 0.0
  %1435 = vmatprep.subr.mxu0 0.0
  %1436 = vmatpush1.msra.mxu0 0.0
  %1437 = vmatprep.subr.mxu0 0.0
  %1438 = vmatpush1.msra.mxu0 0.0
  %1439 = vmatprep.subr.mxu0 0.0
  %1440 = vmatpush1.msra.mxu0 0.0
  %1441 = vmatprep.subr.mxu0 0.0
  %1442 = vmatpush1.msra.mxu0 0.0
  %1443 = vmatprep.subr.mxu0 0.0
  %1444 = vmatpush1.msra.mxu0 0.0
  %1445 = vmatprep.subr.mxu0 0.0
  %1446 = vmatpush1.msra.mxu0 0.0
  %1447 = vmatprep.subr.mxu0 0.0
  %1448 = vmatpush1.msra.mxu0 %v164
  %1449 = vmatprep.subr.mxu0 0.0
  %1450 = vmatpush1.msra.mxu0 %v163
  %1451 = vmatprep.subr.mxu0 0.0
  %1452 = vmatpush2.msra.mxu0 0.0
  %1453 = vmatprep.subr.mxu0 0.0
  %1454 = vmatpush2.msra.mxu0 0.0
  %1455 = vmatprep.subr.mxu0 0.0
  %1456 = vmatpush2.msra.mxu0 0.0
  %1457 = vmatprep.subr.mxu0 0.0
  %1458 = vmatpush2.msra.mxu0 0.0
  %1459 = vmatprep.subr.mxu0 0.0
  %1460 = vmatpush2.msra.mxu0 0.0
  %1461 = vmatprep.subr.mxu0 0.0
  %1462 = vmatpush2.msra.mxu0 0.0
  %1463 = vmatprep.subr.mxu0 0.0
  %1464 = vmatpush2.msra.mxu0 0.0
  %1465 = vmatprep.subr.mxu0 0.0
  %1466 = vmatpush2.msra.mxu0 0.0
  %1467 = vmatprep.subr.mxu0 0.0
  %1468 = vmatpush2.msra.mxu0 0.0
  %1469 = vmatprep.subr.mxu0 0.0
  %1470 = vmatpush2.msra.mxu0 0.0
  %1471 = vmatprep.subr.mxu0 0.0
  %1472 = vmatpush2.msra.mxu0 0.0
  %1473 = vmatprep.subr.mxu0 0.0
  %1474 = vmatpush2.msra.mxu0 0.0
  %1475 = vmatprep.subr.mxu0 0.0
  %1476 = vmatpush2.msra.mxu0 0.0
  %1477 = vmatprep.subr.mxu0 0.0
  %1478 = vmatpush2.msra.mxu0 0.0
  %1479 = vmatprep.subr.mxu0 0.0
  %1480 = vmatpush2.msra.mxu0 0.0
  %1481 = vmatprep.subr.mxu0 0.0
  %1482 = vmatpush2.msra.mxu0 0.0
  %1483 = vmatprep.mubr.f32.mxu0 0.0
  %1484 = vmatmul.mubr.f32.gmra.mxu0 %v1417
  %v1485 = vpop.f32.mrf.mxu0
  %v1486 = vadd.f32 %v1414, %v1485
  %v1487 = vpop.f32.mrf.mxu0
  %1488 = vdwg.mxu0
  %v1489 = vtanh.pop %v1486
  %1490 = vst.msk [vmem:[#allocation2 + $0x6] sm:$0x3] %vm251, %v1489
  %v1492 = vsel %vm54, %v1489, 0
  %1494 = vmatprep.subr.mxu0 0.0
  %1495 = vmatpush1.msra.mxu0 0.0
  %1496 = vmatprep.subr.mxu0 0.0
  %1497 = vmatpush1.msra.mxu0 0.0
  %1498 = vmatprep.subr.mxu0 0.0
  %1499 = vmatpush1.msra.mxu0 0.0
  %1500 = vmatprep.subr.mxu0 0.0
  %1501 = vmatpush1.msra.mxu0 0.0
  %1502 = vmatprep.subr.mxu0 0.0
  %1503 = vmatpush1.msra.mxu0 0.0
  %1504 = vmatprep.subr.mxu0 0.0
  %1505 = vmatpush1.msra.mxu0 0.0
  %1506 = vmatprep.subr.mxu0 0.0
  %1507 = vmatpush1.msra.mxu0 0.0
  %1508 = vmatprep.subr.mxu0 0.0
  %1509 = vmatpush1.msra.mxu0 0.0
  %1510 = vmatprep.subr.mxu0 0.0
  %1511 = vmatpush1.msra.mxu0 0.0
  %1512 = vmatprep.subr.mxu0 0.0
  %1513 = vmatpush1.msra.mxu0 0.0
  %1514 = vmatprep.subr.mxu0 0.0
  %1515 = vmatpush1.msra.mxu0 0.0
  %1516 = vmatprep.subr.mxu0 0.0
  %1517 = vmatpush1.msra.mxu0 0.0
  %1518 = vmatprep.subr.mxu0 0.0
  %1519 = vmatpush1.msra.mxu0 %v168
  %1520 = vmatprep.subr.mxu0 0.0
  %1521 = vmatpush1.msra.mxu0 %v167
  %1522 = vmatprep.subr.mxu0 0.0
  %1523 = vmatpush1.msra.mxu0 %v166
  %1524 = vmatprep.subr.mxu0 0.0
  %1525 = vmatpush1.msra.mxu0 %v165
  %1526 = vmatprep.subr.mxu0 0.0
  %1527 = vmatpush2.msra.mxu0 0.0
  %1528 = vmatprep.subr.mxu0 0.0
  %1529 = vmatpush2.msra.mxu0 0.0
  %1530 = vmatprep.subr.mxu0 0.0
  %1531 = vmatpush2.msra.mxu0 0.0
  %1532 = vmatprep.subr.mxu0 0.0
  %1533 = vmatpush2.msra.mxu0 0.0
  %1534 = vmatprep.subr.mxu0 0.0
  %1535 = vmatpush2.msra.mxu0 0.0
  %1536 = vmatprep.subr.mxu0 0.0
  %1537 = vmatpush2.msra.mxu0 0.0
  %1538 = vmatprep.subr.mxu0 0.0
  %1539 = vmatpush2.msra.mxu0 0.0
  %1540 = vmatprep.subr.mxu0 0.0
  %1541 = vmatpush2.msra.mxu0 0.0
  %1542 = vmatprep.subr.mxu0 0.0
  %1543 = vmatpush2.msra.mxu0 0.0
  %1544 = vmatprep.subr.mxu0 0.0
  %1545 = vmatpush2.msra.mxu0 0.0
  %1546 = vmatprep.subr.mxu0 0.0
  %1547 = vmatpush2.msra.mxu0 0.0
  %1548 = vmatprep.subr.mxu0 0.0
  %1549 = vmatpush2.msra.mxu0 0.0
  %1550 = vmatprep.subr.mxu0 0.0
  %1551 = vmatpush2.msra.mxu0 0.0
  %1552 = vmatprep.subr.mxu0 0.0
  %1553 = vmatpush2.msra.mxu0 0.0
  %1554 = vmatprep.subr.mxu0 0.0
  %1555 = vmatpush2.msra.mxu0 0.0
  %1556 = vmatprep.subr.mxu0 0.0
  %1557 = vmatpush2.msra.mxu0 0.0
  %1558 = vmatprep.mubr.f32.mxu0 0.0
  %1559 = vmatmul.mubr.f32.gmra.mxu0 %v1492
  %v1560 = vpop.f32.mrf.mxu0
  %v1561 = vadd.f32 %v257, %v1560
  %v1562 = vpop.f32.mrf.mxu0
  %1563 = vdwg.mxu0
  %v1564 = vtanh.pop %v1561
  %1565 = vmatprep.subr.mxu0 0.0
  %1566 = vmatpush1.msra.mxu0 0.0
  %1567 = vmatprep.subr.mxu0 0.0
  %1568 = vmatpush1.msra.mxu0 0.0
  %1569 = vmatprep.subr.mxu0 0.0
  %1570 = vmatpush1.msra.mxu0 0.0
  %1571 = vmatprep.subr.mxu0 0.0
  %1572 = vmatpush1.msra.mxu0 0.0
  %1573 = vmatprep.subr.mxu0 0.0
  %1574 = vmatpush1.msra.mxu0 0.0
  %1575 = vmatprep.subr.mxu0 0.0
  %1576 = vmatpush1.msra.mxu0 0.0
  %1577 = vmatprep.subr.mxu0 0.0
  %1578 = vmatpush1.msra.mxu0 0.0
  %1579 = vmatprep.subr.mxu0 0.0
  %1580 = vmatpush1.msra.mxu0 0.0
  %1581 = vmatprep.subr.mxu0 0.0
  %1582 = vmatpush1.msra.mxu0 0.0
  %1583 = vmatprep.subr.mxu0 0.0
  %1584 = vmatpush1.msra.mxu0 0.0
  %1585 = vmatprep.subr.mxu0 0.0
  %1586 = vmatpush1.msra.mxu0 0.0
  %1587 = vmatprep.subr.mxu0 0.0
  %1588 = vmatpush1.msra.mxu0 0.0
  %1589 = vmatprep.subr.mxu0 0.0
  %1590 = vmatpush1.msra.mxu0 %v173
  %1591 = vmatprep.subr.mxu0 0.0
  %1592 = vmatpush1.msra.mxu0 %v172
  %1593 = vmatprep.subr.mxu0 0.0
  %1594 = vmatpush1.msra.mxu0 %v171
  %1595 = vmatprep.subr.mxu0 0.0
  %1596 = vmatpush1.msra.mxu0 %v170
  %1597 = vmatprep.subr.mxu0 0.0
  %1598 = vmatpush2.msra.mxu0 0.0
  %1599 = vmatprep.subr.mxu0 0.0
  %1600 = vmatpush2.msra.mxu0 0.0
  %1601 = vmatprep.subr.mxu0 0.0
  %1602 = vmatpush2.msra.mxu0 0.0
  %1603 = vmatprep.subr.mxu0 0.0
  %1604 = vmatpush2.msra.mxu0 0.0
  %1605 = vmatprep.subr.mxu0 0.0
  %1606 = vmatpush2.msra.mxu0 0.0
  %1607 = vmatprep.subr.mxu0 0.0
  %1608 = vmatpush2.msra.mxu0 0.0
  %1609 = vmatprep.subr.mxu0 0.0
  %1610 = vmatpush2.msra.mxu0 0.0
  %1611 = vmatprep.subr.mxu0 0.0
  %1612 = vmatpush2.msra.mxu0 0.0
  %1613 = vmatprep.subr.mxu0 0.0
  %1614 = vmatpush2.msra.mxu0 0.0
  %1615 = vmatprep.subr.mxu0 0.0
  %1616 = vmatpush2.msra.mxu0 0.0
  %1617 = vmatprep.subr.mxu0 0.0
  %1618 = vmatpush2.msra.mxu0 0.0
  %1619 = vmatprep.subr.mxu0 0.0
  %1620 = vmatpush2.msra.mxu0 0.0
  %1621 = vmatprep.subr.mxu0 0.0
  %1622 = vmatpush2.msra.mxu0 0.0
  %1623 = vmatprep.subr.mxu0 0.0
  %1624 = vmatpush2.msra.mxu0 0.0
  %1625 = vmatprep.subr.mxu0 0.0
  %1626 = vmatpush2.msra.mxu0 0.0
  %1627 = vmatprep.subr.mxu0 0.0
  %1628 = vmatpush2.msra.mxu0 0.0
  %1629 = vmatprep.mubr.f32.mxu0 0.0
  %1630 = vmatmul.mubr.f32.gmra.mxu0 %v1492
  %v1631 = vpop.f32.mrf.mxu0
  %v1632 = vadd.f32 %v337, %v1631
  %v1633 = vpop.f32.mrf.mxu0
  %1634 = vdwg.mxu0
  %v1635 = vmax.f32 %v1632, 0.0
  %v1636 = vand.u32 2147483647, %v1632
  %v1637 = vsub.f32 0.0, %v1636
  %v1638 = vmul.f32 %v1637, 1.442695
  %v1639 = vpow.pop %v1638
  %v1640 = vadd.f32 %v1639, 1.0
  %v1641 = vlog2.pop %v1640
  %v1642 = vmul.f32 %v1641, 0.6931472
  %v1643 = vadd.f32 %v1635, %v1642
  %v1645 = vsel %vm176, %v1564, 0
  %1647 = vmatprep.subr.mxu0 0.0
  %1648 = vmatpush1.msra.mxu0 0.0
  %1649 = vmatprep.subr.mxu0 0.0
  %1650 = vmatpush1.msra.mxu0 0.0
  %1651 = vmatprep.subr.mxu0 0.0
  %1652 = vmatpush1.msra.mxu0 0.0
  %1653 = vmatprep.subr.mxu0 0.0
  %1654 = vmatpush1.msra.mxu0 0.0
  %1655 = vmatprep.subr.mxu0 0.0
  %1656 = vmatpush1.msra.mxu0 0.0
  %1657 = vmatprep.subr.mxu0 0.0
  %1658 = vmatpush1.msra.mxu0 0.0
  %1659 = vmatprep.subr.mxu0 0.0
  %1660 = vmatpush1.msra.mxu0 0.0
  %1661 = vmatprep.subr.mxu0 0.0
  %1662 = vmatpush1.msra.mxu0 0.0
  %1663 = vmatprep.subr.mxu0 0.0
  %1664 = vmatpush1.msra.mxu0 0.0
  %1665 = vmatprep.subr.mxu0 0.0
  %1666 = vmatpush1.msra.mxu0 0.0
  %1667 = vmatprep.subr.mxu0 0.0
  %1668 = vmatpush1.msra.mxu0 0.0
  %1669 = vmatprep.subr.mxu0 0.0
  %1670 = vmatpush1.msra.mxu0 0.0
  %1671 = vmatprep.subr.mxu0 0.0
  %1672 = vmatpush1.msra.mxu0 0.0
  %1673 = vmatprep.subr.mxu0 0.0
  %1674 = vmatpush1.msra.mxu0 0.0
  %1675 = vmatprep.subr.mxu0 0.0
  %1676 = vmatpush1.msra.mxu0 %v51
  %1677 = vmatprep.subr.mxu0 0.0
  %1678 = vmatpush1.msra.mxu0 %v50
  %1679 = vmatprep.subr.mxu0 0.0
  %1680 = vmatpush2.msra.mxu0 0.0
  %1681 = vmatprep.subr.mxu0 0.0
  %1682 = vmatpush2.msra.mxu0 0.0
  %1683 = vmatprep.subr.mxu0 0.0
  %1684 = vmatpush2.msra.mxu0 0.0
  %1685 = vmatprep.subr.mxu0 0.0
  %1686 = vmatpush2.msra.mxu0 0.0
  %1687 = vmatprep.subr.mxu0 0.0
  %1688 = vmatpush2.msra.mxu0 0.0
  %1689 = vmatprep.subr.mxu0 0.0
  %1690 = vmatpush2.msra.mxu0 0.0
  %1691 = vmatprep.subr.mxu0 0.0
  %1692 = vmatpush2.msra.mxu0 0.0
  %1693 = vmatprep.subr.mxu0 0.0
  %1694 = vmatpush2.msra.mxu0 0.0
  %1695 = vmatprep.subr.mxu0 0.0
  %1696 = vmatpush2.msra.mxu0 0.0
  %1697 = vmatprep.subr.mxu0 0.0
  %1698 = vmatpush2.msra.mxu0 0.0
  %1699 = vmatprep.subr.mxu0 0.0
  %1700 = vmatpush2.msra.mxu0 0.0
  %1701 = vmatprep.subr.mxu0 0.0
  %1702 = vmatpush2.msra.mxu0 0.0
  %1703 = vmatprep.subr.mxu0 0.0
  %1704 = vmatpush2.msra.mxu0 0.0
  %1705 = vmatprep.subr.mxu0 0.0
  %1706 = vmatpush2.msra.mxu0 0.0
  %1707 = vmatprep.subr.mxu0 0.0
  %1708 = vmatpush2.msra.mxu0 0.0
  %1709 = vmatprep.subr.mxu0 0.0
  %1710 = vmatpush2.msra.mxu0 0.0
  %1711 = vmatprep.mubr.f32.mxu0 0.0
  %1712 = vmatmul.mubr.f32.gmra.mxu0 %v1645
  %v1713 = vpop.f32.mrf.mxu0
  %v1714 = vadd.f32 0.0, %v1713
  %v1715 = vpop.f32.mrf.mxu0
  %1716 = vdwg.mxu0
  %v1717 = vmul.f32 %v1564, %v1564
  %v1718 = vsel %vm492, %v1717, 0.0
  %1719 = vadd.xlane.f32.xlu0 %v1718
  %v1720 = vpop.xlane.xlu0 %1719
  %v1721 = vrsqrt.pop %v1720
  %v1722 = vmul.f32 %v1720, %v1721
  %vm1723 = vcmp.eq.f32.partialorder %v1720, inf
  %v1724 = vsel %vm1723, %v1720, %v1722
  %vm1725 = vcmp.eq.f32.partialorder %v1720, 0.0
  %v1726 = vand.u32 %v1720, 2147483648
  %v1727 = vsel %vm1725, %v1726, %v1724
  %v1728 = vmul.f32 %v1727, %v70
  %v1729 = vadd.f32 %v1728, 1e-08
  %v1730 = vrcp.pop %v1729
  %v1731 = vmul.f32 %v1714, %v1730
  %1733 = vset.pattern.permute.xlu0 0
  %1734 = vperm.xlu0 %1733, %v1643
  %v1735 = vpop.permute.xlu0 %1734
  %v1737 = vmul.f32 %v1735, %v1731
  %v1738 = vsel %vm251, %v1737, -inf
  %1739 = vmax.xlane.f32.xlu0 %v1738
  %v1740 = vpop.xlane.xlu0 %1739
  %v1741 = vsub.f32 %v1737, %v1740
  %v1742 = vmul.f32 %v1741, 1.442695
  %v1743 = vpow.pop %v1742
  %v1744 = vsel %vm251, %v1743, 0.0
  %1745 = vadd.xlane.f32.xlu0 %v1744
  %v1746 = vpop.xlane.xlu0 %1745
  %v1747 = vrcp.pop %v1746
  %v1748 = vmul.f32 %v1743, %v1747
  %v1750 = vsel %vm54, %v1748, 0
  %1752 = vmatprep.subr.mxu0 0.0
  %1753 = vmatpush1.msra.mxu0 0.0
  %1754 = vmatprep.subr.mxu0 0.0
  %1755 = vmatpush1.msra.mxu0 0.0
  %1756 = vmatprep.subr.mxu0 0.0
  %1757 = vmatpush1.msra.mxu0 0.0
  %1758 = vmatprep.subr.mxu0 0.0
  %1759 = vmatpush1.msra.mxu0 0.0
  %1760 = vmatprep.subr.mxu0 0.0
  %1761 = vmatpush1.msra.mxu0 0.0
  %1762 = vmatprep.subr.mxu0 0.0
  %1763 = vmatpush1.msra.mxu0 0.0
  %1764 = vmatprep.subr.mxu0 0.0
  %1765 = vmatpush1.msra.mxu0 0.0
  %1766 = vmatprep.subr.mxu0 0.0
  %1767 = vmatpush1.msra.mxu0 0.0
  %1768 = vmatprep.subr.mxu0 0.0
  %1769 = vmatpush1.msra.mxu0 0.0
  %1770 = vmatprep.subr.mxu0 0.0
  %1771 = vmatpush1.msra.mxu0 0.0
  %1772 = vmatprep.subr.mxu0 0.0
  %1773 = vmatpush1.msra.mxu0 0.0
  %1774 = vmatprep.subr.mxu0 0.0
  %1775 = vmatpush1.msra.mxu0 0.0
  %1776 = vmatprep.subr.mxu0 0.0
  %1777 = vmatpush1.msra.mxu0 %v49
  %1778 = vmatprep.subr.mxu0 0.0
  %1779 = vmatpush1.msra.mxu0 %v48
  %1780 = vmatprep.subr.mxu0 0.0
  %1781 = vmatpush1.msra.mxu0 %v47
  %1782 = vmatprep.subr.mxu0 0.0
  %1783 = vmatpush1.msra.mxu0 %v46
  %1784 = vmatprep.subr.mxu0 0.0
  %1785 = vmatpush2.msra.mxu0 0.0
  %1786 = vmatprep.subr.mxu0 0.0
  %1787 = vmatpush2.msra.mxu0 0.0
  %1788 = vmatprep.subr.mxu0 0.0
  %1789 = vmatpush2.msra.mxu0 0.0
  %1790 = vmatprep.subr.mxu0 0.0
  %1791 = vmatpush2.msra.mxu0 0.0
  %1792 = vmatprep.subr.mxu0 0.0
  %1793 = vmatpush2.msra.mxu0 0.0
  %1794 = vmatprep.subr.mxu0 0.0
  %1795 = vmatpush2.msra.mxu0 0.0
  %1796 = vmatprep.subr.mxu0 0.0
  %1797 = vmatpush2.msra.mxu0 0.0
  %1798 = vmatprep.subr.mxu0 0.0
  %1799 = vmatpush2.msra.mxu0 0.0
  %1800 = vmatprep.subr.mxu0 0.0
  %1801 = vmatpush2.msra.mxu0 0.0
  %1802 = vmatprep.subr.mxu0 0.0
  %1803 = vmatpush2.msra.mxu0 0.0
  %1804 = vmatprep.subr.mxu0 0.0
  %1805 = vmatpush2.msra.mxu0 0.0
  %1806 = vmatprep.subr.mxu0 0.0
  %1807 = vmatpush2.msra.mxu0 0.0
  %1808 = vmatprep.subr.mxu0 0.0
  %1809 = vmatpush2.msra.mxu0 0.0
  %1810 = vmatprep.subr.mxu0 0.0
  %1811 = vmatpush2.msra.mxu0 0.0
  %1812 = vmatprep.subr.mxu0 0.0
  %1813 = vmatpush2.msra.mxu0 0.0
  %1814 = vmatprep.subr.mxu0 0.0
  %1815 = vmatpush2.msra.mxu0 0.0
  %1816 = vmatprep.mubr.f32.mxu0 0.0
  %1817 = vmatmul.mubr.f32.gmra.mxu0 %v1750
  %v1818 = vpop.f32.mrf.mxu0
  %v1819 = vadd.f32 0.0, %v1818
  %v1820 = vpop.f32.mrf.mxu0
  %1821 = vdwg.mxu0
  %v1823 = vsel %vm176, %v1819, 0
  %1825 = vmatprep.subr.mxu0 0.0
  %1826 = vmatpush1.msra.mxu0 0.0
  %1827 = vmatprep.subr.mxu0 0.0
  %1828 = vmatpush1.msra.mxu0 0.0
  %1829 = vmatprep.subr.mxu0 0.0
  %1830 = vmatpush1.msra.mxu0 0.0
  %1831 = vmatprep.subr.mxu0 0.0
  %1832 = vmatpush1.msra.mxu0 0.0
  %1833 = vmatprep.subr.mxu0 0.0
  %1834 = vmatpush1.msra.mxu0 0.0
  %1835 = vmatprep.subr.mxu0 0.0
  %1836 = vmatpush1.msra.mxu0 0.0
  %1837 = vmatprep.subr.mxu0 0.0
  %1838 = vmatpush1.msra.mxu0 0.0
  %1839 = vmatprep.subr.mxu0 0.0
  %1840 = vmatpush1.msra.mxu0 0.0
  %1841 = vmatprep.subr.mxu0 0.0
  %1842 = vmatpush1.msra.mxu0 0.0
  %1843 = vmatprep.subr.mxu0 0.0
  %1844 = vmatpush1.msra.mxu0 0.0
  %1845 = vmatprep.subr.mxu0 0.0
  %1846 = vmatpush1.msra.mxu0 0.0
  %1847 = vmatprep.subr.mxu0 0.0
  %1848 = vmatpush1.msra.mxu0 0.0
  %1849 = vmatprep.subr.mxu0 0.0
  %1850 = vmatpush1.msra.mxu0 0.0
  %1851 = vmatprep.subr.mxu0 0.0
  %1852 = vmatpush1.msra.mxu0 0.0
  %1853 = vmatprep.subr.mxu0 0.0
  %1854 = vmatpush1.msra.mxu0 %v164
  %1855 = vmatprep.subr.mxu0 0.0
  %1856 = vmatpush1.msra.mxu0 %v163
  %1857 = vmatprep.subr.mxu0 0.0
  %1858 = vmatpush2.msra.mxu0 0.0
  %1859 = vmatprep.subr.mxu0 0.0
  %1860 = vmatpush2.msra.mxu0 0.0
  %1861 = vmatprep.subr.mxu0 0.0
  %1862 = vmatpush2.msra.mxu0 0.0
  %1863 = vmatprep.subr.mxu0 0.0
  %1864 = vmatpush2.msra.mxu0 0.0
  %1865 = vmatprep.subr.mxu0 0.0
  %1866 = vmatpush2.msra.mxu0 0.0
  %1867 = vmatprep.subr.mxu0 0.0
  %1868 = vmatpush2.msra.mxu0 0.0
  %1869 = vmatprep.subr.mxu0 0.0
  %1870 = vmatpush2.msra.mxu0 0.0
  %1871 = vmatprep.subr.mxu0 0.0
  %1872 = vmatpush2.msra.mxu0 0.0
  %1873 = vmatprep.subr.mxu0 0.0
  %1874 = vmatpush2.msra.mxu0 0.0
  %1875 = vmatprep.subr.mxu0 0.0
  %1876 = vmatpush2.msra.mxu0 0.0
  %1877 = vmatprep.subr.mxu0 0.0
  %1878 = vmatpush2.msra.mxu0 0.0
  %1879 = vmatprep.subr.mxu0 0.0
  %1880 = vmatpush2.msra.mxu0 0.0
  %1881 = vmatprep.subr.mxu0 0.0
  %1882 = vmatpush2.msra.mxu0 0.0
  %1883 = vmatprep.subr.mxu0 0.0
  %1884 = vmatpush2.msra.mxu0 0.0
  %1885 = vmatprep.subr.mxu0 0.0
  %1886 = vmatpush2.msra.mxu0 0.0
  %1887 = vmatprep.subr.mxu0 0.0
  %1888 = vmatpush2.msra.mxu0 0.0
  %1889 = vmatprep.mubr.f32.mxu0 0.0
  %1890 = vmatmul.mubr.f32.gmra.mxu0 %v1823
  %v1891 = vpop.f32.mrf.mxu0
  %v1892 = vadd.f32 %v160, %v1891
  %v1893 = vpop.f32.mrf.mxu0
  %1894 = vdwg.mxu0
  %v1895 = vtanh.pop %v1892
  %1896 = vst.msk [vmem:[#allocation2 + $0x8] sm:$0x3] %vm251, %v1895
  %v1898 = vsel %vm54, %v1895, 0
  %1900 = vmatprep.subr.mxu0 0.0
  %1901 = vmatpush1.msra.mxu0 0.0
  %1902 = vmatprep.subr.mxu0 0.0
  %1903 = vmatpush1.msra.mxu0 0.0
  %1904 = vmatprep.subr.mxu0 0.0
  %1905 = vmatpush1.msra.mxu0 0.0
  %1906 = vmatprep.subr.mxu0 0.0
  %1907 = vmatpush1.msra.mxu0 0.0
  %1908 = vmatprep.subr.mxu0 0.0
  %1909 = vmatpush1.msra.mxu0 0.0
  %1910 = vmatprep.subr.mxu0 0.0
  %1911 = vmatpush1.msra.mxu0 0.0
  %1912 = vmatprep.subr.mxu0 0.0
  %1913 = vmatpush1.msra.mxu0 0.0
  %1914 = vmatprep.subr.mxu0 0.0
  %1915 = vmatpush1.msra.mxu0 0.0
  %1916 = vmatprep.subr.mxu0 0.0
  %1917 = vmatpush1.msra.mxu0 0.0
  %1918 = vmatprep.subr.mxu0 0.0
  %1919 = vmatpush1.msra.mxu0 0.0
  %1920 = vmatprep.subr.mxu0 0.0
  %1921 = vmatpush1.msra.mxu0 0.0
  %1922 = vmatprep.subr.mxu0 0.0
  %1923 = vmatpush1.msra.mxu0 0.0
  %1924 = vmatprep.subr.mxu0 0.0
  %1925 = vmatpush1.msra.mxu0 %v168
  %1926 = vmatprep.subr.mxu0 0.0
  %1927 = vmatpush1.msra.mxu0 %v167
  %1928 = vmatprep.subr.mxu0 0.0
  %1929 = vmatpush1.msra.mxu0 %v166
  %1930 = vmatprep.subr.mxu0 0.0
  %1931 = vmatpush1.msra.mxu0 %v165
  %1932 = vmatprep.subr.mxu0 0.0
  %1933 = vmatpush2.msra.mxu0 0.0
  %1934 = vmatprep.subr.mxu0 0.0
  %1935 = vmatpush2.msra.mxu0 0.0
  %1936 = vmatprep.subr.mxu0 0.0
  %1937 = vmatpush2.msra.mxu0 0.0
  %1938 = vmatprep.subr.mxu0 0.0
  %1939 = vmatpush2.msra.mxu0 0.0
  %1940 = vmatprep.subr.mxu0 0.0
  %1941 = vmatpush2.msra.mxu0 0.0
  %1942 = vmatprep.subr.mxu0 0.0
  %1943 = vmatpush2.msra.mxu0 0.0
  %1944 = vmatprep.subr.mxu0 0.0
  %1945 = vmatpush2.msra.mxu0 0.0
  %1946 = vmatprep.subr.mxu0 0.0
  %1947 = vmatpush2.msra.mxu0 0.0
  %1948 = vmatprep.subr.mxu0 0.0
  %1949 = vmatpush2.msra.mxu0 0.0
  %1950 = vmatprep.subr.mxu0 0.0
  %1951 = vmatpush2.msra.mxu0 0.0
  %1952 = vmatprep.subr.mxu0 0.0
  %1953 = vmatpush2.msra.mxu0 0.0
  %1954 = vmatprep.subr.mxu0 0.0
  %1955 = vmatpush2.msra.mxu0 0.0
  %1956 = vmatprep.subr.mxu0 0.0
  %1957 = vmatpush2.msra.mxu0 0.0
  %1958 = vmatprep.subr.mxu0 0.0
  %1959 = vmatpush2.msra.mxu0 0.0
  %1960 = vmatprep.subr.mxu0 0.0
  %1961 = vmatpush2.msra.mxu0 0.0
  %1962 = vmatprep.subr.mxu0 0.0
  %1963 = vmatpush2.msra.mxu0 0.0
  %1964 = vmatprep.mubr.f32.mxu0 0.0
  %1965 = vmatmul.mubr.f32.gmra.mxu0 %v1898
  %v1966 = vpop.f32.mrf.mxu0
  %v1967 = vadd.f32 %v257, %v1966
  %v1968 = vpop.f32.mrf.mxu0
  %1969 = vdwg.mxu0
  %v1970 = vtanh.pop %v1967
  %1971 = vmatprep.subr.mxu0 0.0
  %1972 = vmatpush1.msra.mxu0 0.0
  %1973 = vmatprep.subr.mxu0 0.0
  %1974 = vmatpush1.msra.mxu0 0.0
  %1975 = vmatprep.subr.mxu0 0.0
  %1976 = vmatpush1.msra.mxu0 0.0
  %1977 = vmatprep.subr.mxu0 0.0
  %1978 = vmatpush1.msra.mxu0 0.0
  %1979 = vmatprep.subr.mxu0 0.0
  %1980 = vmatpush1.msra.mxu0 0.0
  %1981 = vmatprep.subr.mxu0 0.0
  %1982 = vmatpush1.msra.mxu0 0.0
  %1983 = vmatprep.subr.mxu0 0.0
  %1984 = vmatpush1.msra.mxu0 0.0
  %1985 = vmatprep.subr.mxu0 0.0
  %1986 = vmatpush1.msra.mxu0 0.0
  %1987 = vmatprep.subr.mxu0 0.0
  %1988 = vmatpush1.msra.mxu0 0.0
  %1989 = vmatprep.subr.mxu0 0.0
  %1990 = vmatpush1.msra.mxu0 0.0
  %1991 = vmatprep.subr.mxu0 0.0
  %1992 = vmatpush1.msra.mxu0 0.0
  %1993 = vmatprep.subr.mxu0 0.0
  %1994 = vmatpush1.msra.mxu0 0.0
  %1995 = vmatprep.subr.mxu0 0.0
  %1996 = vmatpush1.msra.mxu0 %v173
  %1997 = vmatprep.subr.mxu0 0.0
  %1998 = vmatpush1.msra.mxu0 %v172
  %1999 = vmatprep.subr.mxu0 0.0
  %2000 = vmatpush1.msra.mxu0 %v171
  %2001 = vmatprep.subr.mxu0 0.0
  %2002 = vmatpush1.msra.mxu0 %v170
  %2003 = vmatprep.subr.mxu0 0.0
  %2004 = vmatpush2.msra.mxu0 0.0
  %2005 = vmatprep.subr.mxu0 0.0
  %2006 = vmatpush2.msra.mxu0 0.0
  %2007 = vmatprep.subr.mxu0 0.0
  %2008 = vmatpush2.msra.mxu0 0.0
  %2009 = vmatprep.subr.mxu0 0.0
  %2010 = vmatpush2.msra.mxu0 0.0
  %2011 = vmatprep.subr.mxu0 0.0
  %2012 = vmatpush2.msra.mxu0 0.0
  %2013 = vmatprep.subr.mxu0 0.0
  %2014 = vmatpush2.msra.mxu0 0.0
  %2015 = vmatprep.subr.mxu0 0.0
  %2016 = vmatpush2.msra.mxu0 0.0
  %2017 = vmatprep.subr.mxu0 0.0
  %2018 = vmatpush2.msra.mxu0 0.0
  %2019 = vmatprep.subr.mxu0 0.0
  %2020 = vmatpush2.msra.mxu0 0.0
  %2021 = vmatprep.subr.mxu0 0.0
  %2022 = vmatpush2.msra.mxu0 0.0
  %2023 = vmatprep.subr.mxu0 0.0
  %2024 = vmatpush2.msra.mxu0 0.0
  %2025 = vmatprep.subr.mxu0 0.0
  %2026 = vmatpush2.msra.mxu0 0.0
  %2027 = vmatprep.subr.mxu0 0.0
  %2028 = vmatpush2.msra.mxu0 0.0
  %2029 = vmatprep.subr.mxu0 0.0
  %2030 = vmatpush2.msra.mxu0 0.0
  %2031 = vmatprep.subr.mxu0 0.0
  %2032 = vmatpush2.msra.mxu0 0.0
  %2033 = vmatprep.subr.mxu0 0.0
  %2034 = vmatpush2.msra.mxu0 0.0
  %2035 = vmatprep.mubr.f32.mxu0 0.0
  %2036 = vmatmul.mubr.f32.gmra.mxu0 %v1898
  %v2037 = vpop.f32.mrf.mxu0
  %v2038 = vadd.f32 %v337, %v2037
  %v2039 = vpop.f32.mrf.mxu0
  %2040 = vdwg.mxu0
  %v2041 = vmax.f32 %v2038, 0.0
  %v2042 = vand.u32 2147483647, %v2038
  %v2043 = vsub.f32 0.0, %v2042
  %v2044 = vmul.f32 %v2043, 1.442695
  %v2045 = vpow.pop %v2044
  %v2046 = vadd.f32 %v2045, 1.0
  %v2047 = vlog2.pop %v2046
  %v2048 = vmul.f32 %v2047, 0.6931472
  %v2049 = vadd.f32 %v2041, %v2048
  %v2051 = vsel %vm176, %v1970, 0
  %2053 = vmatprep.subr.mxu0 0.0
  %2054 = vmatpush1.msra.mxu0 0.0
  %2055 = vmatprep.subr.mxu0 0.0
  %2056 = vmatpush1.msra.mxu0 0.0
  %2057 = vmatprep.subr.mxu0 0.0
  %2058 = vmatpush1.msra.mxu0 0.0
  %2059 = vmatprep.subr.mxu0 0.0
  %2060 = vmatpush1.msra.mxu0 0.0
  %2061 = vmatprep.subr.mxu0 0.0
  %2062 = vmatpush1.msra.mxu0 0.0
  %2063 = vmatprep.subr.mxu0 0.0
  %2064 = vmatpush1.msra.mxu0 0.0
  %2065 = vmatprep.subr.mxu0 0.0
  %2066 = vmatpush1.msra.mxu0 0.0
  %2067 = vmatprep.subr.mxu0 0.0
  %2068 = vmatpush1.msra.mxu0 0.0
  %2069 = vmatprep.subr.mxu0 0.0
  %2070 = vmatpush1.msra.mxu0 0.0
  %2071 = vmatprep.subr.mxu0 0.0
  %2072 = vmatpush1.msra.mxu0 0.0
  %2073 = vmatprep.subr.mxu0 0.0
  %2074 = vmatpush1.msra.mxu0 0.0
  %2075 = vmatprep.subr.mxu0 0.0
  %2076 = vmatpush1.msra.mxu0 0.0
  %2077 = vmatprep.subr.mxu0 0.0
  %2078 = vmatpush1.msra.mxu0 0.0
  %2079 = vmatprep.subr.mxu0 0.0
  %2080 = vmatpush1.msra.mxu0 0.0
  %2081 = vmatprep.subr.mxu0 0.0
  %2082 = vmatpush1.msra.mxu0 %v51
  %2083 = vmatprep.subr.mxu0 0.0
  %2084 = vmatpush1.msra.mxu0 %v50
  %2085 = vmatprep.subr.mxu0 0.0
  %2086 = vmatpush2.msra.mxu0 0.0
  %2087 = vmatprep.subr.mxu0 0.0
  %2088 = vmatpush2.msra.mxu0 0.0
  %2089 = vmatprep.subr.mxu0 0.0
  %2090 = vmatpush2.msra.mxu0 0.0
  %2091 = vmatprep.subr.mxu0 0.0
  %2092 = vmatpush2.msra.mxu0 0.0
  %2093 = vmatprep.subr.mxu0 0.0
  %2094 = vmatpush2.msra.mxu0 0.0
  %2095 = vmatprep.subr.mxu0 0.0
  %2096 = vmatpush2.msra.mxu0 0.0
  %2097 = vmatprep.subr.mxu0 0.0
  %2098 = vmatpush2.msra.mxu0 0.0
  %2099 = vmatprep.subr.mxu0 0.0
  %2100 = vmatpush2.msra.mxu0 0.0
  %2101 = vmatprep.subr.mxu0 0.0
  %2102 = vmatpush2.msra.mxu0 0.0
  %2103 = vmatprep.subr.mxu0 0.0
  %2104 = vmatpush2.msra.mxu0 0.0
  %2105 = vmatprep.subr.mxu0 0.0
  %2106 = vmatpush2.msra.mxu0 0.0
  %2107 = vmatprep.subr.mxu0 0.0
  %2108 = vmatpush2.msra.mxu0 0.0
  %2109 = vmatprep.subr.mxu0 0.0
  %2110 = vmatpush2.msra.mxu0 0.0
  %2111 = vmatprep.subr.mxu0 0.0
  %2112 = vmatpush2.msra.mxu0 0.0
  %2113 = vmatprep.subr.mxu0 0.0
  %2114 = vmatpush2.msra.mxu0 0.0
  %2115 = vmatprep.subr.mxu0 0.0
  %2116 = vmatpush2.msra.mxu0 0.0
  %2117 = vmatprep.mubr.f32.mxu0 0.0
  %2118 = vmatmul.mubr.f32.gmra.mxu0 %v2051
  %v2119 = vpop.f32.mrf.mxu0
  %v2120 = vadd.f32 0.0, %v2119
  %v2121 = vpop.f32.mrf.mxu0
  %2122 = vdwg.mxu0
  %v2123 = vmul.f32 %v1970, %v1970
  %v2124 = vsel %vm492, %v2123, 0.0
  %2125 = vadd.xlane.f32.xlu0 %v2124
  %v2126 = vpop.xlane.xlu0 %2125
  %v2127 = vrsqrt.pop %v2126
  %v2128 = vmul.f32 %v2126, %v2127
  %vm2129 = vcmp.eq.f32.partialorder %v2126, inf
  %v2130 = vsel %vm2129, %v2126, %v2128
  %vm2131 = vcmp.eq.f32.partialorder %v2126, 0.0
  %v2132 = vand.u32 %v2126, 2147483648
  %v2133 = vsel %vm2131, %v2132, %v2130
  %v2134 = vmul.f32 %v2133, %v70
  %v2135 = vadd.f32 %v2134, 1e-08
  %v2136 = vrcp.pop %v2135
  %v2137 = vmul.f32 %v2120, %v2136
  %2139 = vset.pattern.permute.xlu0 0
  %2140 = vperm.xlu0 %2139, %v2049
  %v2141 = vpop.permute.xlu0 %2140
  %v2143 = vmul.f32 %v2141, %v2137
  %v2144 = vsel %vm251, %v2143, -inf
  %2145 = vmax.xlane.f32.xlu0 %v2144
  %v2146 = vpop.xlane.xlu0 %2145
  %v2147 = vsub.f32 %v2143, %v2146
  %v2148 = vmul.f32 %v2147, 1.442695
  %v2149 = vpow.pop %v2148
  %v2150 = vsel %vm251, %v2149, 0.0
  %2151 = vadd.xlane.f32.xlu0 %v2150
  %v2152 = vpop.xlane.xlu0 %2151
  %v2153 = vrcp.pop %v2152
  %v2154 = vmul.f32 %v2149, %v2153
  %v2156 = vsel %vm54, %v2154, 0
  %2158 = vmatprep.subr.mxu0 0.0
  %2159 = vmatpush1.msra.mxu0 0.0
  %2160 = vmatprep.subr.mxu0 0.0
  %2161 = vmatpush1.msra.mxu0 0.0
  %2162 = vmatprep.subr.mxu0 0.0
  %2163 = vmatpush1.msra.mxu0 0.0
  %2164 = vmatprep.subr.mxu0 0.0
  %2165 = vmatpush1.msra.mxu0 0.0
  %2166 = vmatprep.subr.mxu0 0.0
  %2167 = vmatpush1.msra.mxu0 0.0
  %2168 = vmatprep.subr.mxu0 0.0
  %2169 = vmatpush1.msra.mxu0 0.0
  %2170 = vmatprep.subr.mxu0 0.0
  %2171 = vmatpush1.msra.mxu0 0.0
  %2172 = vmatprep.subr.mxu0 0.0
  %2173 = vmatpush1.msra.mxu0 0.0
  %2174 = vmatprep.subr.mxu0 0.0
  %2175 = vmatpush1.msra.mxu0 0.0
  %2176 = vmatprep.subr.mxu0 0.0
  %2177 = vmatpush1.msra.mxu0 0.0
  %2178 = vmatprep.subr.mxu0 0.0
  %2179 = vmatpush1.msra.mxu0 0.0
  %2180 = vmatprep.subr.mxu0 0.0
  %2181 = vmatpush1.msra.mxu0 0.0
  %2182 = vmatprep.subr.mxu0 0.0
  %2183 = vmatpush1.msra.mxu0 %v49
  %2184 = vmatprep.subr.mxu0 0.0
  %2185 = vmatpush1.msra.mxu0 %v48
  %2186 = vmatprep.subr.mxu0 0.0
  %2187 = vmatpush1.msra.mxu0 %v47
  %2188 = vmatprep.subr.mxu0 0.0
  %2189 = vmatpush1.msra.mxu0 %v46
  %2190 = vmatprep.subr.mxu0 0.0
  %2191 = vmatpush2.msra.mxu0 0.0
  %2192 = vmatprep.subr.mxu0 0.0
  %2193 = vmatpush2.msra.mxu0 0.0
  %2194 = vmatprep.subr.mxu0 0.0
  %2195 = vmatpush2.msra.mxu0 0.0
  %2196 = vmatprep.subr.mxu0 0.0
  %2197 = vmatpush2.msra.mxu0 0.0
  %2198 = vmatprep.subr.mxu0 0.0
  %2199 = vmatpush2.msra.mxu0 0.0
  %2200 = vmatprep.subr.mxu0 0.0
  %2201 = vmatpush2.msra.mxu0 0.0
  %2202 = vmatprep.subr.mxu0 0.0
  %2203 = vmatpush2.msra.mxu0 0.0
  %2204 = vmatprep.subr.mxu0 0.0
  %2205 = vmatpush2.msra.mxu0 0.0
  %2206 = vmatprep.subr.mxu0 0.0
  %2207 = vmatpush2.msra.mxu0 0.0
  %2208 = vmatprep.subr.mxu0 0.0
  %2209 = vmatpush2.msra.mxu0 0.0
  %2210 = vmatprep.subr.mxu0 0.0
  %2211 = vmatpush2.msra.mxu0 0.0
  %2212 = vmatprep.subr.mxu0 0.0
  %2213 = vmatpush2.msra.mxu0 0.0
  %2214 = vmatprep.subr.mxu0 0.0
  %2215 = vmatpush2.msra.mxu0 0.0
  %2216 = vmatprep.subr.mxu0 0.0
  %2217 = vmatpush2.msra.mxu0 0.0
  %2218 = vmatprep.subr.mxu0 0.0
  %2219 = vmatpush2.msra.mxu0 0.0
  %2220 = vmatprep.subr.mxu0 0.0
  %2221 = vmatpush2.msra.mxu0 0.0
  %2222 = vmatprep.mubr.f32.mxu0 0.0
  %2223 = vmatmul.mubr.f32.gmra.mxu0 %v2156
  %v2224 = vpop.f32.mrf.mxu0
  %v2225 = vadd.f32 0.0, %v2224
  %v2226 = vpop.f32.mrf.mxu0
  %2227 = vdwg.mxu0
  %v2229 = vrot.slane %v160, 2
  %v2232 = vsel %vm176, %v2225, 0
  %2234 = vmatprep.subr.mxu0 0.0
  %2235 = vmatpush1.msra.mxu0 0.0
  %2236 = vmatprep.subr.mxu0 0.0
  %2237 = vmatpush1.msra.mxu0 0.0
  %2238 = vmatprep.subr.mxu0 0.0
  %2239 = vmatpush1.msra.mxu0 0.0
  %2240 = vmatprep.subr.mxu0 0.0
  %2241 = vmatpush1.msra.mxu0 0.0
  %2242 = vmatprep.subr.mxu0 0.0
  %2243 = vmatpush1.msra.mxu0 0.0
  %2244 = vmatprep.subr.mxu0 0.0
  %2245 = vmatpush1.msra.mxu0 0.0
  %2246 = vmatprep.subr.mxu0 0.0
  %2247 = vmatpush1.msra.mxu0 0.0
  %2248 = vmatprep.subr.mxu0 0.0
  %2249 = vmatpush1.msra.mxu0 0.0
  %2250 = vmatprep.subr.mxu0 0.0
  %2251 = vmatpush1.msra.mxu0 0.0
  %2252 = vmatprep.subr.mxu0 0.0
  %2253 = vmatpush1.msra.mxu0 0.0
  %2254 = vmatprep.subr.mxu0 0.0
  %2255 = vmatpush1.msra.mxu0 0.0
  %2256 = vmatprep.subr.mxu0 0.0
  %2257 = vmatpush1.msra.mxu0 0.0
  %2258 = vmatprep.subr.mxu0 0.0
  %2259 = vmatpush1.msra.mxu0 0.0
  %2260 = vmatprep.subr.mxu0 0.0
  %2261 = vmatpush1.msra.mxu0 0.0
  %2262 = vmatprep.subr.mxu0 0.0
  %2263 = vmatpush1.msra.mxu0 %v164
  %2264 = vmatprep.subr.mxu0 0.0
  %2265 = vmatpush1.msra.mxu0 %v163
  %2266 = vmatprep.subr.mxu0 0.0
  %2267 = vmatpush2.msra.mxu0 0.0
  %2268 = vmatprep.subr.mxu0 0.0
  %2269 = vmatpush2.msra.mxu0 0.0
  %2270 = vmatprep.subr.mxu0 0.0
  %2271 = vmatpush2.msra.mxu0 0.0
  %2272 = vmatprep.subr.mxu0 0.0
  %2273 = vmatpush2.msra.mxu0 0.0
  %2274 = vmatprep.subr.mxu0 0.0
  %2275 = vmatpush2.msra.mxu0 0.0
  %2276 = vmatprep.subr.mxu0 0.0
  %2277 = vmatpush2.msra.mxu0 0.0
  %2278 = vmatprep.subr.mxu0 0.0
  %2279 = vmatpush2.msra.mxu0 0.0
  %2280 = vmatprep.subr.mxu0 0.0
  %2281 = vmatpush2.msra.mxu0 0.0
  %2282 = vmatprep.subr.mxu0 0.0
  %2283 = vmatpush2.msra.mxu0 0.0
  %2284 = vmatprep.subr.mxu0 0.0
  %2285 = vmatpush2.msra.mxu0 0.0
  %2286 = vmatprep.subr.mxu0 0.0
  %2287 = vmatpush2.msra.mxu0 0.0
  %2288 = vmatprep.subr.mxu0 0.0
  %2289 = vmatpush2.msra.mxu0 0.0
  %2290 = vmatprep.subr.mxu0 0.0
  %2291 = vmatpush2.msra.mxu0 0.0
  %2292 = vmatprep.subr.mxu0 0.0
  %2293 = vmatpush2.msra.mxu0 0.0
  %2294 = vmatprep.subr.mxu0 0.0
  %2295 = vmatpush2.msra.mxu0 0.0
  %2296 = vmatprep.subr.mxu0 0.0
  %2297 = vmatpush2.msra.mxu0 0.0
  %2298 = vmatprep.mubr.f32.mxu0 0.0
  %2299 = vmatmul.mubr.f32.gmra.mxu0 %v2232
  %v2300 = vpop.f32.mrf.mxu0
  %v2301 = vadd.f32 %v2229, %v2300
  %v2302 = vpop.f32.mrf.mxu0
  %2303 = vdwg.mxu0
  %v2304 = vtanh.pop %v2301
  %2305 = vst.msk [vmem:[#allocation2 + $0xa] sm:$0x3] %vm251, %v2304
  %v2307 = vsel %vm54, %v2304, 0
  %2309 = vmatprep.subr.mxu0 0.0
  %2310 = vmatpush1.msra.mxu0 0.0
  %2311 = vmatprep.subr.mxu0 0.0
  %2312 = vmatpush1.msra.mxu0 0.0
  %2313 = vmatprep.subr.mxu0 0.0
  %2314 = vmatpush1.msra.mxu0 0.0
  %2315 = vmatprep.subr.mxu0 0.0
  %2316 = vmatpush1.msra.mxu0 0.0
  %2317 = vmatprep.subr.mxu0 0.0
  %2318 = vmatpush1.msra.mxu0 0.0
  %2319 = vmatprep.subr.mxu0 0.0
  %2320 = vmatpush1.msra.mxu0 0.0
  %2321 = vmatprep.subr.mxu0 0.0
  %2322 = vmatpush1.msra.mxu0 0.0
  %2323 = vmatprep.subr.mxu0 0.0
  %2324 = vmatpush1.msra.mxu0 0.0
  %2325 = vmatprep.subr.mxu0 0.0
  %2326 = vmatpush1.msra.mxu0 0.0
  %2327 = vmatprep.subr.mxu0 0.0
  %2328 = vmatpush1.msra.mxu0 0.0
  %2329 = vmatprep.subr.mxu0 0.0
  %2330 = vmatpush1.msra.mxu0 0.0
  %2331 = vmatprep.subr.mxu0 0.0
  %2332 = vmatpush1.msra.mxu0 0.0
  %2333 = vmatprep.subr.mxu0 0.0
  %2334 = vmatpush1.msra.mxu0 %v168
  %2335 = vmatprep.subr.mxu0 0.0
  %2336 = vmatpush1.msra.mxu0 %v167
  %2337 = vmatprep.subr.mxu0 0.0
  %2338 = vmatpush1.msra.mxu0 %v166
  %2339 = vmatprep.subr.mxu0 0.0
  %2340 = vmatpush1.msra.mxu0 %v165
  %2341 = vmatprep.subr.mxu0 0.0
  %2342 = vmatpush2.msra.mxu0 0.0
  %2343 = vmatprep.subr.mxu0 0.0
  %2344 = vmatpush2.msra.mxu0 0.0
  %2345 = vmatprep.subr.mxu0 0.0
  %2346 = vmatpush2.msra.mxu0 0.0
  %2347 = vmatprep.subr.mxu0 0.0
  %2348 = vmatpush2.msra.mxu0 0.0
  %2349 = vmatprep.subr.mxu0 0.0
  %2350 = vmatpush2.msra.mxu0 0.0
  %2351 = vmatprep.subr.mxu0 0.0
  %2352 = vmatpush2.msra.mxu0 0.0
  %2353 = vmatprep.subr.mxu0 0.0
  %2354 = vmatpush2.msra.mxu0 0.0
  %2355 = vmatprep.subr.mxu0 0.0
  %2356 = vmatpush2.msra.mxu0 0.0
  %2357 = vmatprep.subr.mxu0 0.0
  %2358 = vmatpush2.msra.mxu0 0.0
  %2359 = vmatprep.subr.mxu0 0.0
  %2360 = vmatpush2.msra.mxu0 0.0
  %2361 = vmatprep.subr.mxu0 0.0
  %2362 = vmatpush2.msra.mxu0 0.0
  %2363 = vmatprep.subr.mxu0 0.0
  %2364 = vmatpush2.msra.mxu0 0.0
  %2365 = vmatprep.subr.mxu0 0.0
  %2366 = vmatpush2.msra.mxu0 0.0
  %2367 = vmatprep.subr.mxu0 0.0
  %2368 = vmatpush2.msra.mxu0 0.0
  %2369 = vmatprep.subr.mxu0 0.0
  %2370 = vmatpush2.msra.mxu0 0.0
  %2371 = vmatprep.subr.mxu0 0.0
  %2372 = vmatpush2.msra.mxu0 0.0
  %2373 = vmatprep.mubr.f32.mxu0 0.0
  %2374 = vmatmul.mubr.f32.gmra.mxu0 %v2307
  %v2375 = vpop.f32.mrf.mxu0
  %v2376 = vadd.f32 %v257, %v2375
  %v2377 = vpop.f32.mrf.mxu0
  %2378 = vdwg.mxu0
  %v2379 = vtanh.pop %v2376
  %2380 = vmatprep.subr.mxu0 0.0
  %2381 = vmatpush1.msra.mxu0 0.0
  %2382 = vmatprep.subr.mxu0 0.0
  %2383 = vmatpush1.msra.mxu0 0.0
  %2384 = vmatprep.subr.mxu0 0.0
  %2385 = vmatpush1.msra.mxu0 0.0
  %2386 = vmatprep.subr.mxu0 0.0
  %2387 = vmatpush1.msra.mxu0 0.0
  %2388 = vmatprep.subr.mxu0 0.0
  %2389 = vmatpush1.msra.mxu0 0.0
  %2390 = vmatprep.subr.mxu0 0.0
  %2391 = vmatpush1.msra.mxu0 0.0
  %2392 = vmatprep.subr.mxu0 0.0
  %2393 = vmatpush1.msra.mxu0 0.0
  %2394 = vmatprep.subr.mxu0 0.0
  %2395 = vmatpush1.msra.mxu0 0.0
  %2396 = vmatprep.subr.mxu0 0.0
  %2397 = vmatpush1.msra.mxu0 0.0
  %2398 = vmatprep.subr.mxu0 0.0
  %2399 = vmatpush1.msra.mxu0 0.0
  %2400 = vmatprep.subr.mxu0 0.0
  %2401 = vmatpush1.msra.mxu0 0.0
  %2402 = vmatprep.subr.mxu0 0.0
  %2403 = vmatpush1.msra.mxu0 0.0
  %2404 = vmatprep.subr.mxu0 0.0
  %2405 = vmatpush1.msra.mxu0 %v173
  %2406 = vmatprep.subr.mxu0 0.0
  %2407 = vmatpush1.msra.mxu0 %v172
  %2408 = vmatprep.subr.mxu0 0.0
  %2409 = vmatpush1.msra.mxu0 %v171
  %2410 = vmatprep.subr.mxu0 0.0
  %2411 = vmatpush1.msra.mxu0 %v170
  %2412 = vmatprep.subr.mxu0 0.0
  %2413 = vmatpush2.msra.mxu0 0.0
  %2414 = vmatprep.subr.mxu0 0.0
  %2415 = vmatpush2.msra.mxu0 0.0
  %2416 = vmatprep.subr.mxu0 0.0
  %2417 = vmatpush2.msra.mxu0 0.0
  %2418 = vmatprep.subr.mxu0 0.0
  %2419 = vmatpush2.msra.mxu0 0.0
  %2420 = vmatprep.subr.mxu0 0.0
  %2421 = vmatpush2.msra.mxu0 0.0
  %2422 = vmatprep.subr.mxu0 0.0
  %2423 = vmatpush2.msra.mxu0 0.0
  %2424 = vmatprep.subr.mxu0 0.0
  %2425 = vmatpush2.msra.mxu0 0.0
  %2426 = vmatprep.subr.mxu0 0.0
  %2427 = vmatpush2.msra.mxu0 0.0
  %2428 = vmatprep.subr.mxu0 0.0
  %2429 = vmatpush2.msra.mxu0 0.0
  %2430 = vmatprep.subr.mxu0 0.0
  %2431 = vmatpush2.msra.mxu0 0.0
  %2432 = vmatprep.subr.mxu0 0.0
  %2433 = vmatpush2.msra.mxu0 0.0
  %2434 = vmatprep.subr.mxu0 0.0
  %2435 = vmatpush2.msra.mxu0 0.0
  %2436 = vmatprep.subr.mxu0 0.0
  %2437 = vmatpush2.msra.mxu0 0.0
  %2438 = vmatprep.subr.mxu0 0.0
  %2439 = vmatpush2.msra.mxu0 0.0
  %2440 = vmatprep.subr.mxu0 0.0
  %2441 = vmatpush2.msra.mxu0 0.0
  %2442 = vmatprep.subr.mxu0 0.0
  %2443 = vmatpush2.msra.mxu0 0.0
  %2444 = vmatprep.mubr.f32.mxu0 0.0
  %2445 = vmatmul.mubr.f32.gmra.mxu0 %v2307
  %v2446 = vpop.f32.mrf.mxu0
  %v2447 = vadd.f32 %v337, %v2446
  %v2448 = vpop.f32.mrf.mxu0
  %2449 = vdwg.mxu0
  %v2450 = vmax.f32 %v2447, 0.0
  %v2451 = vand.u32 2147483647, %v2447
  %v2452 = vsub.f32 0.0, %v2451
  %v2453 = vmul.f32 %v2452, 1.442695
  %v2454 = vpow.pop %v2453
  %v2455 = vadd.f32 %v2454, 1.0
  %v2456 = vlog2.pop %v2455
  %v2457 = vmul.f32 %v2456, 0.6931472
  %v2458 = vadd.f32 %v2450, %v2457
  %v2460 = vsel %vm176, %v2379, 0
  %2462 = vmatprep.subr.mxu0 0.0
  %2463 = vmatpush1.msra.mxu0 0.0
  %2464 = vmatprep.subr.mxu0 0.0
  %2465 = vmatpush1.msra.mxu0 0.0
  %2466 = vmatprep.subr.mxu0 0.0
  %2467 = vmatpush1.msra.mxu0 0.0
  %2468 = vmatprep.subr.mxu0 0.0
  %2469 = vmatpush1.msra.mxu0 0.0
  %2470 = vmatprep.subr.mxu0 0.0
  %2471 = vmatpush1.msra.mxu0 0.0
  %2472 = vmatprep.subr.mxu0 0.0
  %2473 = vmatpush1.msra.mxu0 0.0
  %2474 = vmatprep.subr.mxu0 0.0
  %2475 = vmatpush1.msra.mxu0 0.0
  %2476 = vmatprep.subr.mxu0 0.0
  %2477 = vmatpush1.msra.mxu0 0.0
  %2478 = vmatprep.subr.mxu0 0.0
  %2479 = vmatpush1.msra.mxu0 0.0
  %2480 = vmatprep.subr.mxu0 0.0
  %2481 = vmatpush1.msra.mxu0 0.0
  %2482 = vmatprep.subr.mxu0 0.0
  %2483 = vmatpush1.msra.mxu0 0.0
  %2484 = vmatprep.subr.mxu0 0.0
  %2485 = vmatpush1.msra.mxu0 0.0
  %2486 = vmatprep.subr.mxu0 0.0
  %2487 = vmatpush1.msra.mxu0 0.0
  %2488 = vmatprep.subr.mxu0 0.0
  %2489 = vmatpush1.msra.mxu0 0.0
  %2490 = vmatprep.subr.mxu0 0.0
  %2491 = vmatpush1.msra.mxu0 %v51
  %2492 = vmatprep.subr.mxu0 0.0
  %2493 = vmatpush1.msra.mxu0 %v50
  %2494 = vmatprep.subr.mxu0 0.0
  %2495 = vmatpush2.msra.mxu0 0.0
  %2496 = vmatprep.subr.mxu0 0.0
  %2497 = vmatpush2.msra.mxu0 0.0
  %2498 = vmatprep.subr.mxu0 0.0
  %2499 = vmatpush2.msra.mxu0 0.0
  %2500 = vmatprep.subr.mxu0 0.0
  %2501 = vmatpush2.msra.mxu0 0.0
  %2502 = vmatprep.subr.mxu0 0.0
  %2503 = vmatpush2.msra.mxu0 0.0
  %2504 = vmatprep.subr.mxu0 0.0
  %2505 = vmatpush2.msra.mxu0 0.0
  %2506 = vmatprep.subr.mxu0 0.0
  %2507 = vmatpush2.msra.mxu0 0.0
  %2508 = vmatprep.subr.mxu0 0.0
  %2509 = vmatpush2.msra.mxu0 0.0
  %2510 = vmatprep.subr.mxu0 0.0
  %2511 = vmatpush2.msra.mxu0 0.0
  %2512 = vmatprep.subr.mxu0 0.0
  %2513 = vmatpush2.msra.mxu0 0.0
  %2514 = vmatprep.subr.mxu0 0.0
  %2515 = vmatpush2.msra.mxu0 0.0
  %2516 = vmatprep.subr.mxu0 0.0
  %2517 = vmatpush2.msra.mxu0 0.0
  %2518 = vmatprep.subr.mxu0 0.0
  %2519 = vmatpush2.msra.mxu0 0.0
  %2520 = vmatprep.subr.mxu0 0.0
  %2521 = vmatpush2.msra.mxu0 0.0
  %2522 = vmatprep.subr.mxu0 0.0
  %2523 = vmatpush2.msra.mxu0 0.0
  %2524 = vmatprep.subr.mxu0 0.0
  %2525 = vmatpush2.msra.mxu0 0.0
  %2526 = vmatprep.mubr.f32.mxu0 0.0
  %2527 = vmatmul.mubr.f32.gmra.mxu0 %v2460
  %v2528 = vpop.f32.mrf.mxu0
  %v2529 = vadd.f32 0.0, %v2528
  %v2530 = vpop.f32.mrf.mxu0
  %2531 = vdwg.mxu0
  %v2532 = vmul.f32 %v2379, %v2379
  %v2533 = vsel %vm492, %v2532, 0.0
  %2534 = vadd.xlane.f32.xlu0 %v2533
  %v2535 = vpop.xlane.xlu0 %2534
  %v2536 = vrsqrt.pop %v2535
  %v2537 = vmul.f32 %v2535, %v2536
  %vm2538 = vcmp.eq.f32.partialorder %v2535, inf
  %v2539 = vsel %vm2538, %v2535, %v2537
  %vm2540 = vcmp.eq.f32.partialorder %v2535, 0.0
  %v2541 = vand.u32 %v2535, 2147483648
  %v2542 = vsel %vm2540, %v2541, %v2539
  %v2543 = vmul.f32 %v2542, %v70
  %v2544 = vadd.f32 %v2543, 1e-08
  %v2545 = vrcp.pop %v2544
  %v2546 = vmul.f32 %v2529, %v2545
  %2548 = vset.pattern.permute.xlu0 0
  %2549 = vperm.xlu0 %2548, %v2458
  %v2550 = vpop.permute.xlu0 %2549
  %v2552 = vmul.f32 %v2550, %v2546
  %v2553 = vsel %vm251, %v2552, -inf
  %2554 = vmax.xlane.f32.xlu0 %v2553
  %v2555 = vpop.xlane.xlu0 %2554
  %v2556 = vsub.f32 %v2552, %v2555
  %v2557 = vmul.f32 %v2556, 1.442695
  %v2558 = vpow.pop %v2557
  %v2559 = vsel %vm251, %v2558, 0.0
  %2560 = vadd.xlane.f32.xlu0 %v2559
  %v2561 = vpop.xlane.xlu0 %2560
  %v2562 = vrcp.pop %v2561
  %v2563 = vmul.f32 %v2558, %v2562
  %v2565 = vsel %vm54, %v2563, 0
  %2567 = vmatprep.subr.mxu0 0.0
  %2568 = vmatpush1.msra.mxu0 0.0
  %2569 = vmatprep.subr.mxu0 0.0
  %2570 = vmatpush1.msra.mxu0 0.0
  %2571 = vmatprep.subr.mxu0 0.0
  %2572 = vmatpush1.msra.mxu0 0.0
  %2573 = vmatprep.subr.mxu0 0.0
  %2574 = vmatpush1.msra.mxu0 0.0
  %2575 = vmatprep.subr.mxu0 0.0
  %2576 = vmatpush1.msra.mxu0 0.0
  %2577 = vmatprep.subr.mxu0 0.0
  %2578 = vmatpush1.msra.mxu0 0.0
  %2579 = vmatprep.subr.mxu0 0.0
  %2580 = vmatpush1.msra.mxu0 0.0
  %2581 = vmatprep.subr.mxu0 0.0
  %2582 = vmatpush1.msra.mxu0 0.0
  %2583 = vmatprep.subr.mxu0 0.0
  %2584 = vmatpush1.msra.mxu0 0.0
  %2585 = vmatprep.subr.mxu0 0.0
  %2586 = vmatpush1.msra.mxu0 0.0
  %2587 = vmatprep.subr.mxu0 0.0
  %2588 = vmatpush1.msra.mxu0 0.0
  %2589 = vmatprep.subr.mxu0 0.0
  %2590 = vmatpush1.msra.mxu0 0.0
  %2591 = vmatprep.subr.mxu0 0.0
  %2592 = vmatpush1.msra.mxu0 %v49
  %2593 = vmatprep.subr.mxu0 0.0
  %2594 = vmatpush1.msra.mxu0 %v48
  %2595 = vmatprep.subr.mxu0 0.0
  %2596 = vmatpush1.msra.mxu0 %v47
  %2597 = vmatprep.subr.mxu0 0.0
  %2598 = vmatpush1.msra.mxu0 %v46
  %2599 = vmatprep.subr.mxu0 0.0
  %2600 = vmatpush2.msra.mxu0 0.0
  %2601 = vmatprep.subr.mxu0 0.0
  %2602 = vmatpush2.msra.mxu0 0.0
  %2603 = vmatprep.subr.mxu0 0.0
  %2604 = vmatpush2.msra.mxu0 0.0
  %2605 = vmatprep.subr.mxu0 0.0
  %2606 = vmatpush2.msra.mxu0 0.0
  %2607 = vmatprep.subr.mxu0 0.0
  %2608 = vmatpush2.msra.mxu0 0.0
  %2609 = vmatprep.subr.mxu0 0.0
  %2610 = vmatpush2.msra.mxu0 0.0
  %2611 = vmatprep.subr.mxu0 0.0
  %2612 = vmatpush2.msra.mxu0 0.0
  %2613 = vmatprep.subr.mxu0 0.0
  %2614 = vmatpush2.msra.mxu0 0.0
  %2615 = vmatprep.subr.mxu0 0.0
  %2616 = vmatpush2.msra.mxu0 0.0
  %2617 = vmatprep.subr.mxu0 0.0
  %2618 = vmatpush2.msra.mxu0 0.0
  %2619 = vmatprep.subr.mxu0 0.0
  %2620 = vmatpush2.msra.mxu0 0.0
  %2621 = vmatprep.subr.mxu0 0.0
  %2622 = vmatpush2.msra.mxu0 0.0
  %2623 = vmatprep.subr.mxu0 0.0
  %2624 = vmatpush2.msra.mxu0 0.0
  %2625 = vmatprep.subr.mxu0 0.0
  %2626 = vmatpush2.msra.mxu0 0.0
  %2627 = vmatprep.subr.mxu0 0.0
  %2628 = vmatpush2.msra.mxu0 0.0
  %2629 = vmatprep.subr.mxu0 0.0
  %2630 = vmatpush2.msra.mxu0 0.0
  %2631 = vmatprep.mubr.f32.mxu0 0.0
  %2632 = vmatmul.mubr.f32.gmra.mxu0 %v2565
  %v2633 = vpop.f32.mrf.mxu0
  %v2634 = vadd.f32 0.0, %v2633
  %v2635 = vpop.f32.mrf.mxu0
  %2636 = vdwg.mxu0
  %v2637 = vrot.slane %v160, 4
  %v2640 = vsel %vm176, %v2634, 0
  %2642 = vmatprep.subr.mxu0 0.0
  %2643 = vmatpush1.msra.mxu0 0.0
  %2644 = vmatprep.subr.mxu0 0.0
  %2645 = vmatpush1.msra.mxu0 0.0
  %2646 = vmatprep.subr.mxu0 0.0
  %2647 = vmatpush1.msra.mxu0 0.0
  %2648 = vmatprep.subr.mxu0 0.0
  %2649 = vmatpush1.msra.mxu0 0.0
  %2650 = vmatprep.subr.mxu0 0.0
  %2651 = vmatpush1.msra.mxu0 0.0
  %2652 = vmatprep.subr.mxu0 0.0
  %2653 = vmatpush1.msra.mxu0 0.0
  %2654 = vmatprep.subr.mxu0 0.0
  %2655 = vmatpush1.msra.mxu0 0.0
  %2656 = vmatprep.subr.mxu0 0.0
  %2657 = vmatpush1.msra.mxu0 0.0
  %2658 = vmatprep.subr.mxu0 0.0
  %2659 = vmatpush1.msra.mxu0 0.0
  %2660 = vmatprep.subr.mxu0 0.0
  %2661 = vmatpush1.msra.mxu0 0.0
  %2662 = vmatprep.subr.mxu0 0.0
  %2663 = vmatpush1.msra.mxu0 0.0
  %2664 = vmatprep.subr.mxu0 0.0
  %2665 = vmatpush1.msra.mxu0 0.0
  %2666 = vmatprep.subr.mxu0 0.0
  %2667 = vmatpush1.msra.mxu0 0.0
  %2668 = vmatprep.subr.mxu0 0.0
  %2669 = vmatpush1.msra.mxu0 0.0
  %2670 = vmatprep.subr.mxu0 0.0
  %2671 = vmatpush1.msra.mxu0 %v164
  %2672 = vmatprep.subr.mxu0 0.0
  %2673 = vmatpush1.msra.mxu0 %v163
  %2674 = vmatprep.subr.mxu0 0.0
  %2675 = vmatpush2.msra.mxu0 0.0
  %2676 = vmatprep.subr.mxu0 0.0
  %2677 = vmatpush2.msra.mxu0 0.0
  %2678 = vmatprep.subr.mxu0 0.0
  %2679 = vmatpush2.msra.mxu0 0.0
  %2680 = vmatprep.subr.mxu0 0.0
  %2681 = vmatpush2.msra.mxu0 0.0
  %2682 = vmatprep.subr.mxu0 0.0
  %2683 = vmatpush2.msra.mxu0 0.0
  %2684 = vmatprep.subr.mxu0 0.0
  %2685 = vmatpush2.msra.mxu0 0.0
  %2686 = vmatprep.subr.mxu0 0.0
  %2687 = vmatpush2.msra.mxu0 0.0
  %2688 = vmatprep.subr.mxu0 0.0
  %2689 = vmatpush2.msra.mxu0 0.0
  %2690 = vmatprep.subr.mxu0 0.0
  %2691 = vmatpush2.msra.mxu0 0.0
  %2692 = vmatprep.subr.mxu0 0.0
  %2693 = vmatpush2.msra.mxu0 0.0
  %2694 = vmatprep.subr.mxu0 0.0
  %2695 = vmatpush2.msra.mxu0 0.0
  %2696 = vmatprep.subr.mxu0 0.0
  %2697 = vmatpush2.msra.mxu0 0.0
  %2698 = vmatprep.subr.mxu0 0.0
  %2699 = vmatpush2.msra.mxu0 0.0
  %2700 = vmatprep.subr.mxu0 0.0
  %2701 = vmatpush2.msra.mxu0 0.0
  %2702 = vmatprep.subr.mxu0 0.0
  %2703 = vmatpush2.msra.mxu0 0.0
  %2704 = vmatprep.subr.mxu0 0.0
  %2705 = vmatpush2.msra.mxu0 0.0
  %2706 = vmatprep.mubr.f32.mxu0 0.0
  %2707 = vmatmul.mubr.f32.gmra.mxu0 %v2640
  %v2708 = vpop.f32.mrf.mxu0
  %v2709 = vadd.f32 %v2637, %v2708
  %v2710 = vpop.f32.mrf.mxu0
  %2711 = vdwg.mxu0
  %v2712 = vtanh.pop %v2709
  %2713 = vst.msk [vmem:[#allocation2 + $0xc] sm:$0x3] %vm251, %v2712
  %v2715 = vsel %vm54, %v2712, 0
  %2717 = vmatprep.subr.mxu0 0.0
  %2718 = vmatpush1.msra.mxu0 0.0
  %2719 = vmatprep.subr.mxu0 0.0
  %2720 = vmatpush1.msra.mxu0 0.0
  %2721 = vmatprep.subr.mxu0 0.0
  %2722 = vmatpush1.msra.mxu0 0.0
  %2723 = vmatprep.subr.mxu0 0.0
  %2724 = vmatpush1.msra.mxu0 0.0
  %2725 = vmatprep.subr.mxu0 0.0
  %2726 = vmatpush1.msra.mxu0 0.0
  %2727 = vmatprep.subr.mxu0 0.0
  %2728 = vmatpush1.msra.mxu0 0.0
  %2729 = vmatprep.subr.mxu0 0.0
  %2730 = vmatpush1.msra.mxu0 0.0
  %2731 = vmatprep.subr.mxu0 0.0
  %2732 = vmatpush1.msra.mxu0 0.0
  %2733 = vmatprep.subr.mxu0 0.0
  %2734 = vmatpush1.msra.mxu0 0.0
  %2735 = vmatprep.subr.mxu0 0.0
  %2736 = vmatpush1.msra.mxu0 0.0
  %2737 = vmatprep.subr.mxu0 0.0
  %2738 = vmatpush1.msra.mxu0 0.0
  %2739 = vmatprep.subr.mxu0 0.0
  %2740 = vmatpush1.msra.mxu0 0.0
  %2741 = vmatprep.subr.mxu0 0.0
  %2742 = vmatpush1.msra.mxu0 %v168
  %2743 = vmatprep.subr.mxu0 0.0
  %2744 = vmatpush1.msra.mxu0 %v167
  %2745 = vmatprep.subr.mxu0 0.0
  %2746 = vmatpush1.msra.mxu0 %v166
  %2747 = vmatprep.subr.mxu0 0.0
  %2748 = vmatpush1.msra.mxu0 %v165
  %2749 = vmatprep.subr.mxu0 0.0
  %2750 = vmatpush2.msra.mxu0 0.0
  %2751 = vmatprep.subr.mxu0 0.0
  %2752 = vmatpush2.msra.mxu0 0.0
  %2753 = vmatprep.subr.mxu0 0.0
  %2754 = vmatpush2.msra.mxu0 0.0
  %2755 = vmatprep.subr.mxu0 0.0
  %2756 = vmatpush2.msra.mxu0 0.0
  %2757 = vmatprep.subr.mxu0 0.0
  %2758 = vmatpush2.msra.mxu0 0.0
  %2759 = vmatprep.subr.mxu0 0.0
  %2760 = vmatpush2.msra.mxu0 0.0
  %2761 = vmatprep.subr.mxu0 0.0
  %2762 = vmatpush2.msra.mxu0 0.0
  %2763 = vmatprep.subr.mxu0 0.0
  %2764 = vmatpush2.msra.mxu0 0.0
  %2765 = vmatprep.subr.mxu0 0.0
  %2766 = vmatpush2.msra.mxu0 0.0
  %2767 = vmatprep.subr.mxu0 0.0
  %2768 = vmatpush2.msra.mxu0 0.0
  %2769 = vmatprep.subr.mxu0 0.0
  %2770 = vmatpush2.msra.mxu0 0.0
  %2771 = vmatprep.subr.mxu0 0.0
  %2772 = vmatpush2.msra.mxu0 0.0
  %2773 = vmatprep.subr.mxu0 0.0
  %2774 = vmatpush2.msra.mxu0 0.0
  %2775 = vmatprep.subr.mxu0 0.0
  %2776 = vmatpush2.msra.mxu0 0.0
  %2777 = vmatprep.subr.mxu0 0.0
  %2778 = vmatpush2.msra.mxu0 0.0
  %2779 = vmatprep.subr.mxu0 0.0
  %2780 = vmatpush2.msra.mxu0 0.0
  %2781 = vmatprep.mubr.f32.mxu0 0.0
  %2782 = vmatmul.mubr.f32.gmra.mxu0 %v2715
  %v2783 = vpop.f32.mrf.mxu0
  %v2784 = vadd.f32 %v257, %v2783
  %v2785 = vpop.f32.mrf.mxu0
  %2786 = vdwg.mxu0
  %v2787 = vtanh.pop %v2784
  %2788 = vmatprep.subr.mxu0 0.0
  %2789 = vmatpush1.msra.mxu0 0.0
  %2790 = vmatprep.subr.mxu0 0.0
  %2791 = vmatpush1.msra.mxu0 0.0
  %2792 = vmatprep.subr.mxu0 0.0
  %2793 = vmatpush1.msra.mxu0 0.0
  %2794 = vmatprep.subr.mxu0 0.0
  %2795 = vmatpush1.msra.mxu0 0.0
  %2796 = vmatprep.subr.mxu0 0.0
  %2797 = vmatpush1.msra.mxu0 0.0
  %2798 = vmatprep.subr.mxu0 0.0
  %2799 = vmatpush1.msra.mxu0 0.0
  %2800 = vmatprep.subr.mxu0 0.0
  %2801 = vmatpush1.msra.mxu0 0.0
  %2802 = vmatprep.subr.mxu0 0.0
  %2803 = vmatpush1.msra.mxu0 0.0
  %2804 = vmatprep.subr.mxu0 0.0
  %2805 = vmatpush1.msra.mxu0 0.0
  %2806 = vmatprep.subr.mxu0 0.0
  %2807 = vmatpush1.msra.mxu0 0.0
  %2808 = vmatprep.subr.mxu0 0.0
  %2809 = vmatpush1.msra.mxu0 0.0
  %2810 = vmatprep.subr.mxu0 0.0
  %2811 = vmatpush1.msra.mxu0 0.0
  %2812 = vmatprep.subr.mxu0 0.0
  %2813 = vmatpush1.msra.mxu0 %v173
  %2814 = vmatprep.subr.mxu0 0.0
  %2815 = vmatpush1.msra.mxu0 %v172
  %2816 = vmatprep.subr.mxu0 0.0
  %2817 = vmatpush1.msra.mxu0 %v171
  %2818 = vmatprep.subr.mxu0 0.0
  %2819 = vmatpush1.msra.mxu0 %v170
  %2820 = vmatprep.subr.mxu0 0.0
  %2821 = vmatpush2.msra.mxu0 0.0
  %2822 = vmatprep.subr.mxu0 0.0
  %2823 = vmatpush2.msra.mxu0 0.0
  %2824 = vmatprep.subr.mxu0 0.0
  %2825 = vmatpush2.msra.mxu0 0.0
  %2826 = vmatprep.subr.mxu0 0.0
  %2827 = vmatpush2.msra.mxu0 0.0
  %2828 = vmatprep.subr.mxu0 0.0
  %2829 = vmatpush2.msra.mxu0 0.0
  %2830 = vmatprep.subr.mxu0 0.0
  %2831 = vmatpush2.msra.mxu0 0.0
  %2832 = vmatprep.subr.mxu0 0.0
  %2833 = vmatpush2.msra.mxu0 0.0
  %2834 = vmatprep.subr.mxu0 0.0
  %2835 = vmatpush2.msra.mxu0 0.0
  %2836 = vmatprep.subr.mxu0 0.0
  %2837 = vmatpush2.msra.mxu0 0.0
  %2838 = vmatprep.subr.mxu0 0.0
  %2839 = vmatpush2.msra.mxu0 0.0
  %2840 = vmatprep.subr.mxu0 0.0
  %2841 = vmatpush2.msra.mxu0 0.0
  %2842 = vmatprep.subr.mxu0 0.0
  %2843 = vmatpush2.msra.mxu0 0.0
  %2844 = vmatprep.subr.mxu0 0.0
  %2845 = vmatpush2.msra.mxu0 0.0
  %2846 = vmatprep.subr.mxu0 0.0
  %2847 = vmatpush2.msra.mxu0 0.0
  %2848 = vmatprep.subr.mxu0 0.0
  %2849 = vmatpush2.msra.mxu0 0.0
  %2850 = vmatprep.subr.mxu0 0.0
  %2851 = vmatpush2.msra.mxu0 0.0
  %2852 = vmatprep.mubr.f32.mxu0 0.0
  %2853 = vmatmul.mubr.f32.gmra.mxu0 %v2715
  %v2854 = vpop.f32.mrf.mxu0
  %v2855 = vadd.f32 %v337, %v2854
  %v2856 = vpop.f32.mrf.mxu0
  %2857 = vdwg.mxu0
  %v2858 = vmax.f32 %v2855, 0.0
  %v2859 = vand.u32 2147483647, %v2855
  %v2860 = vsub.f32 0.0, %v2859
  %v2861 = vmul.f32 %v2860, 1.442695
  %v2862 = vpow.pop %v2861
  %v2863 = vadd.f32 %v2862, 1.0
  %v2864 = vlog2.pop %v2863
  %v2865 = vmul.f32 %v2864, 0.6931472
  %v2866 = vadd.f32 %v2858, %v2865
  %v2868 = vsel %vm176, %v2787, 0
  %2870 = vmatprep.subr.mxu0 0.0
  %2871 = vmatpush1.msra.mxu0 0.0
  %2872 = vmatprep.subr.mxu0 0.0
  %2873 = vmatpush1.msra.mxu0 0.0
  %2874 = vmatprep.subr.mxu0 0.0
  %2875 = vmatpush1.msra.mxu0 0.0
  %2876 = vmatprep.subr.mxu0 0.0
  %2877 = vmatpush1.msra.mxu0 0.0
  %2878 = vmatprep.subr.mxu0 0.0
  %2879 = vmatpush1.msra.mxu0 0.0
  %2880 = vmatprep.subr.mxu0 0.0
  %2881 = vmatpush1.msra.mxu0 0.0
  %2882 = vmatprep.subr.mxu0 0.0
  %2883 = vmatpush1.msra.mxu0 0.0
  %2884 = vmatprep.subr.mxu0 0.0
  %2885 = vmatpush1.msra.mxu0 0.0
  %2886 = vmatprep.subr.mxu0 0.0
  %2887 = vmatpush1.msra.mxu0 0.0
  %2888 = vmatprep.subr.mxu0 0.0
  %2889 = vmatpush1.msra.mxu0 0.0
  %2890 = vmatprep.subr.mxu0 0.0
  %2891 = vmatpush1.msra.mxu0 0.0
  %2892 = vmatprep.subr.mxu0 0.0
  %2893 = vmatpush1.msra.mxu0 0.0
  %2894 = vmatprep.subr.mxu0 0.0
  %2895 = vmatpush1.msra.mxu0 0.0
  %2896 = vmatprep.subr.mxu0 0.0
  %2897 = vmatpush1.msra.mxu0 0.0
  %2898 = vmatprep.subr.mxu0 0.0
  %2899 = vmatpush1.msra.mxu0 %v51
  %2900 = vmatprep.subr.mxu0 0.0
  %2901 = vmatpush1.msra.mxu0 %v50
  %2902 = vmatprep.subr.mxu0 0.0
  %2903 = vmatpush2.msra.mxu0 0.0
  %2904 = vmatprep.subr.mxu0 0.0
  %2905 = vmatpush2.msra.mxu0 0.0
  %2906 = vmatprep.subr.mxu0 0.0
  %2907 = vmatpush2.msra.mxu0 0.0
  %2908 = vmatprep.subr.mxu0 0.0
  %2909 = vmatpush2.msra.mxu0 0.0
  %2910 = vmatprep.subr.mxu0 0.0
  %2911 = vmatpush2.msra.mxu0 0.0
  %2912 = vmatprep.subr.mxu0 0.0
  %2913 = vmatpush2.msra.mxu0 0.0
  %2914 = vmatprep.subr.mxu0 0.0
  %2915 = vmatpush2.msra.mxu0 0.0
  %2916 = vmatprep.subr.mxu0 0.0
  %2917 = vmatpush2.msra.mxu0 0.0
  %2918 = vmatprep.subr.mxu0 0.0
  %2919 = vmatpush2.msra.mxu0 0.0
  %2920 = vmatprep.subr.mxu0 0.0
  %2921 = vmatpush2.msra.mxu0 0.0
  %2922 = vmatprep.subr.mxu0 0.0
  %2923 = vmatpush2.msra.mxu0 0.0
  %2924 = vmatprep.subr.mxu0 0.0
  %2925 = vmatpush2.msra.mxu0 0.0
  %2926 = vmatprep.subr.mxu0 0.0
  %2927 = vmatpush2.msra.mxu0 0.0
  %2928 = vmatprep.subr.mxu0 0.0
  %2929 = vmatpush2.msra.mxu0 0.0
  %2930 = vmatprep.subr.mxu0 0.0
  %2931 = vmatpush2.msra.mxu0 0.0
  %2932 = vmatprep.subr.mxu0 0.0
  %2933 = vmatpush2.msra.mxu0 0.0
  %2934 = vmatprep.mubr.f32.mxu0 0.0
  %2935 = vmatmul.mubr.f32.gmra.mxu0 %v2868
  %v2936 = vpop.f32.mrf.mxu0
  %v2937 = vadd.f32 0.0, %v2936
  %v2938 = vpop.f32.mrf.mxu0
  %2939 = vdwg.mxu0
  %v2940 = vmul.f32 %v2787, %v2787
  %v2941 = vsel %vm492, %v2940, 0.0
  %2942 = vadd.xlane.f32.xlu0 %v2941
  %v2943 = vpop.xlane.xlu0 %2942
  %v2944 = vrsqrt.pop %v2943
  %v2945 = vmul.f32 %v2943, %v2944
  %vm2946 = vcmp.eq.f32.partialorder %v2943, inf
  %v2947 = vsel %vm2946, %v2943, %v2945
  %vm2948 = vcmp.eq.f32.partialorder %v2943, 0.0
  %v2949 = vand.u32 %v2943, 2147483648
  %v2950 = vsel %vm2948, %v2949, %v2947
  %v2951 = vmul.f32 %v2950, %v70
  %v2952 = vadd.f32 %v2951, 1e-08
  %v2953 = vrcp.pop %v2952
  %v2954 = vmul.f32 %v2937, %v2953
  %2956 = vset.pattern.permute.xlu0 0
  %2957 = vperm.xlu0 %2956, %v2866
  %v2958 = vpop.permute.xlu0 %2957
  %v2960 = vmul.f32 %v2958, %v2954
  %v2961 = vsel %vm251, %v2960, -inf
  %2962 = vmax.xlane.f32.xlu0 %v2961
  %v2963 = vpop.xlane.xlu0 %2962
  %v2964 = vsub.f32 %v2960, %v2963
  %v2965 = vmul.f32 %v2964, 1.442695
  %v2966 = vpow.pop %v2965
  %v2967 = vsel %vm251, %v2966, 0.0
  %2968 = vadd.xlane.f32.xlu0 %v2967
  %v2969 = vpop.xlane.xlu0 %2968
  %v2970 = vrcp.pop %v2969
  %v2971 = vmul.f32 %v2966, %v2970
  %v2973 = vsel %vm54, %v2971, 0
  %2975 = vmatprep.subr.mxu0 0.0
  %2976 = vmatpush1.msra.mxu0 0.0
  %2977 = vmatprep.subr.mxu0 0.0
  %2978 = vmatpush1.msra.mxu0 0.0
  %2979 = vmatprep.subr.mxu0 0.0
  %2980 = vmatpush1.msra.mxu0 0.0
  %2981 = vmatprep.subr.mxu0 0.0
  %2982 = vmatpush1.msra.mxu0 0.0
  %2983 = vmatprep.subr.mxu0 0.0
  %2984 = vmatpush1.msra.mxu0 0.0
  %2985 = vmatprep.subr.mxu0 0.0
  %2986 = vmatpush1.msra.mxu0 0.0
  %2987 = vmatprep.subr.mxu0 0.0
  %2988 = vmatpush1.msra.mxu0 0.0
  %2989 = vmatprep.subr.mxu0 0.0
  %2990 = vmatpush1.msra.mxu0 0.0
  %2991 = vmatprep.subr.mxu0 0.0
  %2992 = vmatpush1.msra.mxu0 0.0
  %2993 = vmatprep.subr.mxu0 0.0
  %2994 = vmatpush1.msra.mxu0 0.0
  %2995 = vmatprep.subr.mxu0 0.0
  %2996 = vmatpush1.msra.mxu0 0.0
  %2997 = vmatprep.subr.mxu0 0.0
  %2998 = vmatpush1.msra.mxu0 0.0
  %2999 = vmatprep.subr.mxu0 0.0
  %3000 = vmatpush1.msra.mxu0 %v49
  %3001 = vmatprep.subr.mxu0 0.0
  %3002 = vmatpush1.msra.mxu0 %v48
  %3003 = vmatprep.subr.mxu0 0.0
  %3004 = vmatpush1.msra.mxu0 %v47
  %3005 = vmatprep.subr.mxu0 0.0
  %3006 = vmatpush1.msra.mxu0 %v46
  %3007 = vmatprep.subr.mxu0 0.0
  %3008 = vmatpush2.msra.mxu0 0.0
  %3009 = vmatprep.subr.mxu0 0.0
  %3010 = vmatpush2.msra.mxu0 0.0
  %3011 = vmatprep.subr.mxu0 0.0
  %3012 = vmatpush2.msra.mxu0 0.0
  %3013 = vmatprep.subr.mxu0 0.0
  %3014 = vmatpush2.msra.mxu0 0.0
  %3015 = vmatprep.subr.mxu0 0.0
  %3016 = vmatpush2.msra.mxu0 0.0
  %3017 = vmatprep.subr.mxu0 0.0
  %3018 = vmatpush2.msra.mxu0 0.0
  %3019 = vmatprep.subr.mxu0 0.0
  %3020 = vmatpush2.msra.mxu0 0.0
  %3021 = vmatprep.subr.mxu0 0.0
  %3022 = vmatpush2.msra.mxu0 0.0
  %3023 = vmatprep.subr.mxu0 0.0
  %3024 = vmatpush2.msra.mxu0 0.0
  %3025 = vmatprep.subr.mxu0 0.0
  %3026 = vmatpush2.msra.mxu0 0.0
  %3027 = vmatprep.subr.mxu0 0.0
  %3028 = vmatpush2.msra.mxu0 0.0
  %3029 = vmatprep.subr.mxu0 0.0
  %3030 = vmatpush2.msra.mxu0 0.0
  %3031 = vmatprep.subr.mxu0 0.0
  %3032 = vmatpush2.msra.mxu0 0.0
  %3033 = vmatprep.subr.mxu0 0.0
  %3034 = vmatpush2.msra.mxu0 0.0
  %3035 = vmatprep.subr.mxu0 0.0
  %3036 = vmatpush2.msra.mxu0 0.0
  %3037 = vmatprep.subr.mxu0 0.0
  %3038 = vmatpush2.msra.mxu0 0.0
  %3039 = vmatprep.mubr.f32.mxu0 0.0
  %3040 = vmatmul.mubr.f32.gmra.mxu0 %v2973
  %v3041 = vpop.f32.mrf.mxu0
  %v3042 = vadd.f32 0.0, %v3041
  %v3043 = vpop.f32.mrf.mxu0
  %3044 = vdwg.mxu0
  %v3045 = vrot.slane %v160, 6
  %v3048 = vsel %vm176, %v3042, 0
  %3050 = vmatprep.subr.mxu0 0.0
  %3051 = vmatpush1.msra.mxu0 0.0
  %3052 = vmatprep.subr.mxu0 0.0
  %3053 = vmatpush1.msra.mxu0 0.0
  %3054 = vmatprep.subr.mxu0 0.0
  %3055 = vmatpush1.msra.mxu0 0.0
  %3056 = vmatprep.subr.mxu0 0.0
  %3057 = vmatpush1.msra.mxu0 0.0
  %3058 = vmatprep.subr.mxu0 0.0
  %3059 = vmatpush1.msra.mxu0 0.0
  %3060 = vmatprep.subr.mxu0 0.0
  %3061 = vmatpush1.msra.mxu0 0.0
  %3062 = vmatprep.subr.mxu0 0.0
  %3063 = vmatpush1.msra.mxu0 0.0
  %3064 = vmatprep.subr.mxu0 0.0
  %3065 = vmatpush1.msra.mxu0 0.0
  %3066 = vmatprep.subr.mxu0 0.0
  %3067 = vmatpush1.msra.mxu0 0.0
  %3068 = vmatprep.subr.mxu0 0.0
  %3069 = vmatpush1.msra.mxu0 0.0
  %3070 = vmatprep.subr.mxu0 0.0
  %3071 = vmatpush1.msra.mxu0 0.0
  %3072 = vmatprep.subr.mxu0 0.0
  %3073 = vmatpush1.msra.mxu0 0.0
  %3074 = vmatprep.subr.mxu0 0.0
  %3075 = vmatpush1.msra.mxu0 0.0
  %3076 = vmatprep.subr.mxu0 0.0
  %3077 = vmatpush1.msra.mxu0 0.0
  %3078 = vmatprep.subr.mxu0 0.0
  %3079 = vmatpush1.msra.mxu0 %v164
  %3080 = vmatprep.subr.mxu0 0.0
  %3081 = vmatpush1.msra.mxu0 %v163
  %3082 = vmatprep.subr.mxu0 0.0
  %3083 = vmatpush2.msra.mxu0 0.0
  %3084 = vmatprep.subr.mxu0 0.0
  %3085 = vmatpush2.msra.mxu0 0.0
  %3086 = vmatprep.subr.mxu0 0.0
  %3087 = vmatpush2.msra.mxu0 0.0
  %3088 = vmatprep.subr.mxu0 0.0
  %3089 = vmatpush2.msra.mxu0 0.0
  %3090 = vmatprep.subr.mxu0 0.0
  %3091 = vmatpush2.msra.mxu0 0.0
  %3092 = vmatprep.subr.mxu0 0.0
  %3093 = vmatpush2.msra.mxu0 0.0
  %3094 = vmatprep.subr.mxu0 0.0
  %3095 = vmatpush2.msra.mxu0 0.0
  %3096 = vmatprep.subr.mxu0 0.0
  %3097 = vmatpush2.msra.mxu0 0.0
  %3098 = vmatprep.subr.mxu0 0.0
  %3099 = vmatpush2.msra.mxu0 0.0
  %3100 = vmatprep.subr.mxu0 0.0
  %3101 = vmatpush2.msra.mxu0 0.0
  %3102 = vmatprep.subr.mxu0 0.0
  %3103 = vmatpush2.msra.mxu0 0.0
  %3104 = vmatprep.subr.mxu0 0.0
  %3105 = vmatpush2.msra.mxu0 0.0
  %3106 = vmatprep.subr.mxu0 0.0
  %3107 = vmatpush2.msra.mxu0 0.0
  %3108 = vmatprep.subr.mxu0 0.0
  %3109 = vmatpush2.msra.mxu0 0.0
  %3110 = vmatprep.subr.mxu0 0.0
  %3111 = vmatpush2.msra.mxu0 0.0
  %3112 = vmatprep.subr.mxu0 0.0
  %3113 = vmatpush2.msra.mxu0 0.0
  %3114 = vmatprep.mubr.f32.mxu0 0.0
  %3115 = vmatmul.mubr.f32.gmra.mxu0 %v3048
  %v3116 = vpop.f32.mrf.mxu0
  %v3117 = vadd.f32 %v3045, %v3116
  %v3118 = vpop.f32.mrf.mxu0
  %3119 = vdwg.mxu0
  %v3120 = vtanh.pop %v3117
  %3121 = vst.msk [vmem:[#allocation2 + $0xe] sm:$0x3] %vm251, %v3120
  %v3122 = vld [vmem:[#allocation2] sm:$0xff]
  %v3123 = vld [vmem:[#allocation2 + $0x8] sm:$0xff]
  %v3124 = vld [vmem:[%s11] sm:$0xff]
  %v3125 = vld [vmem:[%s11 + $0x8] sm:$0xff]
  %v3126 = vld [vmem:[%s11 + $0x10] sm:$0xff]
  %v3127 = vld [vmem:[%s11 + $0x18] sm:$0xff]
  %v3128 = vld [vmem:[%s12] sm:$0x1]
  %v3130 = vlaneseq
  %v3131 = vshrl.u32 %v3130, 7
  %v3132 = vsub.s32 0, %v3131
  %v3133 = vrot.slane %v3128, %v3132
  %v3136 = vsel %vm54, %v3122, 0
  %v3139 = vsel %vm54, %v3123, 0
  %3141 = vmatprep.subr.mxu0 0.0
  %3142 = vmatpush1.msra.mxu0 0.0
  %3143 = vmatprep.subr.mxu0 0.0
  %3144 = vmatpush1.msra.mxu0 0.0
  %3145 = vmatprep.subr.mxu0 0.0
  %3146 = vmatpush1.msra.mxu0 0.0
  %3147 = vmatprep.subr.mxu0 0.0
  %3148 = vmatpush1.msra.mxu0 0.0
  %3149 = vmatprep.subr.mxu0 0.0
  %3150 = vmatpush1.msra.mxu0 0.0
  %3151 = vmatprep.subr.mxu0 0.0
  %3152 = vmatpush1.msra.mxu0 0.0
  %3153 = vmatprep.subr.mxu0 0.0
  %3154 = vmatpush1.msra.mxu0 0.0
  %3155 = vmatprep.subr.mxu0 0.0
  %3156 = vmatpush1.msra.mxu0 0.0
  %3157 = vmatprep.subr.mxu0 0.0
  %3158 = vmatpush1.msra.mxu0 0.0
  %3159 = vmatprep.subr.mxu0 0.0
  %3160 = vmatpush1.msra.mxu0 0.0
  %3161 = vmatprep.subr.mxu0 0.0
  %3162 = vmatpush1.msra.mxu0 0.0
  %3163 = vmatprep.subr.mxu0 0.0
  %3164 = vmatpush1.msra.mxu0 0.0
  %3165 = vmatprep.subr.mxu0 0.0
  %3166 = vmatpush1.msra.mxu0 %v3127
  %3167 = vmatprep.subr.mxu0 0.0
  %3168 = vmatpush1.msra.mxu0 %v3126
  %3169 = vmatprep.subr.mxu0 0.0
  %3170 = vmatpush1.msra.mxu0 %v3125
  %3171 = vmatprep.subr.mxu0 0.0
  %3172 = vmatpush1.msra.mxu0 %v3124
  %3173 = vmatprep.subr.mxu0 0.0
  %3174 = vmatpush2.msra.mxu0 0.0
  %3175 = vmatprep.subr.mxu0 0.0
  %3176 = vmatpush2.msra.mxu0 0.0
  %3177 = vmatprep.subr.mxu0 0.0
  %3178 = vmatpush2.msra.mxu0 0.0
  %3179 = vmatprep.subr.mxu0 0.0
  %3180 = vmatpush2.msra.mxu0 0.0
  %3181 = vmatprep.subr.mxu0 0.0
  %3182 = vmatpush2.msra.mxu0 0.0
  %3183 = vmatprep.subr.mxu0 0.0
  %3184 = vmatpush2.msra.mxu0 0.0
  %3185 = vmatprep.subr.mxu0 0.0
  %3186 = vmatpush2.msra.mxu0 0.0
  %3187 = vmatprep.subr.mxu0 0.0
  %3188 = vmatpush2.msra.mxu0 0.0
  %3189 = vmatprep.subr.mxu0 0.0
  %3190 = vmatpush2.msra.mxu0 0.0
  %3191 = vmatprep.subr.mxu0 0.0
  %3192 = vmatpush2.msra.mxu0 0.0
  %3193 = vmatprep.subr.mxu0 0.0
  %3194 = vmatpush2.msra.mxu0 0.0
  %3195 = vmatprep.subr.mxu0 0.0
  %3196 = vmatpush2.msra.mxu0 0.0
  %3197 = vmatprep.subr.mxu0 0.0
  %3198 = vmatpush2.msra.mxu0 0.0
  %3199 = vmatprep.subr.mxu0 0.0
  %3200 = vmatpush2.msra.mxu0 0.0
  %3201 = vmatprep.subr.mxu0 0.0
  %3202 = vmatpush2.msra.mxu0 0.0
  %3203 = vmatprep.subr.mxu0 0.0
  %3204 = vmatpush2.msra.mxu0 0.0
  %3205 = vmatprep.mubr.f32.mxu0 0.0
  %3206 = vmatmul.mubr.f32.gmra.mxu0 %v3136
  %v3207 = vpop.f32.mrf.mxu0
  %v3208 = vadd.f32 %v3133, %v3207
  %v3209 = vpop.f32.mrf.mxu0
  %3210 = vmatprep.mubr.f32.mxu0 0.0
  %3211 = vmatmul.mubr.f32.gmra.mxu0 %v3139
  %v3212 = vpop.f32.mrf.mxu0
  %v3213 = vadd.f32 %v3133, %v3212
  %v3214 = vpop.f32.mrf.mxu0
  %3215 = vdwg.mxu0
  %3216 = vst.msk [vmem:[%s13] sm:$0xff] %vm81, %v3208
  %3217 = vst.msk [vmem:[%s13 + $0x8] sm:$0xff] %vm81, %v3213
  // Predicated region
  $region54: #{tpu_custom_call.1} parent=0 // pred_check
    _
  $region55: #{tpu_custom_call.1} parent=0 // pred_check_branch
    %3219 = sbr.rel (0) target = $region57
  $region56: #{tpu_custom_call.1} parent=0 // pred_region
    _
  $region57: #{tpu_custom_call.1} parent=0 // pred_fallthru
    _
  // Predicated region
  $region58: #{tpu_custom_call.1} parent=0 // pred_check
    _
  $region59: #{tpu_custom_call.1} parent=0 // pred_check_branch
    %3221 = sbr.rel (0) target = $region61
  $region60: #{tpu_custom_call.1} parent=0 // pred_region
    _
  $region61: #{tpu_custom_call.1} parent=0 // pred_fallthru
    _

</llo_original>
